<compile_context>
chip_gen: v6e
topology: v6e:2x2x1
jax: 0.10.0
libtpu: 0.0.40
codegen_flags: <defaults>
</compile_context>

<pallas_src>
import math
import functools

import jax
import jax.numpy as jnp
import numpy as np
from jax.experimental import pallas as pl
from jax.experimental.pallas import tpu as pltpu

# Full-precision f32 matmuls in the pure-JAX reference so it matches the
# in-kernel MXU (preferred_element_type=f32) results closely.
jax.config.update("jax_default_matmul_precision", "highest")


def _round_up(x, m):
    return (x + m - 1) // m * m


def _packed_dims(H, D):
    PA = _round_up(D + 3 * H + 1, 128)   # [wk | whr | whz | whn | wb]
    PB = _round_up(3 * H, 128)           # [wir | wiz | win]
    PC = _round_up(2 * D, 128)           # [we | wv]
    R = max(H, D)                        # weight rows; row R holds the biases
    RP = _round_up(R + 1, 8)
    return PA, PB, PC, R, RP


# ----------------------------------------------------------------------------
# One NTM cell update, expressed on values / the packed-weight ref.
# ----------------------------------------------------------------------------
def _cell_step(h_prev, c_prev, c_xf, w_ref, H, D):
    """h_prev (N,H) f32, c_prev/c_xf (N,L,D) f32, w_ref packed-weight VMEM ref."""
    f32 = jnp.float32
    PA, PB, _, R, _ = _packed_dims(H, D)

    # ---- fused matmul over everything that reads h_prev (256-wide) ----------
    act_h = (jnp.dot(h_prev, w_ref[0:H, 0:PA], preferred_element_type=f32)
             + w_ref[R:R + 1, 0:PA])                         # (N, PA)
    k        = act_h[:, 0:D]
    h_r      = act_h[:, D:D + H]
    h_z      = act_h[:, D + H:D + 2 * H]
    h_n      = act_h[:, D + 2 * H:D + 3 * H]
    beta_pre = act_h[:, D + 3 * H:D + 3 * H + 1]

    # beta = softplus(beta_pre) + 1  (exactly equals the clamp/log1p formula)
    beta = (jnp.maximum(beta_pre, 0.0)
            + jnp.log1p(jnp.exp(-jnp.abs(beta_pre))) + 1.0)  # (N, 1)

    # ---- content addressing (cosine similarity, each norm clamped at eps) ---
    eps = 1e-8
    inv_nk = jax.lax.rsqrt(
        jnp.maximum(jnp.sum(k * k, axis=-1, keepdims=True), eps * eps))  # (N,1)
    k_e = k[:, None, :]                                                   # (N,1,D)

    def attend(c):
        dots = jnp.sum(c * k_e, axis=-1)                                  # (N,L)
        inv_nc = jax.lax.rsqrt(
            jnp.maximum(jnp.sum(c * c, axis=-1), eps * eps))              # (N,L)
        x = dots * inv_nc * inv_nk * beta
        m = jnp.max(x, axis=-1, keepdims=True)
        e = jnp.exp(x - m)
        return e * pl.reciprocal(jnp.sum(e, axis=-1, keepdims=True),
                                 approx=False)                            # (N,L)

    w_kx = attend(c_xf)                        # read weights on input memory
    w_kc = attend(c_prev)                      # write weights on prev memory
    r = jnp.sum(w_kx[:, :, None] * c_xf, axis=1)                          # (N,D)

    # ---- GRU cell: h_o = GRUCell(r, h_prev) ----------------------------------
    act_i = (jnp.dot(r, w_ref[0:D, PA:PA + PB], preferred_element_type=f32)
             + w_ref[R:R + 1, PA:PA + PB])                                # (N,PB)
    i_r = act_i[:, 0:H]
    i_z = act_i[:, H:2 * H]
    i_n = act_i[:, 2 * H:3 * H]
    rg = jax.nn.sigmoid(i_r + h_r)
    zg = jax.nn.sigmoid(i_z + h_z)
    ng = jnp.tanh(i_n + rg * h_n)   # PyTorch GRUCell: bias_hn inside rg*(...)
    h_o = (1.0 - zg) * ng + zg * h_prev                                   # (N,H)

    # ---- erase / write (C_Erase=False branch) --------------------------------
    base = PA + PB
    act_o = (jnp.dot(h_o, w_ref[0:H, base:base + 2 * D],
                     preferred_element_type=f32)
             + w_ref[R:R + 1, base:base + 2 * D])                         # (N,2D)
    e = jax.nn.sigmoid(act_o[:, 0:D])                                     # (N,D)
    v = act_o[:, D:2 * D]                                                 # (N,D)
    w2 = w_kc[:, :, None]                                                 # (N,L,1)
    c_new = c_prev * (1.0 - w2 * e[:, None, :]) + w2 * v[:, None, :]      # (N,L,D)
    return h_o, c_new


# ----------------------------------------------------------------------------
# Recurrent kernel: grid=(T,), h/c carried in VMEM scratch across grid steps.
# ----------------------------------------------------------------------------
def ntm_recurrent_kernel(h0_ref, c0_ref, cx_ref, w_ref,
                         h_seq_ref, c_out_ref, h_s, c_s, *, H, D):
    t = pl.program_id(0)

    @pl.when(t == 0)
    def _():
        h_s[...] = h0_ref[...].astype(jnp.float32)
        c_s[...] = c0_ref[...].astype(jnp.float32)

    h_o, c_new = _cell_step(h_s[...], c_s[...],
                            cx_ref[0].astype(jnp.float32), w_ref, H, D)

    h_s[...] = h_o
    c_s[...] = c_new
    h_seq_ref[0] = h_o.astype(h_seq_ref.dtype)      # per-step hidden state
    c_out_ref[...] = c_new.astype(c_out_ref.dtype)  # resident; final value kept


# ----------------------------------------------------------------------------
# Wrappers
# ----------------------------------------------------------------------------
def ntm_forward_batch(h0, c0, c_x_tnld, wpack):
    """T recurrent NTM steps in one pallas_call.

    h0: (N,H)  c0: (N,L,D)  c_x_tnld: (T,N,L,D)  wpack: packed params
    returns (h_seq (T,N,H), c_final (N,L,D))
    """
    T, N, L, D = c_x_tnld.shape
    H = h0.shape[1]

    kernel = functools.partial(ntm_recurrent_kernel, H=H, D=D)
    h_seq, c_final = pl.pallas_call(
        kernel,
        out_shape=(jax.ShapeDtypeStruct((T, N, H), jnp.float32),
                   jax.ShapeDtypeStruct((N, L, D), jnp.float32)),
        grid=(T,),
        in_specs=[
            pl.BlockSpec((N, H), lambda t: (0, 0)),              # h0 (resident)
            pl.BlockSpec((N, L, D), lambda t: (0, 0, 0)),        # c0 (resident)
            pl.BlockSpec((1, N, L, D), lambda t: (t, 0, 0, 0)),  # c_x[t]
            pl.BlockSpec(wpack.shape, lambda t: (0, 0)),         # weights (resident)
        ],
        out_specs=(
            pl.BlockSpec((1, N, H), lambda t: (t, 0, 0)),        # h per step
            pl.BlockSpec((N, L, D), lambda t: (0, 0, 0)),        # final memory
        ),
        scratch_shapes=[pltpu.VMEM((N, H), jnp.float32),         # carried h
                        pltpu.VMEM((N, L, D), jnp.float32)],     # carried c
        compiler_params=pltpu.CompilerParams(
            dimension_semantics=("arbitrary",)),   # recurrence: sequential in t
    )(h0, c0, c_x_tnld, wpack)
    # TODO(synk): on v7x a leading "parallel" batch-block grid axis could use the
    # second TensorCore; skipped here because N=8 cannot be sub-blocked legally.
    return h_seq, c_final


def ntm_forward(h_o_prev, c_prev, c_xf, wpack):
    """NTM.forward: a single cell step (T=1 case of the recurrent kernel)."""
    h_seq, c_new = ntm_forward_batch(h_o_prev, c_prev, c_xf[None], wpack)
    return h_seq[0], c_new


# ----------------------------------------------------------------------------
# Parameter init (shapes from NTMCell_single.__init__) and packing.
# Weights are stored pre-transposed as (in, out) so kernels do x @ W + b.
# ----------------------------------------------------------------------------
def init_params(key, H, D):
    keys = jax.random.split(key, 24)
    it = iter(keys)

    def u(shape, fan_in):
        bound = 1.0 / math.sqrt(fan_in)
        return jax.random.uniform(next(it), shape, jnp.float32, -bound, bound)

    p = {}
    p["wk"], p["bk"] = u((H, D), H), u((1, D), H)   # linear_k
    p["wb"], p["bb"] = u((H, 1), H), u((1, 1), H)   # linear_b
    p["we"], p["be"] = u((H, D), H), u((1, D), H)   # linear_e
    p["wv"], p["bv"] = u((H, D), H), u((1, D), H)   # linear_v
    for name in ("wir", "wiz", "win"):              # GRUCell input weights
        p[name] = u((D, H), H)
    for name in ("bir", "biz", "bin"):
        p[name] = u((1, H), H)
    for name in ("whr", "whz", "whn"):              # GRUCell hidden weights
        p[name] = u((H, H), H)
    for name in ("bhr", "bhz", "bhn"):
        p[name] = u((1, H), H)
    return p


def pack_params(params, H, D):
    """Pack all 22 tensors into one zero-padded (RP, PA+PB+PC) f32 buffer.

    Row R holds every bias; columns: [A: wk|whr|whz|whn|wb] [B: wir|wiz|win]
    [C: we|wv], each group padded to a multiple of 128 lanes.
    """
    p = {k: np.asarray(v, np.float32) for k, v in params.items()}
    PA, PB, PC, R, RP = _packed_dims(H, D)
    W = np.zeros((RP, PA + PB + PC), np.float32)

    # group A (consumed by h_prev)
    W[:H, 0:D] = p["wk"];                 W[R, 0:D] = p["bk"][0]
    W[:H, D:D + H] = p["whr"];            W[R, D:D + H] = p["bhr"][0]
    W[:H, D + H:D + 2 * H] = p["whz"];    W[R, D + H:D + 2 * H] = p["bhz"][0]
    W[:H, D + 2 * H:D + 3 * H] = p["whn"]; W[R, D + 2 * H:D + 3 * H] = p["bhn"][0]
    W[:H, D + 3 * H:D + 3 * H + 1] = p["wb"]; W[R, D + 3 * H] = p["bb"][0, 0]
    # group B (consumed by r)
    W[:D, PA:PA + H] = p["wir"];          W[R, PA:PA + H] = p["bir"][0]
    W[:D, PA + H:PA + 2 * H] = p["wiz"];  W[R, PA + H:PA + 2 * H] = p["biz"][0]
    W[:D, PA + 2 * H:PA + 3 * H] = p["win"]; W[R, PA + 2 * H:PA + 3 * H] = p["bin"][0]
    # group C (consumed by h_o)
    base = PA + PB
    W[:H, base:base + D] = p["we"];       W[R, base:base + D] = p["be"][0]
    W[:H, base + D:base + 2 * D] = p["wv"]; W[R, base + D:base + 2 * D] = p["bv"][0]
    return jnp.asarray(W)


# ----------------------------------------------------------------------------
# Pure-JAX reference mirroring the PyTorch code path (clip kwargs fixed).
# norm_grad(...) in the PyTorch code is a backward-only hook -> no forward effect.
# ----------------------------------------------------------------------------
def ntm_reference_step(h_prev, c_prev, c_xf, p):
    k = h_prev @ p["wk"] + p["bk"]
    beta_pre = h_prev @ p["wb"] + p["bb"]
    beta_pos = jnp.maximum(beta_pre, 0.0)        # .clamp(min=0)
    beta_neg = jnp.minimum(beta_pre, 0.0)        # .clamp(max=0)
    beta = (jnp.log1p(jnp.exp(beta_neg)) + beta_pos
            + jnp.log1p(jnp.exp(-beta_pos)) + (1.0 - math.log(2.0)))
    eps = 1e-8
    k_e = k[:, None, :]

    def cos(a, b):  # PyTorch CosineSimilarity: each norm clamped at eps
        na = jnp.linalg.norm(a, axis=-1)
        nb = jnp.linalg.norm(b, axis=-1)
        return jnp.sum(a * b, -1) / (jnp.maximum(na, eps) * jnp.maximum(nb, eps))

    s_kx = cos(c_xf, k_e)
    w_kx = jax.nn.softmax(s_kx * beta, axis=1)
    r = jnp.einsum("nl,nld->nd", w_kx, c_xf)
    s_kc = cos(c_prev, k_e)
    w_kc = jax.nn.softmax(s_kc * beta, axis=1)

    i_r = r @ p["wir"] + p["bir"]
    i_z = r @ p["wiz"] + p["biz"]
    i_n = r @ p["win"] + p["bin"]
    h_r = h_prev @ p["whr"] + p["bhr"]
    h_z = h_prev @ p["whz"] + p["bhz"]
    h_n = h_prev @ p["whn"] + p["bhn"]
    rg = jax.nn.sigmoid(i_r + h_r)
    zg = jax.nn.sigmoid(i_z + h_z)
    ng = jnp.tanh(i_n + rg * h_n)
    h_o = (1.0 - zg) * ng + zg * h_prev

    e = jax.nn.sigmoid(h_o @ p["we"] + p["be"])
    v = h_o @ p["wv"] + p["bv"]
    w2 = w_kc[:, :, None]
    c_new = c_prev * (1.0 - w2 * e[:, None, :]) + w2 * v[:, None, :]
    return h_o, c_new


if __name__ == "__main__":
    # Small shapes: batch N=8 (fills the 8 vreg sublanes), dim_h_o=32,
    # dim_C2_1=16 memory slots, dim_C2_2=32 memory width, T=4 recurrent steps.
    N, H, L, D, T = 8, 32, 16, 32, 4

    key = jax.random.PRNGKey(0)
    k1, k2, k3, kp = jax.random.split(key, 4)
    h0 = jax.random.normal(k1, (N, H), jnp.float32)
    c0 = jax.random.normal(k2, (N, L, D), jnp.float32)
    c_x = jax.random.normal(k3, (T, N, L, D), jnp.float32)   # time-major for grid
    params = init_params(kp, H, D)
    wpack = pack_params(params, H, D)

    # ---- NTM.forward: single cell step -------------------------------------
    h1, c1 = jax.block_until_ready(ntm_forward(h0, c0, c_x[0], wpack))
    h1_ref, c1_ref = ntm_reference_step(h0, c0, c_x[0], params)
    np.testing.assert_allclose(np.asarray(h1), np.asarray(h1_ref), rtol=1e-4, atol=1e-4)
    np.testing.assert_allclose(np.asarray(c1), np.asarray(c1_ref), rtol=1e-4, atol=1e-4)

    # ---- NTM.forward_batch: T steps fused into one pallas_call --------------
    h_seq, c_T = jax.block_until_ready(ntm_forward_batch(h0, c0, c_x, wpack))
    h_r, c_r = h0, c0
    for t in range(T):
        h_r, c_r = ntm_reference_step(h_r, c_r, c_x[t], params)
        np.testing.assert_allclose(np.asarray(h_seq[t]), np.asarray(h_r),
                                   rtol=1e-4, atol=1e-4)
    np.testing.assert_allclose(np.asarray(c_T), np.asarray(c_r), rtol=1e-4, atol=1e-4)

    # TODO(synk): mult_model=True branch, LayerNorm (C_norm), C_Erase=True and
    # GaussianBlurConv (C_blur) config branches are not exercised by NTM.forward
    # and are not implemented.
    print("KERNEL_OK")
</pallas_src>

<mosaic_0001>
module attributes {stable_mosaic.version = 11 : i64} {
  func.func @ntm_recurrent_kernel(%arg0: i32, %arg1: memref<8x32xf32, #tpu.memory_space<vmem>>, %arg2: memref<8x16x32xf32, #tpu.memory_space<vmem>>, %arg3: memref<1x8x16x32xf32, #tpu.memory_space<vmem>>, %arg4: memref<40x512xf32, #tpu.memory_space<vmem>>, %arg5: memref<1x8x32xf32, #tpu.memory_space<vmem>>, %arg6: memref<8x16x32xf32, #tpu.memory_space<vmem>>, %arg7: memref<8x32xf32, #tpu.memory_space<vmem>>, %arg8: memref<8x16x32xf32, #tpu.memory_space<vmem>>) attributes {dimension_semantics = [#tpu.dimension_semantics<arbitrary>], iteration_bounds = array<i64: 1>, scalar_prefetch = 0 : i64, scratch_operands = 2 : i64, tpu.core_type = #tpu.core_type<tc>, window_params = [{pipeline_mode = #tpu.pipeline_mode<synchronous>, transform_indices = @transform_0, window_bounds = array<i64: 8, 32>}, {pipeline_mode = #tpu.pipeline_mode<synchronous>, transform_indices = @transform_1, window_bounds = array<i64: 8, 16, 32>}, {transform_indices = @transform_2, window_bounds = array<i64: 1, 8, 16, 32>}, {pipeline_mode = #tpu.pipeline_mode<synchronous>, transform_indices = @transform_3, window_bounds = array<i64: 40, 512>}, {transform_indices = @transform_4, window_bounds = array<i64: 1, 8, 32>}, {pipeline_mode = #tpu.pipeline_mode<synchronous>, transform_indices = @transform_5, window_bounds = array<i64: 8, 16, 32>}]} {
    %c0_i32 = arith.constant 0 : i32
    %0 = arith.cmpi eq, %arg0, %c0_i32 : i32
    %1 = arith.extui %0 : i1 to i32
    %c0_i32_0 = arith.constant 0 : i32
    %2 = arith.cmpi ne, %1, %c0_i32_0 : i32
    scf.if %2 {
      %c0_52 = arith.constant 0 : index
      %c0_53 = arith.constant 0 : index
      %143 = vector.load %arg1[%c0_52, %c0_53] : memref<8x32xf32, #tpu.memory_space<vmem>>, vector<8x32xf32>
      %c0_54 = arith.constant 0 : index
      %c0_55 = arith.constant 0 : index
      %144 = vector.load %arg7[%c0_54, %c0_55] : memref<8x32xf32, #tpu.memory_space<vmem>>, vector<8x32xf32>
      tpu.vector_store %arg7[%c0_54, %c0_55], %143 {strides = array<i32>} : memref<8x32xf32, #tpu.memory_space<vmem>>, vector<8x32xf32>,
      %c0_56 = arith.constant 0 : index
      %c0_57 = arith.constant 0 : index
      %c0_58 = arith.constant 0 : index
      %145 = vector.load %arg2[%c0_56, %c0_57, %c0_58] : memref<8x16x32xf32, #tpu.memory_space<vmem>>, vector<8x16x32xf32>
      %c0_59 = arith.constant 0 : index
      %c0_60 = arith.constant 0 : index
      %c0_61 = arith.constant 0 : index
      %146 = vector.load %arg8[%c0_59, %c0_60, %c0_61] : memref<8x16x32xf32, #tpu.memory_space<vmem>>, vector<8x16x32xf32>
      tpu.vector_store %arg8[%c0_59, %c0_60, %c0_61], %145 {strides = array<i32>} : memref<8x16x32xf32, #tpu.memory_space<vmem>>, vector<8x16x32xf32>,
    } else {
    }
    %c0 = arith.constant 0 : index
    %c0_1 = arith.constant 0 : index
    %3 = vector.load %arg7[%c0, %c0_1] : memref<8x32xf32, #tpu.memory_space<vmem>>, vector<8x32xf32>
    %c0_2 = arith.constant 0 : index
    %c0_3 = arith.constant 0 : index
    %c0_4 = arith.constant 0 : index
    %4 = vector.load %arg8[%c0_2, %c0_3, %c0_4] : memref<8x16x32xf32, #tpu.memory_space<vmem>>, vector<8x16x32xf32>
    %c0_5 = arith.constant 0 : index
    %c0_6 = arith.constant 0 : index
    %c0_7 = arith.constant 0 : index
    %c0_8 = arith.constant 0 : index
    %5 = vector.load %arg3[%c0_5, %c0_6, %c0_7, %c0_8] : memref<1x8x16x32xf32, #tpu.memory_space<vmem>>, vector<1x8x16x32xf32>
    %6 = vector.shape_cast %5 : vector<1x8x16x32xf32> to vector<8x16x32xf32>
    %c0_9 = arith.constant 0 : index
    %c0_10 = arith.constant 0 : index
    %7 = vector.load %arg4[%c0_9, %c0_10] : memref<40x512xf32, #tpu.memory_space<vmem>>, vector<32x256xf32>
    %cst = arith.constant dense<0.000000e+00> : vector<8x256xf32>
    %8 = tpu.matmul %3, %7, %cst {dimension_numbers = #tpu.dot_dimension_numbers<[1], [0], [0], [1], [0, 0, 1, 1], [], []>, precision = #tpu.contract_precision<fp32>} : vector<8x32xf32>, vector<32x256xf32>, vector<8x256xf32> -> vector<8x256xf32>
    %c32 = arith.constant 32 : index
    %c0_11 = arith.constant 0 : index
    %9 = vector.load %arg4[%c32, %c0_11] : memref<40x512xf32, #tpu.memory_space<vmem>>, vector<1x256xf32>
    %10 = vector.broadcast %9 : vector<1x256xf32> to vector<8x256xf32>
    %11 = arith.addf %8, %10 : vector<8x256xf32>
    %12 = vector.extract_strided_slice %11 {offsets = [0, 0], sizes = [8, 32], strides = [1, 1]} : vector<8x256xf32> to vector<8x32xf32>
    %13 = vector.extract_strided_slice %11 {offsets = [0, 32], sizes = [8, 32], strides = [1, 1]} : vector<8x256xf32> to vector<8x32xf32>
    %14 = vector.extract_strided_slice %11 {offsets = [0, 64], sizes = [8, 32], strides = [1, 1]} : vector<8x256xf32> to vector<8x32xf32>
    %15 = vector.extract_strided_slice %11 {offsets = [0, 96], sizes = [8, 32], strides = [1, 1]} : vector<8x256xf32> to vector<8x32xf32>
    %16 = vector.extract_strided_slice %11 {offsets = [0, 128], sizes = [8, 1], strides = [1, 1]} : vector<8x256xf32> to vector<8x1xf32>
    %cst_12 = arith.constant 0.000000e+00 : f32
    %17 = vector.broadcast %cst_12 : f32 to vector<8x1xf32>
    %18 = arith.maximumf %16, %17 : vector<8x1xf32>
    %19 = math.absf %16 : vector<8x1xf32>
    %cst_13 = arith.constant 0.000000e+00 : f32
    %20 = vector.broadcast %cst_13 : f32 to vector<8x1xf32>
    %21 = arith.subf %20, %19 : vector<8x1xf32>
    %22 = math.exp %21 : vector<8x1xf32>
    %23 = math.log1p %22 : vector<8x1xf32>
    %24 = arith.addf %18, %23 : vector<8x1xf32>
    %cst_14 = arith.constant 1.000000e+00 : f32
    %25 = vector.broadcast %cst_14 : f32 to vector<8x1xf32>
    %26 = arith.addf %24, %25 : vector<8x1xf32>
    %27 = arith.mulf %12, %12 : vector<8x32xf32>
    %cst_15 = arith.constant dense<0.000000e+00> : vector<8xf32>
    %28 = vector.multi_reduction <add>, %27, %cst_15 [1] : vector<8x32xf32> to vector<8xf32>
    %29 = vector.shape_cast %28 : vector<8xf32> to vector<8x1xf32>
    %cst_16 = arith.constant 1.000000e-16 : f32
    %30 = vector.broadcast %cst_16 : f32 to vector<8x1xf32>
    %31 = arith.maximumf %29, %30 : vector<8x1xf32>
    %32 = math.rsqrt %31 : vector<8x1xf32>
    %33 = vector.shape_cast %12 : vector<8x32xf32> to vector<8x1x32xf32>
    %34 = vector.broadcast %33 : vector<8x1x32xf32> to vector<8x16x32xf32>
    %35 = arith.mulf %6, %34 : vector<8x16x32xf32>
    %cst_17 = arith.constant dense<0.000000e+00> : vector<8x16xf32>
    %36 = vector.multi_reduction <add>, %35, %cst_17 [2] : vector<8x16x32xf32> to vector<8x16xf32>
    %37 = arith.mulf %6, %6 : vector<8x16x32xf32>
    %cst_18 = arith.constant dense<0.000000e+00> : vector<8x16xf32>
    %38 = vector.multi_reduction <add>, %37, %cst_18 [2] : vector<8x16x32xf32> to vector<8x16xf32>
    %cst_19 = arith.constant 1.000000e-16 : f32
    %39 = vector.broadcast %cst_19 : f32 to vector<8x16xf32>
    %40 = arith.maximumf %38, %39 : vector<8x16xf32>
    %41 = math.rsqrt %40 : vector<8x16xf32>
    %42 = arith.mulf %36, %41 : vector<8x16xf32>
    %43 = vector.broadcast %32 : vector<8x1xf32> to vector<8x16xf32>
    %44 = arith.mulf %42, %43 : vector<8x16xf32>
    %45 = vector.broadcast %26 : vector<8x1xf32> to vector<8x16xf32>
    %46 = arith.mulf %44, %45 : vector<8x16xf32>
    %cst_20 = arith.constant dense<0xFF800000> : vector<8xf32>
    %47 = vector.multi_reduction <maximumf>, %46, %cst_20 [1] : vector<8x16xf32> to vector<8xf32>
    %48 = vector.shape_cast %47 : vector<8xf32> to vector<8x1xf32>
    %49 = vector.broadcast %48 : vector<8x1xf32> to vector<8x16xf32>
    %50 = arith.subf %46, %49 : vector<8x16xf32>
    %51 = math.exp %50 : vector<8x16xf32>
    %cst_21 = arith.constant dense<0.000000e+00> : vector<8xf32>
    %52 = vector.multi_reduction <add>, %51, %cst_21 [1] : vector<8x16xf32> to vector<8xf32>
    %53 = vector.shape_cast %52 : vector<8xf32> to vector<8x1xf32>
    %54 = tpu.reciprocal %53 : vector<8x1xf32> -> vector<8x1xf32>
    %55 = vector.broadcast %54 : vector<8x1xf32> to vector<8x16xf32>
    %56 = arith.mulf %51, %55 : vector<8x16xf32>
    %57 = vector.broadcast %33 : vector<8x1x32xf32> to vector<8x16x32xf32>
    %58 = arith.mulf %4, %57 : vector<8x16x32xf32>
    %cst_22 = arith.constant dense<0.000000e+00> : vector<8x16xf32>
    %59 = vector.multi_reduction <add>, %58, %cst_22 [2] : vector<8x16x32xf32> to vector<8x16xf32>
    %60 = arith.mulf %4, %4 : vector<8x16x32xf32>
    %cst_23 = arith.constant dense<0.000000e+00> : vector<8x16xf32>
    %61 = vector.multi_reduction <add>, %60, %cst_23 [2] : vector<8x16x32xf32> to vector<8x16xf32>
    %cst_24 = arith.constant 1.000000e-16 : f32
    %62 = vector.broadcast %cst_24 : f32 to vector<8x16xf32>
    %63 = arith.maximumf %61, %62 : vector<8x16xf32>
    %64 = math.rsqrt %63 : vector<8x16xf32>
    %65 = arith.mulf %59, %64 : vector<8x16xf32>
    %66 = vector.broadcast %32 : vector<8x1xf32> to vector<8x16xf32>
    %67 = arith.mulf %65, %66 : vector<8x16xf32>
    %68 = vector.broadcast %26 : vector<8x1xf32> to vector<8x16xf32>
    %69 = arith.mulf %67, %68 : vector<8x16xf32>
    %cst_25 = arith.constant dense<0xFF800000> : vector<8xf32>
    %70 = vector.multi_reduction <maximumf>, %69, %cst_25 [1] : vector<8x16xf32> to vector<8xf32>
    %71 = vector.shape_cast %70 : vector<8xf32> to vector<8x1xf32>
    %72 = vector.broadcast %71 : vector<8x1xf32> to vector<8x16xf32>
    %73 = arith.subf %69, %72 : vector<8x16xf32>
    %74 = math.exp %73 : vector<8x16xf32>
    %cst_26 = arith.constant dense<0.000000e+00> : vector<8xf32>
    %75 = vector.multi_reduction <add>, %74, %cst_26 [1] : vector<8x16xf32> to vector<8xf32>
    %76 = vector.shape_cast %75 : vector<8xf32> to vector<8x1xf32>
    %77 = tpu.reciprocal %76 : vector<8x1xf32> -> vector<8x1xf32>
    %78 = vector.broadcast %77 : vector<8x1xf32> to vector<8x16xf32>
    %79 = arith.mulf %74, %78 : vector<8x16xf32>
    %80 = vector.shape_cast %56 : vector<8x16xf32> to vector<8x16x1xf32>
    %81 = vector.broadcast %80 : vector<8x16x1xf32> to vector<8x16x32xf32>
    %82 = arith.mulf %81, %6 : vector<8x16x32xf32>
    %cst_27 = arith.constant dense<0.000000e+00> : vector<8x32xf32>
    %83 = vector.multi_reduction <add>, %82, %cst_27 [1] : vector<8x16x32xf32> to vector<8x32xf32>
    %c0_28 = arith.constant 0 : index
    %c256 = arith.constant 256 : index
    %84 = vector.load %arg4[%c0_28, %c256] : memref<40x512xf32, #tpu.memory_space<vmem>>, vector<32x128xf32>
    %cst_29 = arith.constant dense<0.000000e+00> : vector<8x128xf32>
    %85 = tpu.matmul %83, %84, %cst_29 {dimension_numbers = #tpu.dot_dimension_numbers<[1], [0], [0], [1], [0, 0, 1, 1], [], []>, precision = #tpu.contract_precision<fp32>} : vector<8x32xf32>, vector<32x128xf32>, vector<8x128xf32> -> vector<8x128xf32>
    %c32_30 = arith.constant 32 : index
    %c256_31 = arith.constant 256 : index
    %86 = vector.load %arg4[%c32_30, %c256_31] : memref<40x512xf32, #tpu.memory_space<vmem>>, vector<1x128xf32>
    %87 = vector.broadcast %86 : vector<1x128xf32> to vector<8x128xf32>
    %88 = arith.addf %85, %87 : vector<8x128xf32>
    %89 = vector.extract_strided_slice %88 {offsets = [0, 0], sizes = [8, 32], strides = [1, 1]} : vector<8x128xf32> to vector<8x32xf32>
    %90 = vector.extract_strided_slice %88 {offsets = [0, 32], sizes = [8, 32], strides = [1, 1]} : vector<8x128xf32> to vector<8x32xf32>
    %91 = vector.extract_strided_slice %88 {offsets = [0, 64], sizes = [8, 32], strides = [1, 1]} : vector<8x128xf32> to vector<8x32xf32>
    %92 = arith.addf %89, %13 : vector<8x32xf32>
    %93 = arith.negf %92 : vector<8x32xf32>
    %94 = math.exp %93 : vector<8x32xf32>
    %cst_32 = arith.constant 1.000000e+00 : f32
    %95 = vector.broadcast %cst_32 : f32 to vector<8x32xf32>
    %96 = arith.addf %95, %94 : vector<8x32xf32>
    %97 = arith.divf %95, %96 : vector<8x32xf32>
    %98 = arith.addf %90, %14 : vector<8x32xf32>
    %99 = arith.negf %98 : vector<8x32xf32>
    %100 = math.exp %99 : vector<8x32xf32>
    %cst_33 = arith.constant 1.000000e+00 : f32
    %101 = vector.broadcast %cst_33 : f32 to vector<8x32xf32>
    %102 = arith.addf %101, %100 : vector<8x32xf32>
    %103 = arith.divf %101, %102 : vector<8x32xf32>
    %104 = arith.mulf %97, %15 : vector<8x32xf32>
    %105 = arith.addf %91, %104 : vector<8x32xf32>
    %106 = math.tanh %105 : vector<8x32xf32>
    %cst_34 = arith.constant 1.000000e+00 : f32
    %107 = vector.broadcast %cst_34 : f32 to vector<8x32xf32>
    %108 = arith.subf %107, %103 : vector<8x32xf32>
    %109 = arith.mulf %108, %106 : vector<8x32xf32>
    %110 = arith.mulf %103, %3 : vector<8x32xf32>
    %111 = arith.addf %109, %110 : vector<8x32xf32>
    %c0_35 = arith.constant 0 : index
    %c384 = arith.constant 384 : index
    %112 = vector.load %arg4[%c0_35, %c384] : memref<40x512xf32, #tpu.memory_space<vmem>>, vector<32x64xf32>
    %cst_36 = arith.constant dense<0.000000e+00> : vector<8x64xf32>
    %113 = tpu.matmul %111, %112, %cst_36 {dimension_numbers = #tpu.dot_dimension_numbers<[1], [0], [0], [1], [0, 0, 1, 1], [], []>, precision = #tpu.contract_precision<fp32>} : vector<8x32xf32>, vector<32x64xf32>, vector<8x64xf32> -> vector<8x64xf32>
    %c32_37 = arith.constant 32 : index
    %c384_38 = arith.constant 384 : index
    %114 = vector.load %arg4[%c32_37, %c384_38] : memref<40x512xf32, #tpu.memory_space<vmem>>, vector<1x64xf32>
    %115 = vector.broadcast %114 : vector<1x64xf32> to vector<8x64xf32>
    %116 = arith.addf %113, %115 : vector<8x64xf32>
    %117 = vector.extract_strided_slice %116 {offsets = [0, 0], sizes = [8, 32], strides = [1, 1]} : vector<8x64xf32> to vector<8x32xf32>
    %118 = arith.negf %117 : vector<8x32xf32>
    %119 = math.exp %118 : vector<8x32xf32>
    %cst_39 = arith.constant 1.000000e+00 : f32
    %120 = vector.broadcast %cst_39 : f32 to vector<8x32xf32>
    %121 = arith.addf %120, %119 : vector<8x32xf32>
    %122 = arith.divf %120, %121 : vector<8x32xf32>
    %123 = vector.extract_strided_slice %116 {offsets = [0, 32], sizes = [8, 32], strides = [1, 1]} : vector<8x64xf32> to vector<8x32xf32>
    %124 = vector.shape_cast %79 : vector<8x16xf32> to vector<8x16x1xf32>
    %125 = vector.shape_cast %122 : vector<8x32xf32> to vector<8x1x32xf32>
    %126 = vector.broadcast %124 : vector<8x16x1xf32> to vector<8x16x32xf32>
    %127 = vector.broadcast %125 : vector<8x1x32xf32> to vector<8x16x32xf32>
    %128 = arith.mulf %126, %127 : vector<8x16x32xf32>
    %cst_40 = arith.constant 1.000000e+00 : f32
    %129 = vector.broadcast %cst_40 : f32 to vector<8x16x32xf32>
    %130 = arith.subf %129, %128 : vector<8x16x32xf32>
    %131 = arith.mulf %4, %130 : vector<8x16x32xf32>
    %132 = vector.shape_cast %123 : vector<8x32xf32> to vector<8x1x32xf32>
    %133 = vector.broadcast %124 : vector<8x16x1xf32> to vector<8x16x32xf32>
    %134 = vector.broadcast %132 : vector<8x1x32xf32> to vector<8x16x32xf32>
    %135 = arith.mulf %133, %134 : vector<8x16x32xf32>
    %136 = arith.addf %131, %135 : vector<8x16x32xf32>
    %c0_41 = arith.constant 0 : index
    %c0_42 = arith.constant 0 : index
    %137 = vector.load %arg7[%c0_41, %c0_42] : memref<8x32xf32, #tpu.memory_space<vmem>>, vector<8x32xf32>
    tpu.vector_store %arg7[%c0_41, %c0_42], %111 {strides = array<i32>} : memref<8x32xf32, #tpu.memory_space<vmem>>, vector<8x32xf32>,
    %c0_43 = arith.constant 0 : index
    %c0_44 = arith.constant 0 : index
    %c0_45 = arith.constant 0 : index
    %138 = vector.load %arg8[%c0_43, %c0_44, %c0_45] : memref<8x16x32xf32, #tpu.memory_space<vmem>>, vector<8x16x32xf32>
    tpu.vector_store %arg8[%c0_43, %c0_44, %c0_45], %136 {strides = array<i32>} : memref<8x16x32xf32, #tpu.memory_space<vmem>>, vector<8x16x32xf32>,
    %c0_46 = arith.constant 0 : index
    %c0_47 = arith.constant 0 : index
    %c0_48 = arith.constant 0 : index
    %139 = vector.load %arg5[%c0_46, %c0_47, %c0_48] : memref<1x8x32xf32, #tpu.memory_space<vmem>>, vector<1x8x32xf32>
    %140 = vector.shape_cast %139 : vector<1x8x32xf32> to vector<8x32xf32>
    %141 = vector.shape_cast %111 : vector<8x32xf32> to vector<1x8x32xf32>
    tpu.vector_store %arg5[%c0_46, %c0_47, %c0_48], %141 {strides = array<i32>} : memref<1x8x32xf32, #tpu.memory_space<vmem>>, vector<1x8x32xf32>,
    %c0_49 = arith.constant 0 : index
    %c0_50 = arith.constant 0 : index
    %c0_51 = arith.constant 0 : index
    %142 = vector.load %arg6[%c0_49, %c0_50, %c0_51] : memref<8x16x32xf32, #tpu.memory_space<vmem>>, vector<8x16x32xf32>
    tpu.vector_store %arg6[%c0_49, %c0_50, %c0_51], %136 {strides = array<i32>} : memref<8x16x32xf32, #tpu.memory_space<vmem>>, vector<8x16x32xf32>,
    return
  }
  func.func @transform_0(%arg0: i32) -> (i32, i32) {
    %c0_i32 = arith.constant 0 : i32
    %c0_i32_0 = arith.constant 0 : i32
    %c0_i32_1 = arith.constant 0 : i32
    return %c0_i32, %c0_i32_0 : i32, i32
  }
  func.func @transform_1(%arg0: i32) -> (i32, i32, i32) {
    %c0_i32 = arith.constant 0 : i32
    %c0_i32_0 = arith.constant 0 : i32
    %c0_i32_1 = arith.constant 0 : i32
    %c0_i32_2 = arith.constant 0 : i32
    return %c0_i32, %c0_i32_0, %c0_i32_1 : i32, i32, i32
  }
  func.func @transform_2(%arg0: i32) -> (i32, i32, i32, i32) {
    %c0_i32 = arith.constant 0 : i32
    %c0_i32_0 = arith.constant 0 : i32
    %c0_i32_1 = arith.constant 0 : i32
    %c0_i32_2 = arith.constant 0 : i32
    return %arg0, %c0_i32, %c0_i32_0, %c0_i32_1 : i32, i32, i32, i32
  }
  func.func @transform_3(%arg0: i32) -> (i32, i32) {
    %c0_i32 = arith.constant 0 : i32
    %c0_i32_0 = arith.constant 0 : i32
    %c0_i32_1 = arith.constant 0 : i32
    return %c0_i32, %c0_i32_0 : i32, i32
  }
  func.func @transform_4(%arg0: i32) -> (i32, i32, i32) {
    %c0_i32 = arith.constant 0 : i32
    %c0_i32_0 = arith.constant 0 : i32
    %c0_i32_1 = arith.constant 0 : i32
    return %arg0, %c0_i32, %c0_i32_0 : i32, i32, i32
  }
  func.func @transform_5(%arg0: i32) -> (i32, i32, i32) {
    %c0_i32 = arith.constant 0 : i32
    %c0_i32_0 = arith.constant 0 : i32
    %c0_i32_1 = arith.constant 0 : i32
    %c0_i32_2 = arith.constant 0 : i32
    return %c0_i32, %c0_i32_0, %c0_i32_1 : i32, i32, i32
  }
}

</mosaic_0001>

<llo_original>
// kernel: tpu_custom_call.1
$region0: #{tpu_custom_call.1}
  #allocation0 [shape = 'u32[]', space=smem, size = 0x4, offset = 0x4, fixed_abs, tag = 'smem constant byte address 0x4 - core index']
  #allocation1 [shape = 'u32[144,128]{1,0:T(1,128)}', space=vmem, size = 0x12000, scoped, tag = 'internal scratch']
  #allocation2 [shape = 'f32[8,32]{1,0:T(8,128)}', space=vmem, size = 0x1000, scoped, tag = 'scratch operand']
  #allocation3 [shape = 'f32[8,16,32]{2,1,0:T(8,128)}', space=vmem, size = 0x10000, scoped, tag = 'scratch operand']
  %s0 = inlined_call_operand.hbm [shape: f32[8,32], index: 0, kind: input, shape index: {}]
  %s1 = inlined_call_operand.hbm [shape: f32[8,16,32], index: 1, kind: input, shape index: {}]
  %s2 = inlined_call_operand.hbm [shape: f32[1,8,16,32], index: 2, kind: input, shape index: {}]
  %s3 = inlined_call_operand.hbm [shape: f32[40,512], index: 3, kind: input, shape index: {}]
  %s4 = inlined_call_operand.hbm [shape: f32[1,8,32], index: 4, kind: output, shape index: {0}]
  %s5 = inlined_call_operand.hbm [shape: f32[8,16,32], index: 5, kind: output, shape index: {1}]
  %6 = xla_tuple %s4, %s5
  %s7 = sld [smem:[#allocation0]]
  $region54: #{tpu_custom_call.1} parent=0
    _
  %s9 = ssub.s32 1, %s7
  %s10 = scalar_select 0, %s9, %s7
  $region1: #{tpu_custom_call.1} parent=0
    #allocation4 [shape = 'u8[4096]{0}', space=vmem, size = 0x1000, scoped, tag = 'input window, operand 0, single buffered']
    #allocation5 [shape = 's32[1]{0}', space=sflag, size = 0x4, scoped, tag = 'scoped memory for tpu_custom_call.1']
    #allocation6 [shape = 's32[1]{0}', space=sflag, size = 0x4, scoped, tag = 'scoped memory for tpu_custom_call.1']
    #allocation7 [shape = 'u8[65536]{0}', space=vmem, size = 0x10000, scoped, tag = 'input window, operand 1, single buffered']
    #allocation8 [shape = 's32[1]{0}', space=sflag, size = 0x4, scoped, tag = 'scoped memory for tpu_custom_call.1']
    #allocation9 [shape = 'u8[65536]{0}', space=vmem, size = 0x10000, scoped, tag = 'input window, operand 2, single buffered']
    #allocation10 [shape = 'u8[81920]{0}', space=vmem, size = 0x14000, scoped, tag = 'input window, operand 3, single buffered']
    #allocation11 [shape = 's32[1]{0}', space=sflag, size = 0x4, scoped, tag = 'scoped memory for tpu_custom_call.1']
    #allocation12 [shape = 'u8[4096]{0}', space=vmem, size = 0x1000, scoped, tag = 'output window, operand 0, single buffered']
    #allocation13 [shape = 'u8[65536]{0}', space=vmem, size = 0x10000, scoped, tag = 'output window, operand 1, single buffered']
    #allocation14 [shape = 's32[1]{0}', space=sflag, size = 0x4, scoped, tag = 'scoped memory for tpu_custom_call.1']
    %11 = vsyncpa [#allocation5], 0
    %12 = vsyncpa [#allocation8], 0
    %13 = vsyncpa [#allocation11], 0
    %14 = vsyncpa [#allocation6], 0
    %15 = vsyncpa [#allocation14], 0
    // Predicated region
    $region2: #{tpu_custom_call.1} parent=1 // pred_check
      _
    $region3: #{tpu_custom_call.1} parent=1 // pred_check_branch
      %17 = sbr.rel (0) target = $region5
    $region4: #{tpu_custom_call.1} parent=1 // pred_region
      %s19 = ssub.s32 128, 128
      %20 = vsyncadd [#allocation5], %s19
      %s22 = sshll.u32 [#allocation4], 4
      %s23 = int_to_ptr.vmem [resolvable:$true] %s22
      %25 = dma.hbm_to_vmem [thread:$0]  %s0, 128, %s23, [#allocation5]
    $region5: #{tpu_custom_call.1} parent=1 // pred_fallthru
      _
    // Predicated region
    $region6: #{tpu_custom_call.1} parent=1 // pred_check
      _
    $region7: #{tpu_custom_call.1} parent=1 // pred_check_branch
      %27 = sbr.rel (0) target = $region9
    $region8: #{tpu_custom_call.1} parent=1 // pred_region
      %s29 = ssub.s32 2048, 2048
      %30 = vsyncadd [#allocation8], %s29
      %s31 = sshll.u32 [#allocation7], 4
      %s32 = int_to_ptr.vmem [resolvable:$true] %s31
      %37 = dma.hbm_to_vmem [thread:$0]  %s1, 2048, %s32, [#allocation8], 128, 128, 8
    $region9: #{tpu_custom_call.1} parent=1 // pred_fallthru
      _
    // Predicated region
    $region10: #{tpu_custom_call.1} parent=1 // pred_check
      _
    $region11: #{tpu_custom_call.1} parent=1 // pred_check_branch
      %39 = sbr.rel (0) target = $region13
    $region12: #{tpu_custom_call.1} parent=1 // pred_region
      %s41 = ssub.s32 2048, 2048
      %42 = vsyncadd [#allocation8], %s41
      %s43 = sshll.u32 [#allocation9], 4
      %s44 = int_to_ptr.vmem [resolvable:$true] %s43
      %49 = dma.hbm_to_vmem [thread:$0]  %s2, 2048, %s44, [#allocation8], 128, 128, 8
    $region13: #{tpu_custom_call.1} parent=1 // pred_fallthru
      _
    // Predicated region
    $region14: #{tpu_custom_call.1} parent=1 // pred_check
      _
    $region15: #{tpu_custom_call.1} parent=1 // pred_check_branch
      %51 = sbr.rel (0) target = $region17
    $region16: #{tpu_custom_call.1} parent=1 // pred_region
      %s53 = ssub.s32 2560, 2560
      %54 = vsyncadd [#allocation11], %s53
      %s55 = sshll.u32 [#allocation10], 4
      %s56 = int_to_ptr.vmem [resolvable:$true] %s55
      %61 = dma.hbm_to_vmem [thread:$0]  %s3, 2560, %s56, [#allocation11], 512, 512, 32
    $region17: #{tpu_custom_call.1} parent=1 // pred_fallthru
      _
    // Predicated region
    $region18: #{tpu_custom_call.1} parent=1 // pred_check
      _
    $region19: #{tpu_custom_call.1} parent=1 // pred_check_branch
      %63 = sbr.rel (0) target = $region21
    $region20: #{tpu_custom_call.1} parent=1 // pred_region
      %64 = dma.done [#allocation5], 128
    $region21: #{tpu_custom_call.1} parent=1 // pred_fallthru
      _
    // Predicated region
    $region22: #{tpu_custom_call.1} parent=1 // pred_check
      _
    $region23: #{tpu_custom_call.1} parent=1 // pred_check_branch
      %66 = sbr.rel (0) target = $region25
    $region24: #{tpu_custom_call.1} parent=1 // pred_region
      %67 = dma.done [#allocation8], 2048
    $region25: #{tpu_custom_call.1} parent=1 // pred_fallthru
      _
    // Predicated region
    $region26: #{tpu_custom_call.1} parent=1 // pred_check
      _
    $region27: #{tpu_custom_call.1} parent=1 // pred_check_branch
      %69 = sbr.rel (0) target = $region29
    $region28: #{tpu_custom_call.1} parent=1 // pred_region
      %70 = dma.done [#allocation8], 2048
    $region29: #{tpu_custom_call.1} parent=1 // pred_fallthru
      _
    // Predicated region
    $region30: #{tpu_custom_call.1} parent=1 // pred_check
      _
    $region31: #{tpu_custom_call.1} parent=1 // pred_check_branch
      %72 = sbr.rel (0) target = $region33
    $region32: #{tpu_custom_call.1} parent=1 // pred_region
      %73 = dma.done [#allocation11], 2560
    $region33: #{tpu_custom_call.1} parent=1 // pred_fallthru
      _
    %p74 = scmp.eq.s32.totalorder 0, 0
    // Predicated region
    $region34: #{tpu_custom_call.1} parent=1 // pred_check
      %p75 = pneg %p74
    $region35: #{tpu_custom_call.1} parent=1 // pred_check_branch
      %77 = sbr.rel (%p75) target = $region37
    $region36: #{tpu_custom_call.1} parent=1 // pred_region
      %v78 = vld [vmem:[#allocation4] sm:$0xff]
      %vm79 = vcmask 261120
      %80 = vst.msk [vmem:[#allocation2] sm:$0xff] %vm79, %v78
      %v81 = vld [vmem:[#allocation7] sm:$0xff]
      %v82 = vld [vmem:[#allocation7 + $0x8] sm:$0xff]
      %v83 = vld [vmem:[#allocation7 + $0x10] sm:$0xff]
      %v84 = vld [vmem:[#allocation7 + $0x18] sm:$0xff]
      %v85 = vld [vmem:[#allocation7 + $0x20] sm:$0xff]
      %v86 = vld [vmem:[#allocation7 + $0x28] sm:$0xff]
      %v87 = vld [vmem:[#allocation7 + $0x30] sm:$0xff]
      %v88 = vld [vmem:[#allocation7 + $0x38] sm:$0xff]
      %v89 = vld [vmem:[#allocation7 + $0x40] sm:$0xff]
      %v90 = vld [vmem:[#allocation7 + $0x48] sm:$0xff]
      %v91 = vld [vmem:[#allocation7 + $0x50] sm:$0xff]
      %v92 = vld [vmem:[#allocation7 + $0x58] sm:$0xff]
      %v93 = vld [vmem:[#allocation7 + $0x60] sm:$0xff]
      %v94 = vld [vmem:[#allocation7 + $0x68] sm:$0xff]
      %v95 = vld [vmem:[#allocation7 + $0x70] sm:$0xff]
      %v96 = vld [vmem:[#allocation7 + $0x78] sm:$0xff]
      %97 = vst.msk [vmem:[#allocation3] sm:$0xff] %vm79, %v81
      %98 = vst.msk [vmem:[#allocation3 + $0x8] sm:$0xff] %vm79, %v82
      %99 = vst.msk [vmem:[#allocation3 + $0x10] sm:$0xff] %vm79, %v83
      %100 = vst.msk [vmem:[#allocation3 + $0x18] sm:$0xff] %vm79, %v84
      %101 = vst.msk [vmem:[#allocation3 + $0x20] sm:$0xff] %vm79, %v85
      %102 = vst.msk [vmem:[#allocation3 + $0x28] sm:$0xff] %vm79, %v86
      %103 = vst.msk [vmem:[#allocation3 + $0x30] sm:$0xff] %vm79, %v87
      %104 = vst.msk [vmem:[#allocation3 + $0x38] sm:$0xff] %vm79, %v88
      %105 = vst.msk [vmem:[#allocation3 + $0x40] sm:$0xff] %vm79, %v89
      %106 = vst.msk [vmem:[#allocation3 + $0x48] sm:$0xff] %vm79, %v90
      %107 = vst.msk [vmem:[#allocation3 + $0x50] sm:$0xff] %vm79, %v91
      %108 = vst.msk [vmem:[#allocation3 + $0x58] sm:$0xff] %vm79, %v92
      %109 = vst.msk [vmem:[#allocation3 + $0x60] sm:$0xff] %vm79, %v93
      %110 = vst.msk [vmem:[#allocation3 + $0x68] sm:$0xff] %vm79, %v94
      %111 = vst.msk [vmem:[#allocation3 + $0x70] sm:$0xff] %vm79, %v95
      %112 = vst.msk [vmem:[#allocation3 + $0x78] sm:$0xff] %vm79, %v96
    $region37: #{tpu_custom_call.1} parent=1 // pred_fallthru
      _
    %v113 = vld [vmem:[#allocation2] sm:$0xff]
    %v114 = vld [vmem:[#allocation3] sm:$0xff]
    %v115 = vld [vmem:[#allocation3 + $0x8] sm:$0xff]
    %v116 = vld [vmem:[#allocation3 + $0x10] sm:$0xff]
    %v117 = vld [vmem:[#allocation3 + $0x18] sm:$0xff]
    %v118 = vld [vmem:[#allocation3 + $0x20] sm:$0xff]
    %v119 = vld [vmem:[#allocation3 + $0x28] sm:$0xff]
    %v120 = vld [vmem:[#allocation3 + $0x30] sm:$0xff]
    %v121 = vld [vmem:[#allocation3 + $0x38] sm:$0xff]
    %v122 = vld [vmem:[#allocation3 + $0x40] sm:$0xff]
    %v123 = vld [vmem:[#allocation3 + $0x48] sm:$0xff]
    %v124 = vld [vmem:[#allocation3 + $0x50] sm:$0xff]
    %v125 = vld [vmem:[#allocation3 + $0x58] sm:$0xff]
    %v126 = vld [vmem:[#allocation3 + $0x60] sm:$0xff]
    %v127 = vld [vmem:[#allocation3 + $0x68] sm:$0xff]
    %v128 = vld [vmem:[#allocation3 + $0x70] sm:$0xff]
    %v129 = vld [vmem:[#allocation3 + $0x78] sm:$0xff]
    %v130 = vld [vmem:[#allocation9] sm:$0xff]
    %v131 = vld [vmem:[#allocation9 + $0x8] sm:$0xff]
    %v132 = vld [vmem:[#allocation9 + $0x10] sm:$0xff]
    %v133 = vld [vmem:[#allocation9 + $0x18] sm:$0xff]
    %v134 = vld [vmem:[#allocation9 + $0x20] sm:$0xff]
    %v135 = vld [vmem:[#allocation9 + $0x28] sm:$0xff]
    %v136 = vld [vmem:[#allocation9 + $0x30] sm:$0xff]
    %v137 = vld [vmem:[#allocation9 + $0x38] sm:$0xff]
    %v138 = vld [vmem:[#allocation9 + $0x40] sm:$0xff]
    %v139 = vld [vmem:[#allocation9 + $0x48] sm:$0xff]
    %v140 = vld [vmem:[#allocation9 + $0x50] sm:$0xff]
    %v141 = vld [vmem:[#allocation9 + $0x58] sm:$0xff]
    %v142 = vld [vmem:[#allocation9 + $0x60] sm:$0xff]
    %v143 = vld [vmem:[#allocation9 + $0x68] sm:$0xff]
    %v144 = vld [vmem:[#allocation9 + $0x70] sm:$0xff]
    %v145 = vld [vmem:[#allocation9 + $0x78] sm:$0xff]
    %v146 = vld [vmem:[#allocation10] sm:$0xff]
    %v147 = vld [vmem:[#allocation10 + $0x8] sm:$0xff]
    %v148 = vld [vmem:[#allocation10 + $0x20] sm:$0xff]
    %v149 = vld [vmem:[#allocation10 + $0x28] sm:$0xff]
    %v150 = vld [vmem:[#allocation10 + $0x40] sm:$0xff]
    %v151 = vld [vmem:[#allocation10 + $0x48] sm:$0xff]
    %v152 = vld [vmem:[#allocation10 + $0x60] sm:$0xff]
    %v153 = vld [vmem:[#allocation10 + $0x68] sm:$0xff]
    %s154 = scalar_lea.vmem [#allocation10], 128
    %v155 = vld [vmem:[%s154] ss:$8 sm:$0x3]
    %v157 = vlaneseq
    %v158 = vshrl.u32 %v157, 7
    %v159 = vsub.s32 0, %v158
    %v160 = vrot.slane %v155, %v159
    %v161 = vlaneseq
    %v162 = vshrl.u32 %v161, 7
    %v163 = vsub.s32 1, %v162
    %v164 = vrot.slane %v155, %v163
    %vm167 = vcmask 261120
    %v169 = vsel %vm167, %v113, 0
    %171 = vmatprep.subr.mxu0 0.0
    %172 = vmatpush1.msra.mxu0 0.0
    %173 = vmatprep.subr.mxu0 0.0
    %174 = vmatpush1.msra.mxu0 0.0
    %175 = vmatprep.subr.mxu0 0.0
    %176 = vmatpush1.msra.mxu0 0.0
    %177 = vmatprep.subr.mxu0 0.0
    %178 = vmatpush1.msra.mxu0 0.0
    %179 = vmatprep.subr.mxu0 0.0
    %180 = vmatpush1.msra.mxu0 0.0
    %181 = vmatprep.subr.mxu0 0.0
    %182 = vmatpush1.msra.mxu0 0.0
    %183 = vmatprep.subr.mxu0 0.0
    %184 = vmatpush1.msra.mxu0 0.0
    %185 = vmatprep.subr.mxu0 0.0
    %186 = vmatpush1.msra.mxu0 0.0
    %187 = vmatprep.subr.mxu0 0.0
    %188 = vmatpush1.msra.mxu0 0.0
    %189 = vmatprep.subr.mxu0 0.0
    %190 = vmatpush1.msra.mxu0 0.0
    %191 = vmatprep.subr.mxu0 0.0
    %192 = vmatpush1.msra.mxu0 0.0
    %193 = vmatprep.subr.mxu0 0.0
    %194 = vmatpush1.msra.mxu0 0.0
    %v195 = vand.u32 %v153, 4294901760
    %196 = vmatprep.subr.mxu0 %v195
    %v197 = vand.u32 %v152, 4294901760
    %198 = vmatpush1.msra.mxu0 %v197
    %v199 = vand.u32 %v151, 4294901760
    %200 = vmatprep.subr.mxu0 %v199
    %v201 = vand.u32 %v150, 4294901760
    %202 = vmatpush1.msra.mxu0 %v201
    %v203 = vand.u32 %v149, 4294901760
    %204 = vmatprep.subr.mxu0 %v203
    %v205 = vand.u32 %v148, 4294901760
    %206 = vmatpush1.msra.mxu0 %v205
    %v207 = vand.u32 %v147, 4294901760
    %208 = vmatprep.subr.mxu0 %v207
    %v209 = vand.u32 %v146, 4294901760
    %210 = vmatpush1.msra.mxu0 %v209
    %211 = vmatprep.subr.mxu0 0.0
    %212 = vmatpush2.msra.mxu0 0.0
    %213 = vmatprep.subr.mxu0 0.0
    %214 = vmatpush2.msra.mxu0 0.0
    %215 = vmatprep.subr.mxu0 0.0
    %216 = vmatpush2.msra.mxu0 0.0
    %217 = vmatprep.subr.mxu0 0.0
    %218 = vmatpush2.msra.mxu0 0.0
    %219 = vmatprep.subr.mxu0 0.0
    %220 = vmatpush2.msra.mxu0 0.0
    %221 = vmatprep.subr.mxu0 0.0
    %222 = vmatpush2.msra.mxu0 0.0
    %223 = vmatprep.subr.mxu0 0.0
    %224 = vmatpush2.msra.mxu0 0.0
    %225 = vmatprep.subr.mxu0 0.0
    %226 = vmatpush2.msra.mxu0 0.0
    %227 = vmatprep.subr.mxu0 0.0
    %228 = vmatpush2.msra.mxu0 0.0
    %229 = vmatprep.subr.mxu0 0.0
    %230 = vmatpush2.msra.mxu0 0.0
    %231 = vmatprep.subr.mxu0 0.0
    %232 = vmatpush2.msra.mxu0 0.0
    %233 = vmatprep.subr.mxu0 0.0
    %234 = vmatpush2.msra.mxu0 0.0
    %235 = vmatprep.subr.mxu0 0.0
    %236 = vmatpush2.msra.mxu0 0.0
    %237 = vmatprep.subr.mxu0 0.0
    %238 = vmatpush2.msra.mxu0 0.0
    %239 = vmatprep.subr.mxu0 0.0
    %240 = vmatpush2.msra.mxu0 0.0
    %241 = vmatprep.subr.mxu0 0.0
    %242 = vmatpush2.msra.mxu0 0.0
    %243 = vmatprep.mubr.f32.mxu0 0.0
    %v244 = vand.u32 %v169, 4294901760
    %v245 = vsub.f32 %v169, %v244
    %v246 = vand.u32 %v245, 4294901760
    %v247 = vsub.f32 %v245, %v246
    %v248 = vand.u32 %v247, 4294901760
    %249 = vmatmul.mubr.f32.gmra.mxu0 %v248
    %v250 = vpop.f32.mrf.mxu0
    %v251 = vadd.f32 %v160, %v250
    %v252 = vpop.f32.mrf.mxu0
    %v253 = vadd.f32 %v164, %v252
    %254 = vdwg.mxu0
    %255 = vmatprep.subr.mxu0 0.0
    %256 = vmatpush1.msra.mxu0 0.0
    %257 = vmatprep.subr.mxu0 0.0
    %258 = vmatpush1.msra.mxu0 0.0
    %259 = vmatprep.subr.mxu0 0.0
    %260 = vmatpush1.msra.mxu0 0.0
    %261 = vmatprep.subr.mxu0 0.0
    %262 = vmatpush1.msra.mxu0 0.0
    %263 = vmatprep.subr.mxu0 0.0
    %264 = vmatpush1.msra.mxu0 0.0
    %265 = vmatprep.subr.mxu0 0.0
    %266 = vmatpush1.msra.mxu0 0.0
    %267 = vmatprep.subr.mxu0 0.0
    %268 = vmatpush1.msra.mxu0 0.0
    %269 = vmatprep.subr.mxu0 0.0
    %270 = vmatpush1.msra.mxu0 0.0
    %271 = vmatprep.subr.mxu0 0.0
    %272 = vmatpush1.msra.mxu0 0.0
    %273 = vmatprep.subr.mxu0 0.0
    %274 = vmatpush1.msra.mxu0 0.0
    %275 = vmatprep.subr.mxu0 0.0
    %276 = vmatpush1.msra.mxu0 0.0
    %277 = vmatprep.subr.mxu0 0.0
    %278 = vmatpush1.msra.mxu0 0.0
    %v279 = vand.u32 %v153, 4294901760
    %v280 = vsub.f32 %v153, %v279
    %v281 = vand.u32 %v280, 4294901760
    %v282 = vsub.f32 %v280, %v281
    %v283 = vand.u32 %v282, 4294901760
    %284 = vmatprep.subr.mxu0 %v283
    %v285 = vand.u32 %v152, 4294901760
    %v286 = vsub.f32 %v152, %v285
    %v287 = vand.u32 %v286, 4294901760
    %v288 = vsub.f32 %v286, %v287
    %v289 = vand.u32 %v288, 4294901760
    %290 = vmatpush1.msra.mxu0 %v289
    %v291 = vand.u32 %v151, 4294901760
    %v292 = vsub.f32 %v151, %v291
    %v293 = vand.u32 %v292, 4294901760
    %v294 = vsub.f32 %v292, %v293
    %v295 = vand.u32 %v294, 4294901760
    %296 = vmatprep.subr.mxu0 %v295
    %v297 = vand.u32 %v150, 4294901760
    %v298 = vsub.f32 %v150, %v297
    %v299 = vand.u32 %v298, 4294901760
    %v300 = vsub.f32 %v298, %v299
    %v301 = vand.u32 %v300, 4294901760
    %302 = vmatpush1.msra.mxu0 %v301
    %v303 = vand.u32 %v149, 4294901760
    %v304 = vsub.f32 %v149, %v303
    %v305 = vand.u32 %v304, 4294901760
    %v306 = vsub.f32 %v304, %v305
    %v307 = vand.u32 %v306, 4294901760
    %308 = vmatprep.subr.mxu0 %v307
    %v309 = vand.u32 %v148, 4294901760
    %v310 = vsub.f32 %v148, %v309
    %v311 = vand.u32 %v310, 4294901760
    %v312 = vsub.f32 %v310, %v311
    %v313 = vand.u32 %v312, 4294901760
    %314 = vmatpush1.msra.mxu0 %v313
    %v315 = vand.u32 %v147, 4294901760
    %v316 = vsub.f32 %v147, %v315
    %v317 = vand.u32 %v316, 4294901760
    %v318 = vsub.f32 %v316, %v317
    %v319 = vand.u32 %v318, 4294901760
    %320 = vmatprep.subr.mxu0 %v319
    %v321 = vand.u32 %v146, 4294901760
    %v322 = vsub.f32 %v146, %v321
    %v323 = vand.u32 %v322, 4294901760
    %v324 = vsub.f32 %v322, %v323
    %v325 = vand.u32 %v324, 4294901760
    %326 = vmatpush1.msra.mxu0 %v325
    %327 = vmatprep.subr.mxu0 0.0
    %328 = vmatpush2.msra.mxu0 0.0
    %329 = vmatprep.subr.mxu0 0.0
    %330 = vmatpush2.msra.mxu0 0.0
    %331 = vmatprep.subr.mxu0 0.0
    %332 = vmatpush2.msra.mxu0 0.0
    %333 = vmatprep.subr.mxu0 0.0
    %334 = vmatpush2.msra.mxu0 0.0
    %335 = vmatprep.subr.mxu0 0.0
    %336 = vmatpush2.msra.mxu0 0.0
    %337 = vmatprep.subr.mxu0 0.0
    %338 = vmatpush2.msra.mxu0 0.0
    %339 = vmatprep.subr.mxu0 0.0
    %340 = vmatpush2.msra.mxu0 0.0
    %341 = vmatprep.subr.mxu0 0.0
    %342 = vmatpush2.msra.mxu0 0.0
    %343 = vmatprep.subr.mxu0 0.0
    %344 = vmatpush2.msra.mxu0 0.0
    %345 = vmatprep.subr.mxu0 0.0
    %346 = vmatpush2.msra.mxu0 0.0
    %347 = vmatprep.subr.mxu0 0.0
    %348 = vmatpush2.msra.mxu0 0.0
    %349 = vmatprep.subr.mxu0 0.0
    %350 = vmatpush2.msra.mxu0 0.0
    %351 = vmatprep.subr.mxu0 0.0
    %352 = vmatpush2.msra.mxu0 0.0
    %353 = vmatprep.subr.mxu0 0.0
    %354 = vmatpush2.msra.mxu0 0.0
    %355 = vmatprep.subr.mxu0 0.0
    %356 = vmatpush2.msra.mxu0 0.0
    %357 = vmatprep.subr.mxu0 0.0
    %358 = vmatpush2.msra.mxu0 0.0
    %359 = vmatprep.mubr.f32.mxu0 0.0
    %v360 = vand.u32 %v169, 4294901760
    %361 = vmatmul.mubr.f32.gmra.mxu0 %v360
    %v362 = vpop.f32.mrf.mxu0
    %v363 = vadd.f32 %v251, %v362
    %v364 = vpop.f32.mrf.mxu0
    %v365 = vadd.f32 %v253, %v364
    %366 = vdwg.mxu0
    %367 = vmatprep.subr.mxu0 0.0
    %368 = vmatpush1.msra.mxu0 0.0
    %369 = vmatprep.subr.mxu0 0.0
    %370 = vmatpush1.msra.mxu0 0.0
    %371 = vmatprep.subr.mxu0 0.0
    %372 = vmatpush1.msra.mxu0 0.0
    %373 = vmatprep.subr.mxu0 0.0
    %374 = vmatpush1.msra.mxu0 0.0
    %375 = vmatprep.subr.mxu0 0.0
    %376 = vmatpush1.msra.mxu0 0.0
    %377 = vmatprep.subr.mxu0 0.0
    %378 = vmatpush1.msra.mxu0 0.0
    %379 = vmatprep.subr.mxu0 0.0
    %380 = vmatpush1.msra.mxu0 0.0
    %381 = vmatprep.subr.mxu0 0.0
    %382 = vmatpush1.msra.mxu0 0.0
    %383 = vmatprep.subr.mxu0 0.0
    %384 = vmatpush1.msra.mxu0 0.0
    %385 = vmatprep.subr.mxu0 0.0
    %386 = vmatpush1.msra.mxu0 0.0
    %387 = vmatprep.subr.mxu0 0.0
    %388 = vmatpush1.msra.mxu0 0.0
    %389 = vmatprep.subr.mxu0 0.0
    %390 = vmatpush1.msra.mxu0 0.0
    %v391 = vand.u32 %v153, 4294901760
    %v392 = vsub.f32 %v153, %v391
    %393 = vmatprep.subr.mxu0 %v392
    %v394 = vand.u32 %v152, 4294901760
    %v395 = vsub.f32 %v152, %v394
    %396 = vmatpush1.msra.mxu0 %v395
    %v397 = vand.u32 %v151, 4294901760
    %v398 = vsub.f32 %v151, %v397
    %399 = vmatprep.subr.mxu0 %v398
    %v400 = vand.u32 %v150, 4294901760
    %v401 = vsub.f32 %v150, %v400
    %402 = vmatpush1.msra.mxu0 %v401
    %v403 = vand.u32 %v149, 4294901760
    %v404 = vsub.f32 %v149, %v403
    %405 = vmatprep.subr.mxu0 %v404
    %v406 = vand.u32 %v148, 4294901760
    %v407 = vsub.f32 %v148, %v406
    %408 = vmatpush1.msra.mxu0 %v407
    %v409 = vand.u32 %v147, 4294901760
    %v410 = vsub.f32 %v147, %v409
    %411 = vmatprep.subr.mxu0 %v410
    %v412 = vand.u32 %v146, 4294901760
    %v413 = vsub.f32 %v146, %v412
    %414 = vmatpush1.msra.mxu0 %v413
    %415 = vmatprep.subr.mxu0 0.0
    %416 = vmatpush2.msra.mxu0 0.0
    %417 = vmatprep.subr.mxu0 0.0
    %418 = vmatpush2.msra.mxu0 0.0
    %419 = vmatprep.subr.mxu0 0.0
    %420 = vmatpush2.msra.mxu0 0.0
    %421 = vmatprep.subr.mxu0 0.0
    %422 = vmatpush2.msra.mxu0 0.0
    %423 = vmatprep.subr.mxu0 0.0
    %424 = vmatpush2.msra.mxu0 0.0
    %425 = vmatprep.subr.mxu0 0.0
    %426 = vmatpush2.msra.mxu0 0.0
    %427 = vmatprep.subr.mxu0 0.0
    %428 = vmatpush2.msra.mxu0 0.0
    %429 = vmatprep.subr.mxu0 0.0
    %430 = vmatpush2.msra.mxu0 0.0
    %431 = vmatprep.subr.mxu0 0.0
    %432 = vmatpush2.msra.mxu0 0.0
    %433 = vmatprep.subr.mxu0 0.0
    %434 = vmatpush2.msra.mxu0 0.0
    %435 = vmatprep.subr.mxu0 0.0
    %436 = vmatpush2.msra.mxu0 0.0
    %437 = vmatprep.subr.mxu0 0.0
    %438 = vmatpush2.msra.mxu0 0.0
    %439 = vmatprep.subr.mxu0 0.0
    %440 = vmatpush2.msra.mxu0 0.0
    %441 = vmatprep.subr.mxu0 0.0
    %442 = vmatpush2.msra.mxu0 0.0
    %443 = vmatprep.subr.mxu0 0.0
    %444 = vmatpush2.msra.mxu0 0.0
    %445 = vmatprep.subr.mxu0 0.0
    %446 = vmatpush2.msra.mxu0 0.0
    %447 = vmatprep.mubr.f32.mxu0 0.0
    %v448 = vand.u32 %v169, 4294901760
    %v449 = vsub.f32 %v169, %v448
    %450 = vmatmul.mubr.f32.gmra.mxu0 %v449
    %v451 = vpop.f32.mrf.mxu0
    %v452 = vadd.f32 %v363, %v451
    %v453 = vpop.f32.mrf.mxu0
    %v454 = vadd.f32 %v365, %v453
    %455 = vdwg.mxu0
    %456 = vmatprep.subr.mxu0 0.0
    %457 = vmatpush1.msra.mxu0 0.0
    %458 = vmatprep.subr.mxu0 0.0
    %459 = vmatpush1.msra.mxu0 0.0
    %460 = vmatprep.subr.mxu0 0.0
    %461 = vmatpush1.msra.mxu0 0.0
    %462 = vmatprep.subr.mxu0 0.0
    %463 = vmatpush1.msra.mxu0 0.0
    %464 = vmatprep.subr.mxu0 0.0
    %465 = vmatpush1.msra.mxu0 0.0
    %466 = vmatprep.subr.mxu0 0.0
    %467 = vmatpush1.msra.mxu0 0.0
    %468 = vmatprep.subr.mxu0 0.0
    %469 = vmatpush1.msra.mxu0 0.0
    %470 = vmatprep.subr.mxu0 0.0
    %471 = vmatpush1.msra.mxu0 0.0
    %472 = vmatprep.subr.mxu0 0.0
    %473 = vmatpush1.msra.mxu0 0.0
    %474 = vmatprep.subr.mxu0 0.0
    %475 = vmatpush1.msra.mxu0 0.0
    %476 = vmatprep.subr.mxu0 0.0
    %477 = vmatpush1.msra.mxu0 0.0
    %478 = vmatprep.subr.mxu0 0.0
    %479 = vmatpush1.msra.mxu0 0.0
    %v480 = vand.u32 %v153, 4294901760
    %481 = vmatprep.subr.mxu0 %v480
    %v482 = vand.u32 %v152, 4294901760
    %483 = vmatpush1.msra.mxu0 %v482
    %v484 = vand.u32 %v151, 4294901760
    %485 = vmatprep.subr.mxu0 %v484
    %v486 = vand.u32 %v150, 4294901760
    %487 = vmatpush1.msra.mxu0 %v486
    %v488 = vand.u32 %v149, 4294901760
    %489 = vmatprep.subr.mxu0 %v488
    %v490 = vand.u32 %v148, 4294901760
    %491 = vmatpush1.msra.mxu0 %v490
    %v492 = vand.u32 %v147, 4294901760
    %493 = vmatprep.subr.mxu0 %v492
    %v494 = vand.u32 %v146, 4294901760
    %495 = vmatpush1.msra.mxu0 %v494
    %496 = vmatprep.subr.mxu0 0.0
    %497 = vmatpush2.msra.mxu0 0.0
    %498 = vmatprep.subr.mxu0 0.0
    %499 = vmatpush2.msra.mxu0 0.0
    %500 = vmatprep.subr.mxu0 0.0
    %501 = vmatpush2.msra.mxu0 0.0
    %502 = vmatprep.subr.mxu0 0.0
    %503 = vmatpush2.msra.mxu0 0.0
    %504 = vmatprep.subr.mxu0 0.0
    %505 = vmatpush2.msra.mxu0 0.0
    %506 = vmatprep.subr.mxu0 0.0
    %507 = vmatpush2.msra.mxu0 0.0
    %508 = vmatprep.subr.mxu0 0.0
    %509 = vmatpush2.msra.mxu0 0.0
    %510 = vmatprep.subr.mxu0 0.0
    %511 = vmatpush2.msra.mxu0 0.0
    %512 = vmatprep.subr.mxu0 0.0
    %513 = vmatpush2.msra.mxu0 0.0
    %514 = vmatprep.subr.mxu0 0.0
    %515 = vmatpush2.msra.mxu0 0.0
    %516 = vmatprep.subr.mxu0 0.0
    %517 = vmatpush2.msra.mxu0 0.0
    %518 = vmatprep.subr.mxu0 0.0
    %519 = vmatpush2.msra.mxu0 0.0
    %520 = vmatprep.subr.mxu0 0.0
    %521 = vmatpush2.msra.mxu0 0.0
    %522 = vmatprep.subr.mxu0 0.0
    %523 = vmatpush2.msra.mxu0 0.0
    %524 = vmatprep.subr.mxu0 0.0
    %525 = vmatpush2.msra.mxu0 0.0
    %526 = vmatprep.subr.mxu0 0.0
    %527 = vmatpush2.msra.mxu0 0.0
    %528 = vmatprep.mubr.f32.mxu0 0.0
    %v529 = vand.u32 %v169, 4294901760
    %v530 = vsub.f32 %v169, %v529
    %v531 = vand.u32 %v530, 4294901760
    %532 = vmatmul.mubr.f32.gmra.mxu0 %v531
    %v533 = vpop.f32.mrf.mxu0
    %v534 = vadd.f32 %v452, %v533
    %v535 = vpop.f32.mrf.mxu0
    %v536 = vadd.f32 %v454, %v535
    %537 = vdwg.mxu0
    %538 = vmatprep.subr.mxu0 0.0
    %539 = vmatpush1.msra.mxu0 0.0
    %540 = vmatprep.subr.mxu0 0.0
    %541 = vmatpush1.msra.mxu0 0.0
    %542 = vmatprep.subr.mxu0 0.0
    %543 = vmatpush1.msra.mxu0 0.0
    %544 = vmatprep.subr.mxu0 0.0
    %545 = vmatpush1.msra.mxu0 0.0
    %546 = vmatprep.subr.mxu0 0.0
    %547 = vmatpush1.msra.mxu0 0.0
    %548 = vmatprep.subr.mxu0 0.0
    %549 = vmatpush1.msra.mxu0 0.0
    %550 = vmatprep.subr.mxu0 0.0
    %551 = vmatpush1.msra.mxu0 0.0
    %552 = vmatprep.subr.mxu0 0.0
    %553 = vmatpush1.msra.mxu0 0.0
    %554 = vmatprep.subr.mxu0 0.0
    %555 = vmatpush1.msra.mxu0 0.0
    %556 = vmatprep.subr.mxu0 0.0
    %557 = vmatpush1.msra.mxu0 0.0
    %558 = vmatprep.subr.mxu0 0.0
    %559 = vmatpush1.msra.mxu0 0.0
    %560 = vmatprep.subr.mxu0 0.0
    %561 = vmatpush1.msra.mxu0 0.0
    %v562 = vand.u32 %v153, 4294901760
    %v563 = vsub.f32 %v153, %v562
    %v564 = vand.u32 %v563, 4294901760
    %565 = vmatprep.subr.mxu0 %v564
    %v566 = vand.u32 %v152, 4294901760
    %v567 = vsub.f32 %v152, %v566
    %v568 = vand.u32 %v567, 4294901760
    %569 = vmatpush1.msra.mxu0 %v568
    %v570 = vand.u32 %v151, 4294901760
    %v571 = vsub.f32 %v151, %v570
    %v572 = vand.u32 %v571, 4294901760
    %573 = vmatprep.subr.mxu0 %v572
    %v574 = vand.u32 %v150, 4294901760
    %v575 = vsub.f32 %v150, %v574
    %v576 = vand.u32 %v575, 4294901760
    %577 = vmatpush1.msra.mxu0 %v576
    %v578 = vand.u32 %v149, 4294901760
    %v579 = vsub.f32 %v149, %v578
    %v580 = vand.u32 %v579, 4294901760
    %581 = vmatprep.subr.mxu0 %v580
    %v582 = vand.u32 %v148, 4294901760
    %v583 = vsub.f32 %v148, %v582
    %v584 = vand.u32 %v583, 4294901760
    %585 = vmatpush1.msra.mxu0 %v584
    %v586 = vand.u32 %v147, 4294901760
    %v587 = vsub.f32 %v147, %v586
    %v588 = vand.u32 %v587, 4294901760
    %589 = vmatprep.subr.mxu0 %v588
    %v590 = vand.u32 %v146, 4294901760
    %v591 = vsub.f32 %v146, %v590
    %v592 = vand.u32 %v591, 4294901760
    %593 = vmatpush1.msra.mxu0 %v592
    %594 = vmatprep.subr.mxu0 0.0
    %595 = vmatpush2.msra.mxu0 0.0
    %596 = vmatprep.subr.mxu0 0.0
    %597 = vmatpush2.msra.mxu0 0.0
    %598 = vmatprep.subr.mxu0 0.0
    %599 = vmatpush2.msra.mxu0 0.0
    %600 = vmatprep.subr.mxu0 0.0
    %601 = vmatpush2.msra.mxu0 0.0
    %602 = vmatprep.subr.mxu0 0.0
    %603 = vmatpush2.msra.mxu0 0.0
    %604 = vmatprep.subr.mxu0 0.0
    %605 = vmatpush2.msra.mxu0 0.0
    %606 = vmatprep.subr.mxu0 0.0
    %607 = vmatpush2.msra.mxu0 0.0
    %608 = vmatprep.subr.mxu0 0.0
    %609 = vmatpush2.msra.mxu0 0.0
    %610 = vmatprep.subr.mxu0 0.0
    %611 = vmatpush2.msra.mxu0 0.0
    %612 = vmatprep.subr.mxu0 0.0
    %613 = vmatpush2.msra.mxu0 0.0
    %614 = vmatprep.subr.mxu0 0.0
    %615 = vmatpush2.msra.mxu0 0.0
    %616 = vmatprep.subr.mxu0 0.0
    %617 = vmatpush2.msra.mxu0 0.0
    %618 = vmatprep.subr.mxu0 0.0
    %619 = vmatpush2.msra.mxu0 0.0
    %620 = vmatprep.subr.mxu0 0.0
    %621 = vmatpush2.msra.mxu0 0.0
    %622 = vmatprep.subr.mxu0 0.0
    %623 = vmatpush2.msra.mxu0 0.0
    %624 = vmatprep.subr.mxu0 0.0
    %625 = vmatpush2.msra.mxu0 0.0
    %626 = vmatprep.mubr.f32.mxu0 0.0
    %v627 = vand.u32 %v169, 4294901760
    %628 = vmatmul.mubr.f32.gmra.mxu0 %v627
    %v629 = vpop.f32.mrf.mxu0
    %v630 = vadd.f32 %v534, %v629
    %v631 = vpop.f32.mrf.mxu0
    %v632 = vadd.f32 %v536, %v631
    %633 = vdwg.mxu0
    %634 = vmatprep.subr.mxu0 0.0
    %635 = vmatpush1.msra.mxu0 0.0
    %636 = vmatprep.subr.mxu0 0.0
    %637 = vmatpush1.msra.mxu0 0.0
    %638 = vmatprep.subr.mxu0 0.0
    %639 = vmatpush1.msra.mxu0 0.0
    %640 = vmatprep.subr.mxu0 0.0
    %641 = vmatpush1.msra.mxu0 0.0
    %642 = vmatprep.subr.mxu0 0.0
    %643 = vmatpush1.msra.mxu0 0.0
    %644 = vmatprep.subr.mxu0 0.0
    %645 = vmatpush1.msra.mxu0 0.0
    %646 = vmatprep.subr.mxu0 0.0
    %647 = vmatpush1.msra.mxu0 0.0
    %648 = vmatprep.subr.mxu0 0.0
    %649 = vmatpush1.msra.mxu0 0.0
    %650 = vmatprep.subr.mxu0 0.0
    %651 = vmatpush1.msra.mxu0 0.0
    %652 = vmatprep.subr.mxu0 0.0
    %653 = vmatpush1.msra.mxu0 0.0
    %654 = vmatprep.subr.mxu0 0.0
    %655 = vmatpush1.msra.mxu0 0.0
    %656 = vmatprep.subr.mxu0 0.0
    %657 = vmatpush1.msra.mxu0 0.0
    %v658 = vand.u32 %v153, 4294901760
    %659 = vmatprep.subr.mxu0 %v658
    %v660 = vand.u32 %v152, 4294901760
    %661 = vmatpush1.msra.mxu0 %v660
    %v662 = vand.u32 %v151, 4294901760
    %663 = vmatprep.subr.mxu0 %v662
    %v664 = vand.u32 %v150, 4294901760
    %665 = vmatpush1.msra.mxu0 %v664
    %v666 = vand.u32 %v149, 4294901760
    %667 = vmatprep.subr.mxu0 %v666
    %v668 = vand.u32 %v148, 4294901760
    %669 = vmatpush1.msra.mxu0 %v668
    %v670 = vand.u32 %v147, 4294901760
    %671 = vmatprep.subr.mxu0 %v670
    %v672 = vand.u32 %v146, 4294901760
    %673 = vmatpush1.msra.mxu0 %v672
    %674 = vmatprep.subr.mxu0 0.0
    %675 = vmatpush2.msra.mxu0 0.0
    %676 = vmatprep.subr.mxu0 0.0
    %677 = vmatpush2.msra.mxu0 0.0
    %678 = vmatprep.subr.mxu0 0.0
    %679 = vmatpush2.msra.mxu0 0.0
    %680 = vmatprep.subr.mxu0 0.0
    %681 = vmatpush2.msra.mxu0 0.0
    %682 = vmatprep.subr.mxu0 0.0
    %683 = vmatpush2.msra.mxu0 0.0
    %684 = vmatprep.subr.mxu0 0.0
    %685 = vmatpush2.msra.mxu0 0.0
    %686 = vmatprep.subr.mxu0 0.0
    %687 = vmatpush2.msra.mxu0 0.0
    %688 = vmatprep.subr.mxu0 0.0
    %689 = vmatpush2.msra.mxu0 0.0
    %690 = vmatprep.subr.mxu0 0.0
    %691 = vmatpush2.msra.mxu0 0.0
    %692 = vmatprep.subr.mxu0 0.0
    %693 = vmatpush2.msra.mxu0 0.0
    %694 = vmatprep.subr.mxu0 0.0
    %695 = vmatpush2.msra.mxu0 0.0
    %696 = vmatprep.subr.mxu0 0.0
    %697 = vmatpush2.msra.mxu0 0.0
    %698 = vmatprep.subr.mxu0 0.0
    %699 = vmatpush2.msra.mxu0 0.0
    %700 = vmatprep.subr.mxu0 0.0
    %701 = vmatpush2.msra.mxu0 0.0
    %702 = vmatprep.subr.mxu0 0.0
    %703 = vmatpush2.msra.mxu0 0.0
    %704 = vmatprep.subr.mxu0 0.0
    %705 = vmatpush2.msra.mxu0 0.0
    %706 = vmatprep.mubr.f32.mxu0 0.0
    %v707 = vand.u32 %v169, 4294901760
    %708 = vmatmul.mubr.f32.gmra.mxu0 %v707
    %v709 = vpop.f32.mrf.mxu0
    %v710 = vadd.f32 %v630, %v709
    %v711 = vpop.f32.mrf.mxu0
    %v712 = vadd.f32 %v632, %v711
    %713 = vdwg.mxu0
    %v714 = vmax.f32 %v712, 0.0
    %v715 = vand.u32 2147483647, %v712
    %v716 = vsub.f32 0.0, %v715
    %v717 = vmul.f32 %v716, 1.442695
    %v718 = vpow.pop %v717
    %v719 = vadd.f32 %v718, 1.0
    %v720 = vlog2.pop %v719
    %v721 = vmul.f32 %v720, 0.6931472
    %v722 = vmul.f32 -0.5, %v718
    %v723 = vadd.f32 %v722, 1.0
    %v724 = vmul.f32 %v723, %v718
    %v725 = vand.u32 2147483647, %v718
    %vm726 = vcmp.lt.f32.partialorder %v725, 0.0004427343
    %v727 = vsel %vm726, %v724, %v721
    %v728 = vadd.f32 %v714, %v727
    %v729 = vadd.f32 %v728, 1.0
    %v730 = vmul.f32 %v710, %v710
    %v731 = vsel %vm167, %v730, 0.0
    %732 = vadd.xlane.f32.xlu0 %v731
    %v733 = vpop.xlane.xlu0 %732
    %v734 = vmax.f32 %v733, 1e-16
    %v735 = vrsqrt.pop %v734
    %v737 = vcombine.high %v710, %v710
    %v739 = vunpack.c.l.s4 1966171168
    %v740 = vunpack.c.0.s8 %v739
    %v741 = vlaneseq
    %v742 = vshrl.u32 %v741, 7
    %v743 = vsub.s32 %v740, %v742
    %v744 = vrot.slane %v710, %v743
    %v746 = vunpack.c.l.s4 1966171168
    %v747 = vunpack.c.0.s8 %v746
    %v748 = vlaneseq
    %v749 = vshrl.u32 %v748, 7
    %v750 = vsub.s32 %v747, %v749
    %v751 = vrot.slane %v737, %v750
    %v752 = vcombine.high %v744, %v744
    %v753 = vcombine.high %v751, %v751
    %v755 = vunpack.c.l.s4 1966171168
    %v756 = vunpack.c.0.s8 %v755
    %v757 = vlaneseq
    %v758 = vshrl.u32 %v757, 7
    %v759 = vsub.s32 %v756, %v758
    %v760 = vrot.slane %v744, %v759
    %v762 = vunpack.c.l.s4 1966171168
    %v763 = vunpack.c.0.s8 %v762
    %v764 = vlaneseq
    %v765 = vshrl.u32 %v764, 7
    %v766 = vsub.s32 %v763, %v765
    %v767 = vrot.slane %v751, %v766
    %v769 = vunpack.c.l.s4 1966171168
    %v770 = vunpack.c.0.s8 %v769
    %v771 = vlaneseq
    %v772 = vshrl.u32 %v771, 7
    %v773 = vsub.s32 %v770, %v772
    %v774 = vrot.slane %v752, %v773
    %v776 = vunpack.c.l.s4 1966171168
    %v777 = vunpack.c.0.s8 %v776
    %v778 = vlaneseq
    %v779 = vshrl.u32 %v778, 7
    %v780 = vsub.s32 %v777, %v779
    %v781 = vrot.slane %v753, %v780
    %v782 = vcombine.high %v760, %v760
    %v783 = vcombine.high %v767, %v767
    %v784 = vcombine.high %v774, %v774
    %v785 = vcombine.high %v781, %v781
    %v786 = vlaneseq
    %v787 = vshrl.u32 %v786, 7
    %v788 = vsub.s32 0, %v787
    %v789 = vrot.slane %v760, %v788
    %v790 = vlaneseq
    %v791 = vshrl.u32 %v790, 7
    %v792 = vsub.s32 0, %v791
    %v793 = vrot.slane %v774, %v792
    %v794 = vlaneseq
    %v795 = vshrl.u32 %v794, 7
    %v796 = vsub.s32 0, %v795
    %v797 = vrot.slane %v782, %v796
    %v798 = vlaneseq
    %v799 = vshrl.u32 %v798, 7
    %v800 = vsub.s32 0, %v799
    %v801 = vrot.slane %v784, %v800
    %v802 = vlaneseq
    %v803 = vshrl.u32 %v802, 7
    %v804 = vsub.s32 0, %v803
    %v805 = vrot.slane %v767, %v804
    %v806 = vlaneseq
    %v807 = vshrl.u32 %v806, 7
    %v808 = vsub.s32 0, %v807
    %v809 = vrot.slane %v781, %v808
    %v810 = vlaneseq
    %v811 = vshrl.u32 %v810, 7
    %v812 = vsub.s32 0, %v811
    %v813 = vrot.slane %v783, %v812
    %v814 = vlaneseq
    %v815 = vshrl.u32 %v814, 7
    %v816 = vsub.s32 0, %v815
    %v817 = vrot.slane %v785, %v816
    %v826 = vmul.f32 %v130, %v789
    %v827 = vmul.f32 %v131, %v789
    %v828 = vmul.f32 %v132, %v793
    %v829 = vmul.f32 %v133, %v793
    %v830 = vmul.f32 %v134, %v797
    %v831 = vmul.f32 %v135, %v797
    %v832 = vmul.f32 %v136, %v801
    %v833 = vmul.f32 %v137, %v801
    %v834 = vmul.f32 %v138, %v805
    %v835 = vmul.f32 %v139, %v805
    %v836 = vmul.f32 %v140, %v809
    %v837 = vmul.f32 %v141, %v809
    %v838 = vmul.f32 %v142, %v813
    %v839 = vmul.f32 %v143, %v813
    %v840 = vmul.f32 %v144, %v817
    %v841 = vmul.f32 %v145, %v817
    %v842 = vsel %vm167, %v826, 0.0
    %843 = vadd.xlane.f32.xlu0 %v842
    %v844 = vpop.xlane.xlu0 %843
    %v845 = vsel %vm167, %v827, 0.0
    %846 = vadd.xlane.f32.xlu0 %v845
    %v847 = vpop.xlane.xlu0 %846
    %v848 = vsel %vm167, %v828, 0.0
    %849 = vadd.xlane.f32.xlu0 %v848
    %v850 = vpop.xlane.xlu0 %849
    %v851 = vsel %vm167, %v829, 0.0
    %852 = vadd.xlane.f32.xlu0 %v851
    %v853 = vpop.xlane.xlu0 %852
    %v854 = vsel %vm167, %v830, 0.0
    %855 = vadd.xlane.f32.xlu0 %v854
    %v856 = vpop.xlane.xlu0 %855
    %v857 = vsel %vm167, %v831, 0.0
    %858 = vadd.xlane.f32.xlu0 %v857
    %v859 = vpop.xlane.xlu0 %858
    %v860 = vsel %vm167, %v832, 0.0
    %861 = vadd.xlane.f32.xlu0 %v860
    %v862 = vpop.xlane.xlu0 %861
    %v863 = vsel %vm167, %v833, 0.0
    %864 = vadd.xlane.f32.xlu0 %v863
    %v865 = vpop.xlane.xlu0 %864
    %v866 = vsel %vm167, %v834, 0.0
    %867 = vadd.xlane.f32.xlu0 %v866
    %v868 = vpop.xlane.xlu0 %867
    %v869 = vsel %vm167, %v835, 0.0
    %870 = vadd.xlane.f32.xlu0 %v869
    %v871 = vpop.xlane.xlu0 %870
    %v872 = vsel %vm167, %v836, 0.0
    %873 = vadd.xlane.f32.xlu0 %v872
    %v874 = vpop.xlane.xlu0 %873
    %v875 = vsel %vm167, %v837, 0.0
    %876 = vadd.xlane.f32.xlu0 %v875
    %v877 = vpop.xlane.xlu0 %876
    %v878 = vsel %vm167, %v838, 0.0
    %879 = vadd.xlane.f32.xlu0 %v878
    %v880 = vpop.xlane.xlu0 %879
    %v881 = vsel %vm167, %v839, 0.0
    %882 = vadd.xlane.f32.xlu0 %v881
    %v883 = vpop.xlane.xlu0 %882
    %v884 = vsel %vm167, %v840, 0.0
    %885 = vadd.xlane.f32.xlu0 %v884
    %v886 = vpop.xlane.xlu0 %885
    %v887 = vsel %vm167, %v841, 0.0
    %888 = vadd.xlane.f32.xlu0 %v887
    %v889 = vpop.xlane.xlu0 %888
    %v890 = vmul.f32 %v130, %v130
    %v891 = vmul.f32 %v131, %v131
    %v892 = vmul.f32 %v132, %v132
    %v893 = vmul.f32 %v133, %v133
    %v894 = vmul.f32 %v134, %v134
    %v895 = vmul.f32 %v135, %v135
    %v896 = vmul.f32 %v136, %v136
    %v897 = vmul.f32 %v137, %v137
    %v898 = vmul.f32 %v138, %v138
    %v899 = vmul.f32 %v139, %v139
    %v900 = vmul.f32 %v140, %v140
    %v901 = vmul.f32 %v141, %v141
    %v902 = vmul.f32 %v142, %v142
    %v903 = vmul.f32 %v143, %v143
    %v904 = vmul.f32 %v144, %v144
    %v905 = vmul.f32 %v145, %v145
    %v906 = vsel %vm167, %v890, 0.0
    %907 = vadd.xlane.f32.xlu0 %v906
    %v908 = vpop.xlane.xlu0 %907
    %v909 = vsel %vm167, %v891, 0.0
    %910 = vadd.xlane.f32.xlu0 %v909
    %v911 = vpop.xlane.xlu0 %910
    %v912 = vsel %vm167, %v892, 0.0
    %913 = vadd.xlane.f32.xlu0 %v912
    %v914 = vpop.xlane.xlu0 %913
    %v915 = vsel %vm167, %v893, 0.0
    %916 = vadd.xlane.f32.xlu0 %v915
    %v917 = vpop.xlane.xlu0 %916
    %v918 = vsel %vm167, %v894, 0.0
    %919 = vadd.xlane.f32.xlu0 %v918
    %v920 = vpop.xlane.xlu0 %919
    %v921 = vsel %vm167, %v895, 0.0
    %922 = vadd.xlane.f32.xlu0 %v921
    %v923 = vpop.xlane.xlu0 %922
    %v924 = vsel %vm167, %v896, 0.0
    %925 = vadd.xlane.f32.xlu0 %v924
    %v926 = vpop.xlane.xlu0 %925
    %v927 = vsel %vm167, %v897, 0.0
    %928 = vadd.xlane.f32.xlu0 %v927
    %v929 = vpop.xlane.xlu0 %928
    %v930 = vsel %vm167, %v898, 0.0
    %931 = vadd.xlane.f32.xlu0 %v930
    %v932 = vpop.xlane.xlu0 %931
    %v933 = vsel %vm167, %v899, 0.0
    %934 = vadd.xlane.f32.xlu0 %v933
    %v935 = vpop.xlane.xlu0 %934
    %v936 = vsel %vm167, %v900, 0.0
    %937 = vadd.xlane.f32.xlu0 %v936
    %v938 = vpop.xlane.xlu0 %937
    %v939 = vsel %vm167, %v901, 0.0
    %940 = vadd.xlane.f32.xlu0 %v939
    %v941 = vpop.xlane.xlu0 %940
    %v942 = vsel %vm167, %v902, 0.0
    %943 = vadd.xlane.f32.xlu0 %v942
    %v944 = vpop.xlane.xlu0 %943
    %v945 = vsel %vm167, %v903, 0.0
    %946 = vadd.xlane.f32.xlu0 %v945
    %v947 = vpop.xlane.xlu0 %946
    %v948 = vsel %vm167, %v904, 0.0
    %949 = vadd.xlane.f32.xlu0 %v948
    %v950 = vpop.xlane.xlu0 %949
    %v951 = vsel %vm167, %v905, 0.0
    %952 = vadd.xlane.f32.xlu0 %v951
    %v953 = vpop.xlane.xlu0 %952
    %v954 = vmax.f32 %v908, 1e-16
    %v955 = vmax.f32 %v911, 1e-16
    %v956 = vmax.f32 %v914, 1e-16
    %v957 = vmax.f32 %v917, 1e-16
    %v958 = vmax.f32 %v920, 1e-16
    %v959 = vmax.f32 %v923, 1e-16
    %v960 = vmax.f32 %v926, 1e-16
    %v961 = vmax.f32 %v929, 1e-16
    %v962 = vmax.f32 %v932, 1e-16
    %v963 = vmax.f32 %v935, 1e-16
    %v964 = vmax.f32 %v938, 1e-16
    %v965 = vmax.f32 %v941, 1e-16
    %v966 = vmax.f32 %v944, 1e-16
    %v967 = vmax.f32 %v947, 1e-16
    %v968 = vmax.f32 %v950, 1e-16
    %v969 = vmax.f32 %v953, 1e-16
    %v970 = vrsqrt.pop %v954
    %v971 = vrsqrt.pop %v955
    %v972 = vrsqrt.pop %v956
    %v973 = vrsqrt.pop %v957
    %v974 = vrsqrt.pop %v958
    %v975 = vrsqrt.pop %v959
    %v976 = vrsqrt.pop %v960
    %v977 = vrsqrt.pop %v961
    %v978 = vrsqrt.pop %v962
    %v979 = vrsqrt.pop %v963
    %v980 = vrsqrt.pop %v964
    %v981 = vrsqrt.pop %v965
    %v982 = vrsqrt.pop %v966
    %v983 = vrsqrt.pop %v967
    %v984 = vrsqrt.pop %v968
    %v985 = vrsqrt.pop %v969
    %v986 = vmul.f32 %v844, %v970
    %v987 = vmul.f32 %v847, %v971
    %v988 = vmul.f32 %v850, %v972
    %v989 = vmul.f32 %v853, %v973
    %v990 = vmul.f32 %v856, %v974
    %v991 = vmul.f32 %v859, %v975
    %v992 = vmul.f32 %v862, %v976
    %v993 = vmul.f32 %v865, %v977
    %v994 = vmul.f32 %v868, %v978
    %v995 = vmul.f32 %v871, %v979
    %v996 = vmul.f32 %v874, %v980
    %v997 = vmul.f32 %v877, %v981
    %v998 = vmul.f32 %v880, %v982
    %v999 = vmul.f32 %v883, %v983
    %v1000 = vmul.f32 %v886, %v984
    %v1001 = vmul.f32 %v889, %v985
    %v1003 = vlaneseq
    %v1004 = vshrl.u32 %v1003, 7
    %v1005 = vsub.s32 0, %v1004
    %v1006 = vrot.slane %v735, %v1005
    %v1007 = vlaneseq
    %v1008 = vshrl.u32 %v1007, 7
    %v1009 = vsub.s32 1, %v1008
    %v1010 = vrot.slane %v735, %v1009
    %v1011 = vlaneseq
    %v1012 = vshrl.u32 %v1011, 7
    %v1013 = vsub.s32 2, %v1012
    %v1014 = vrot.slane %v735, %v1013
    %v1015 = vlaneseq
    %v1016 = vshrl.u32 %v1015, 7
    %v1017 = vsub.s32 3, %v1016
    %v1018 = vrot.slane %v735, %v1017
    %v1019 = vlaneseq
    %v1020 = vshrl.u32 %v1019, 7
    %v1021 = vsub.s32 4, %v1020
    %v1022 = vrot.slane %v735, %v1021
    %v1023 = vlaneseq
    %v1024 = vshrl.u32 %v1023, 7
    %v1025 = vsub.s32 5, %v1024
    %v1026 = vrot.slane %v735, %v1025
    %v1027 = vlaneseq
    %v1028 = vshrl.u32 %v1027, 7
    %v1029 = vsub.s32 6, %v1028
    %v1030 = vrot.slane %v735, %v1029
    %v1031 = vlaneseq
    %v1032 = vshrl.u32 %v1031, 7
    %v1033 = vsub.s32 7, %v1032
    %v1034 = vrot.slane %v735, %v1033
    %v1043 = vmul.f32 %v986, %v1006
    %v1044 = vmul.f32 %v987, %v1006
    %v1045 = vmul.f32 %v988, %v1010
    %v1046 = vmul.f32 %v989, %v1010
    %v1047 = vmul.f32 %v990, %v1014
    %v1048 = vmul.f32 %v991, %v1014
    %v1049 = vmul.f32 %v992, %v1018
    %v1050 = vmul.f32 %v993, %v1018
    %v1051 = vmul.f32 %v994, %v1022
    %v1052 = vmul.f32 %v995, %v1022
    %v1053 = vmul.f32 %v996, %v1026
    %v1054 = vmul.f32 %v997, %v1026
    %v1055 = vmul.f32 %v998, %v1030
    %v1056 = vmul.f32 %v999, %v1030
    %v1057 = vmul.f32 %v1000, %v1034
    %v1058 = vmul.f32 %v1001, %v1034
    %1060 = vset.pattern.permute.xlu0 0
    %1061 = vperm.xlu0 %1060, %v729
    %v1062 = vpop.permute.xlu0 %1061
    %v1063 = vlaneseq
    %v1064 = vshrl.u32 %v1063, 7
    %v1065 = vsub.s32 0, %v1064
    %v1066 = vrot.slane %v1062, %v1065
    %v1067 = vlaneseq
    %v1068 = vshrl.u32 %v1067, 7
    %v1069 = vsub.s32 1, %v1068
    %v1070 = vrot.slane %v1062, %v1069
    %v1071 = vlaneseq
    %v1072 = vshrl.u32 %v1071, 7
    %v1073 = vsub.s32 2, %v1072
    %v1074 = vrot.slane %v1062, %v1073
    %v1075 = vlaneseq
    %v1076 = vshrl.u32 %v1075, 7
    %v1077 = vsub.s32 3, %v1076
    %v1078 = vrot.slane %v1062, %v1077
    %v1079 = vlaneseq
    %v1080 = vshrl.u32 %v1079, 7
    %v1081 = vsub.s32 4, %v1080
    %v1082 = vrot.slane %v1062, %v1081
    %v1083 = vlaneseq
    %v1084 = vshrl.u32 %v1083, 7
    %v1085 = vsub.s32 5, %v1084
    %v1086 = vrot.slane %v1062, %v1085
    %v1087 = vlaneseq
    %v1088 = vshrl.u32 %v1087, 7
    %v1089 = vsub.s32 6, %v1088
    %v1090 = vrot.slane %v1062, %v1089
    %v1091 = vlaneseq
    %v1092 = vshrl.u32 %v1091, 7
    %v1093 = vsub.s32 7, %v1092
    %v1094 = vrot.slane %v1062, %v1093
    %v1103 = vmul.f32 %v1043, %v1066
    %v1104 = vmul.f32 %v1044, %v1066
    %v1105 = vmul.f32 %v1045, %v1070
    %v1106 = vmul.f32 %v1046, %v1070
    %v1107 = vmul.f32 %v1047, %v1074
    %v1108 = vmul.f32 %v1048, %v1074
    %v1109 = vmul.f32 %v1049, %v1078
    %v1110 = vmul.f32 %v1050, %v1078
    %v1111 = vmul.f32 %v1051, %v1082
    %v1112 = vmul.f32 %v1052, %v1082
    %v1113 = vmul.f32 %v1053, %v1086
    %v1114 = vmul.f32 %v1054, %v1086
    %v1115 = vmul.f32 %v1055, %v1090
    %v1116 = vmul.f32 %v1056, %v1090
    %v1117 = vmul.f32 %v1057, %v1094
    %v1118 = vmul.f32 %v1058, %v1094
    %1135 = vset.pattern.permute.xlu0 0
    %1136 = vperm.xlu0 %1135, %v1103
    %v1137 = vpop.permute.xlu0 %1136
    %1138 = vset.pattern.permute.xlu0 0
    %1139 = vperm.xlu0 %1138, %v1104
    %v1140 = vpop.permute.xlu0 %1139
    %1141 = vset.pattern.permute.xlu0 0
    %1142 = vperm.xlu0 %1141, %v1105
    %v1143 = vpop.permute.xlu0 %1142
    %1144 = vset.pattern.permute.xlu0 0
    %1145 = vperm.xlu0 %1144, %v1106
    %v1146 = vpop.permute.xlu0 %1145
    %1147 = vset.pattern.permute.xlu0 0
    %1148 = vperm.xlu0 %1147, %v1107
    %v1149 = vpop.permute.xlu0 %1148
    %1150 = vset.pattern.permute.xlu0 0
    %1151 = vperm.xlu0 %1150, %v1108
    %v1152 = vpop.permute.xlu0 %1151
    %1153 = vset.pattern.permute.xlu0 0
    %1154 = vperm.xlu0 %1153, %v1109
    %v1155 = vpop.permute.xlu0 %1154
    %1156 = vset.pattern.permute.xlu0 0
    %1157 = vperm.xlu0 %1156, %v1110
    %v1158 = vpop.permute.xlu0 %1157
    %1159 = vset.pattern.permute.xlu0 0
    %1160 = vperm.xlu0 %1159, %v1111
    %v1161 = vpop.permute.xlu0 %1160
    %1162 = vset.pattern.permute.xlu0 0
    %1163 = vperm.xlu0 %1162, %v1112
    %v1164 = vpop.permute.xlu0 %1163
    %1165 = vset.pattern.permute.xlu0 0
    %1166 = vperm.xlu0 %1165, %v1113
    %v1167 = vpop.permute.xlu0 %1166
    %1168 = vset.pattern.permute.xlu0 0
    %1169 = vperm.xlu0 %1168, %v1114
    %v1170 = vpop.permute.xlu0 %1169
    %1171 = vset.pattern.permute.xlu0 0
    %1172 = vperm.xlu0 %1171, %v1115
    %v1173 = vpop.permute.xlu0 %1172
    %1174 = vset.pattern.permute.xlu0 0
    %1175 = vperm.xlu0 %1174, %v1116
    %v1176 = vpop.permute.xlu0 %1175
    %1177 = vset.pattern.permute.xlu0 0
    %1178 = vperm.xlu0 %1177, %v1117
    %v1179 = vpop.permute.xlu0 %1178
    %1180 = vset.pattern.permute.xlu0 0
    %1181 = vperm.xlu0 %1180, %v1118
    %v1182 = vpop.permute.xlu0 %1181
    %v1183 = vlaneseq
    %v1184 = vand.u32 %v1183, 127
    %v1185 = vlaneseq
    %v1186 = vshrl.u32 %v1185, 7
    %v1187 = vsub.s32 %v1184, %v1186
    %v1188 = vrot.slane %v1137, %v1187
    %v1189 = vadd.s32 %v1184, 4294967288
    %v1190 = vlaneseq
    %v1191 = vshrl.u32 %v1190, 7
    %v1192 = vsub.s32 %v1189, %v1191
    %v1193 = vrot.slane %v1140, %v1192
    %vm1194 = vcmask 130112
    %v1195 = vsel %vm1194, %v1193, %v1188
    %v1196 = vlaneseq
    %v1197 = vshrl.u32 %v1196, 7
    %v1198 = vsub.s32 %v1184, %v1197
    %v1199 = vrot.slane %v1143, %v1198
    %v1200 = vlaneseq
    %v1201 = vshrl.u32 %v1200, 7
    %v1202 = vsub.s32 %v1189, %v1201
    %v1203 = vrot.slane %v1146, %v1202
    %v1204 = vsel %vm1194, %v1203, %v1199
    %v1205 = vlaneseq
    %v1206 = vshrl.u32 %v1205, 7
    %v1207 = vsub.s32 %v1184, %v1206
    %v1208 = vrot.slane %v1149, %v1207
    %v1209 = vlaneseq
    %v1210 = vshrl.u32 %v1209, 7
    %v1211 = vsub.s32 %v1189, %v1210
    %v1212 = vrot.slane %v1152, %v1211
    %v1213 = vsel %vm1194, %v1212, %v1208
    %v1214 = vlaneseq
    %v1215 = vshrl.u32 %v1214, 7
    %v1216 = vsub.s32 %v1184, %v1215
    %v1217 = vrot.slane %v1155, %v1216
    %v1218 = vlaneseq
    %v1219 = vshrl.u32 %v1218, 7
    %v1220 = vsub.s32 %v1189, %v1219
    %v1221 = vrot.slane %v1158, %v1220
    %v1222 = vsel %vm1194, %v1221, %v1217
    %v1223 = vlaneseq
    %v1224 = vshrl.u32 %v1223, 7
    %v1225 = vsub.s32 %v1184, %v1224
    %v1226 = vrot.slane %v1161, %v1225
    %v1227 = vlaneseq
    %v1228 = vshrl.u32 %v1227, 7
    %v1229 = vsub.s32 %v1189, %v1228
    %v1230 = vrot.slane %v1164, %v1229
    %v1231 = vsel %vm1194, %v1230, %v1226
    %v1232 = vlaneseq
    %v1233 = vshrl.u32 %v1232, 7
    %v1234 = vsub.s32 %v1184, %v1233
    %v1235 = vrot.slane %v1167, %v1234
    %v1236 = vlaneseq
    %v1237 = vshrl.u32 %v1236, 7
    %v1238 = vsub.s32 %v1189, %v1237
    %v1239 = vrot.slane %v1170, %v1238
    %v1240 = vsel %vm1194, %v1239, %v1235
    %v1241 = vlaneseq
    %v1242 = vshrl.u32 %v1241, 7
    %v1243 = vsub.s32 %v1184, %v1242
    %v1244 = vrot.slane %v1173, %v1243
    %v1245 = vlaneseq
    %v1246 = vshrl.u32 %v1245, 7
    %v1247 = vsub.s32 %v1189, %v1246
    %v1248 = vrot.slane %v1176, %v1247
    %v1249 = vsel %vm1194, %v1248, %v1244
    %v1250 = vlaneseq
    %v1251 = vshrl.u32 %v1250, 7
    %v1252 = vsub.s32 %v1184, %v1251
    %v1253 = vrot.slane %v1179, %v1252
    %v1254 = vlaneseq
    %v1255 = vshrl.u32 %v1254, 7
    %v1256 = vsub.s32 %v1189, %v1255
    %v1257 = vrot.slane %v1182, %v1256
    %v1258 = vsel %vm1194, %v1257, %v1253
    %vm1259 = vcmask 1041409
    %v1260 = vsel %vm1259, %v1204, %v1195
    %vm1261 = vcmask 1042434
    %v1262 = vsel %vm1261, %v1213, %v1260
    %vm1263 = vcmask 1043459
    %v1264 = vsel %vm1263, %v1222, %v1262
    %vm1265 = vcmask 1044484
    %v1266 = vsel %vm1265, %v1231, %v1264
    %vm1267 = vcmask 1045509
    %v1268 = vsel %vm1267, %v1240, %v1266
    %vm1269 = vcmask 1046534
    %v1270 = vsel %vm1269, %v1249, %v1268
    %vm1271 = vcmask 1047559
    %v1272 = vsel %vm1271, %v1258, %v1270
    %vm1274 = vcmask 130048
    %v1275 = vsel %vm1274, %v1272, -inf
    %1276 = vmax.xlane.f32.xlu0 %v1275
    %v1277 = vpop.xlane.xlu0 %1276
    %v1279 = vlaneseq
    %v1280 = vshrl.u32 %v1279, 7
    %v1281 = vsub.s32 0, %v1280
    %v1282 = vrot.slane %v1277, %v1281
    %v1283 = vlaneseq
    %v1284 = vshrl.u32 %v1283, 7
    %v1285 = vsub.s32 1, %v1284
    %v1286 = vrot.slane %v1277, %v1285
    %v1287 = vlaneseq
    %v1288 = vshrl.u32 %v1287, 7
    %v1289 = vsub.s32 2, %v1288
    %v1290 = vrot.slane %v1277, %v1289
    %v1291 = vlaneseq
    %v1292 = vshrl.u32 %v1291, 7
    %v1293 = vsub.s32 3, %v1292
    %v1294 = vrot.slane %v1277, %v1293
    %v1295 = vlaneseq
    %v1296 = vshrl.u32 %v1295, 7
    %v1297 = vsub.s32 4, %v1296
    %v1298 = vrot.slane %v1277, %v1297
    %v1299 = vlaneseq
    %v1300 = vshrl.u32 %v1299, 7
    %v1301 = vsub.s32 5, %v1300
    %v1302 = vrot.slane %v1277, %v1301
    %v1303 = vlaneseq
    %v1304 = vshrl.u32 %v1303, 7
    %v1305 = vsub.s32 6, %v1304
    %v1306 = vrot.slane %v1277, %v1305
    %v1307 = vlaneseq
    %v1308 = vshrl.u32 %v1307, 7
    %v1309 = vsub.s32 7, %v1308
    %v1310 = vrot.slane %v1277, %v1309
    %v1319 = vsub.f32 %v1103, %v1282
    %v1320 = vsub.f32 %v1104, %v1282
    %v1321 = vsub.f32 %v1105, %v1286
    %v1322 = vsub.f32 %v1106, %v1286
    %v1323 = vsub.f32 %v1107, %v1290
    %v1324 = vsub.f32 %v1108, %v1290
    %v1325 = vsub.f32 %v1109, %v1294
    %v1326 = vsub.f32 %v1110, %v1294
    %v1327 = vsub.f32 %v1111, %v1298
    %v1328 = vsub.f32 %v1112, %v1298
    %v1329 = vsub.f32 %v1113, %v1302
    %v1330 = vsub.f32 %v1114, %v1302
    %v1331 = vsub.f32 %v1115, %v1306
    %v1332 = vsub.f32 %v1116, %v1306
    %v1333 = vsub.f32 %v1117, %v1310
    %v1334 = vsub.f32 %v1118, %v1310
    %v1335 = vmul.f32 %v1319, 1.442695
    %v1336 = vpow.pop %v1335
    %v1337 = vmul.f32 %v1320, 1.442695
    %v1338 = vpow.pop %v1337
    %v1339 = vmul.f32 %v1321, 1.442695
    %v1340 = vpow.pop %v1339
    %v1341 = vmul.f32 %v1322, 1.442695
    %v1342 = vpow.pop %v1341
    %v1343 = vmul.f32 %v1323, 1.442695
    %v1344 = vpow.pop %v1343
    %v1345 = vmul.f32 %v1324, 1.442695
    %v1346 = vpow.pop %v1345
    %v1347 = vmul.f32 %v1325, 1.442695
    %v1348 = vpow.pop %v1347
    %v1349 = vmul.f32 %v1326, 1.442695
    %v1350 = vpow.pop %v1349
    %v1351 = vmul.f32 %v1327, 1.442695
    %v1352 = vpow.pop %v1351
    %v1353 = vmul.f32 %v1328, 1.442695
    %v1354 = vpow.pop %v1353
    %v1355 = vmul.f32 %v1329, 1.442695
    %v1356 = vpow.pop %v1355
    %v1357 = vmul.f32 %v1330, 1.442695
    %v1358 = vpow.pop %v1357
    %v1359 = vmul.f32 %v1331, 1.442695
    %v1360 = vpow.pop %v1359
    %v1361 = vmul.f32 %v1332, 1.442695
    %v1362 = vpow.pop %v1361
    %v1363 = vmul.f32 %v1333, 1.442695
    %v1364 = vpow.pop %v1363
    %v1365 = vmul.f32 %v1334, 1.442695
    %v1366 = vpow.pop %v1365
    %1383 = vset.pattern.permute.xlu0 0
    %1384 = vperm.xlu0 %1383, %v1336
    %v1385 = vpop.permute.xlu0 %1384
    %1386 = vset.pattern.permute.xlu0 0
    %1387 = vperm.xlu0 %1386, %v1338
    %v1388 = vpop.permute.xlu0 %1387
    %1389 = vset.pattern.permute.xlu0 0
    %1390 = vperm.xlu0 %1389, %v1340
    %v1391 = vpop.permute.xlu0 %1390
    %1392 = vset.pattern.permute.xlu0 0
    %1393 = vperm.xlu0 %1392, %v1342
    %v1394 = vpop.permute.xlu0 %1393
    %1395 = vset.pattern.permute.xlu0 0
    %1396 = vperm.xlu0 %1395, %v1344
    %v1397 = vpop.permute.xlu0 %1396
    %1398 = vset.pattern.permute.xlu0 0
    %1399 = vperm.xlu0 %1398, %v1346
    %v1400 = vpop.permute.xlu0 %1399
    %1401 = vset.pattern.permute.xlu0 0
    %1402 = vperm.xlu0 %1401, %v1348
    %v1403 = vpop.permute.xlu0 %1402
    %1404 = vset.pattern.permute.xlu0 0
    %1405 = vperm.xlu0 %1404, %v1350
    %v1406 = vpop.permute.xlu0 %1405
    %1407 = vset.pattern.permute.xlu0 0
    %1408 = vperm.xlu0 %1407, %v1352
    %v1409 = vpop.permute.xlu0 %1408
    %1410 = vset.pattern.permute.xlu0 0
    %1411 = vperm.xlu0 %1410, %v1354
    %v1412 = vpop.permute.xlu0 %1411
    %1413 = vset.pattern.permute.xlu0 0
    %1414 = vperm.xlu0 %1413, %v1356
    %v1415 = vpop.permute.xlu0 %1414
    %1416 = vset.pattern.permute.xlu0 0
    %1417 = vperm.xlu0 %1416, %v1358
    %v1418 = vpop.permute.xlu0 %1417
    %1419 = vset.pattern.permute.xlu0 0
    %1420 = vperm.xlu0 %1419, %v1360
    %v1421 = vpop.permute.xlu0 %1420
    %1422 = vset.pattern.permute.xlu0 0
    %1423 = vperm.xlu0 %1422, %v1362
    %v1424 = vpop.permute.xlu0 %1423
    %1425 = vset.pattern.permute.xlu0 0
    %1426 = vperm.xlu0 %1425, %v1364
    %v1427 = vpop.permute.xlu0 %1426
    %1428 = vset.pattern.permute.xlu0 0
    %1429 = vperm.xlu0 %1428, %v1366
    %v1430 = vpop.permute.xlu0 %1429
    %v1431 = vlaneseq
    %v1432 = vshrl.u32 %v1431, 7
    %v1433 = vsub.s32 %v1184, %v1432
    %v1434 = vrot.slane %v1385, %v1433
    %v1435 = vlaneseq
    %v1436 = vshrl.u32 %v1435, 7
    %v1437 = vsub.s32 %v1189, %v1436
    %v1438 = vrot.slane %v1388, %v1437
    %v1439 = vsel %vm1194, %v1438, %v1434
    %v1440 = vlaneseq
    %v1441 = vshrl.u32 %v1440, 7
    %v1442 = vsub.s32 %v1184, %v1441
    %v1443 = vrot.slane %v1391, %v1442
    %v1444 = vlaneseq
    %v1445 = vshrl.u32 %v1444, 7
    %v1446 = vsub.s32 %v1189, %v1445
    %v1447 = vrot.slane %v1394, %v1446
    %v1448 = vsel %vm1194, %v1447, %v1443
    %v1449 = vlaneseq
    %v1450 = vshrl.u32 %v1449, 7
    %v1451 = vsub.s32 %v1184, %v1450
    %v1452 = vrot.slane %v1397, %v1451
    %v1453 = vlaneseq
    %v1454 = vshrl.u32 %v1453, 7
    %v1455 = vsub.s32 %v1189, %v1454
    %v1456 = vrot.slane %v1400, %v1455
    %v1457 = vsel %vm1194, %v1456, %v1452
    %v1458 = vlaneseq
    %v1459 = vshrl.u32 %v1458, 7
    %v1460 = vsub.s32 %v1184, %v1459
    %v1461 = vrot.slane %v1403, %v1460
    %v1462 = vlaneseq
    %v1463 = vshrl.u32 %v1462, 7
    %v1464 = vsub.s32 %v1189, %v1463
    %v1465 = vrot.slane %v1406, %v1464
    %v1466 = vsel %vm1194, %v1465, %v1461
    %v1467 = vlaneseq
    %v1468 = vshrl.u32 %v1467, 7
    %v1469 = vsub.s32 %v1184, %v1468
    %v1470 = vrot.slane %v1409, %v1469
    %v1471 = vlaneseq
    %v1472 = vshrl.u32 %v1471, 7
    %v1473 = vsub.s32 %v1189, %v1472
    %v1474 = vrot.slane %v1412, %v1473
    %v1475 = vsel %vm1194, %v1474, %v1470
    %v1476 = vlaneseq
    %v1477 = vshrl.u32 %v1476, 7
    %v1478 = vsub.s32 %v1184, %v1477
    %v1479 = vrot.slane %v1415, %v1478
    %v1480 = vlaneseq
    %v1481 = vshrl.u32 %v1480, 7
    %v1482 = vsub.s32 %v1189, %v1481
    %v1483 = vrot.slane %v1418, %v1482
    %v1484 = vsel %vm1194, %v1483, %v1479
    %v1485 = vlaneseq
    %v1486 = vshrl.u32 %v1485, 7
    %v1487 = vsub.s32 %v1184, %v1486
    %v1488 = vrot.slane %v1421, %v1487
    %v1489 = vlaneseq
    %v1490 = vshrl.u32 %v1489, 7
    %v1491 = vsub.s32 %v1189, %v1490
    %v1492 = vrot.slane %v1424, %v1491
    %v1493 = vsel %vm1194, %v1492, %v1488
    %v1494 = vlaneseq
    %v1495 = vshrl.u32 %v1494, 7
    %v1496 = vsub.s32 %v1184, %v1495
    %v1497 = vrot.slane %v1427, %v1496
    %v1498 = vlaneseq
    %v1499 = vshrl.u32 %v1498, 7
    %v1500 = vsub.s32 %v1189, %v1499
    %v1501 = vrot.slane %v1430, %v1500
    %v1502 = vsel %vm1194, %v1501, %v1497
    %v1503 = vsel %vm1259, %v1448, %v1439
    %v1504 = vsel %vm1261, %v1457, %v1503
    %v1505 = vsel %vm1263, %v1466, %v1504
    %v1506 = vsel %vm1265, %v1475, %v1505
    %v1507 = vsel %vm1267, %v1484, %v1506
    %v1508 = vsel %vm1269, %v1493, %v1507
    %v1509 = vsel %vm1271, %v1502, %v1508
    %v1511 = vsel %vm1274, %v1509, 0.0
    %1512 = vadd.xlane.f32.xlu0 %v1511
    %v1513 = vpop.xlane.xlu0 %1512
    %v1514 = vrcp.pop %v1513
    %v1516 = vlaneseq
    %v1517 = vshrl.u32 %v1516, 7
    %v1518 = vsub.s32 0, %v1517
    %v1519 = vrot.slane %v1514, %v1518
    %v1520 = vlaneseq
    %v1521 = vshrl.u32 %v1520, 7
    %v1522 = vsub.s32 1, %v1521
    %v1523 = vrot.slane %v1514, %v1522
    %v1524 = vlaneseq
    %v1525 = vshrl.u32 %v1524, 7
    %v1526 = vsub.s32 2, %v1525
    %v1527 = vrot.slane %v1514, %v1526
    %v1528 = vlaneseq
    %v1529 = vshrl.u32 %v1528, 7
    %v1530 = vsub.s32 3, %v1529
    %v1531 = vrot.slane %v1514, %v1530
    %v1532 = vlaneseq
    %v1533 = vshrl.u32 %v1532, 7
    %v1534 = vsub.s32 4, %v1533
    %v1535 = vrot.slane %v1514, %v1534
    %v1536 = vlaneseq
    %v1537 = vshrl.u32 %v1536, 7
    %v1538 = vsub.s32 5, %v1537
    %v1539 = vrot.slane %v1514, %v1538
    %v1540 = vlaneseq
    %v1541 = vshrl.u32 %v1540, 7
    %v1542 = vsub.s32 6, %v1541
    %v1543 = vrot.slane %v1514, %v1542
    %v1544 = vlaneseq
    %v1545 = vshrl.u32 %v1544, 7
    %v1546 = vsub.s32 7, %v1545
    %v1547 = vrot.slane %v1514, %v1546
    %v1556 = vmul.f32 %v1336, %v1519
    %v1557 = vmul.f32 %v1338, %v1519
    %v1558 = vmul.f32 %v1340, %v1523
    %v1559 = vmul.f32 %v1342, %v1523
    %v1560 = vmul.f32 %v1344, %v1527
    %v1561 = vmul.f32 %v1346, %v1527
    %v1562 = vmul.f32 %v1348, %v1531
    %v1563 = vmul.f32 %v1350, %v1531
    %v1564 = vmul.f32 %v1352, %v1535
    %v1565 = vmul.f32 %v1354, %v1535
    %v1566 = vmul.f32 %v1356, %v1539
    %v1567 = vmul.f32 %v1358, %v1539
    %v1568 = vmul.f32 %v1360, %v1543
    %v1569 = vmul.f32 %v1362, %v1543
    %v1570 = vmul.f32 %v1364, %v1547
    %v1571 = vmul.f32 %v1366, %v1547
    %v1572 = vmul.f32 %v114, %v789
    %v1573 = vmul.f32 %v115, %v789
    %v1574 = vmul.f32 %v116, %v793
    %v1575 = vmul.f32 %v117, %v793
    %v1576 = vmul.f32 %v118, %v797
    %v1577 = vmul.f32 %v119, %v797
    %v1578 = vmul.f32 %v120, %v801
    %v1579 = vmul.f32 %v121, %v801
    %v1580 = vmul.f32 %v122, %v805
    %v1581 = vmul.f32 %v123, %v805
    %v1582 = vmul.f32 %v124, %v809
    %v1583 = vmul.f32 %v125, %v809
    %v1584 = vmul.f32 %v126, %v813
    %v1585 = vmul.f32 %v127, %v813
    %v1586 = vmul.f32 %v128, %v817
    %v1587 = vmul.f32 %v129, %v817
    %v1588 = vsel %vm167, %v1572, 0.0
    %1589 = vadd.xlane.f32.xlu0 %v1588
    %v1590 = vpop.xlane.xlu0 %1589
    %v1591 = vsel %vm167, %v1573, 0.0
    %1592 = vadd.xlane.f32.xlu0 %v1591
    %v1593 = vpop.xlane.xlu0 %1592
    %v1594 = vsel %vm167, %v1574, 0.0
    %1595 = vadd.xlane.f32.xlu0 %v1594
    %v1596 = vpop.xlane.xlu0 %1595
    %v1597 = vsel %vm167, %v1575, 0.0
    %1598 = vadd.xlane.f32.xlu0 %v1597
    %v1599 = vpop.xlane.xlu0 %1598
    %v1600 = vsel %vm167, %v1576, 0.0
    %1601 = vadd.xlane.f32.xlu0 %v1600
    %v1602 = vpop.xlane.xlu0 %1601
    %v1603 = vsel %vm167, %v1577, 0.0
    %1604 = vadd.xlane.f32.xlu0 %v1603
    %v1605 = vpop.xlane.xlu0 %1604
    %v1606 = vsel %vm167, %v1578, 0.0
    %1607 = vadd.xlane.f32.xlu0 %v1606
    %v1608 = vpop.xlane.xlu0 %1607
    %v1609 = vsel %vm167, %v1579, 0.0
    %1610 = vadd.xlane.f32.xlu0 %v1609
    %v1611 = vpop.xlane.xlu0 %1610
    %v1612 = vsel %vm167, %v1580, 0.0
    %1613 = vadd.xlane.f32.xlu0 %v1612
    %v1614 = vpop.xlane.xlu0 %1613
    %v1615 = vsel %vm167, %v1581, 0.0
    %1616 = vadd.xlane.f32.xlu0 %v1615
    %v1617 = vpop.xlane.xlu0 %1616
    %v1618 = vsel %vm167, %v1582, 0.0
    %1619 = vadd.xlane.f32.xlu0 %v1618
    %v1620 = vpop.xlane.xlu0 %1619
    %v1621 = vsel %vm167, %v1583, 0.0
    %1622 = vadd.xlane.f32.xlu0 %v1621
    %v1623 = vpop.xlane.xlu0 %1622
    %v1624 = vsel %vm167, %v1584, 0.0
    %1625 = vadd.xlane.f32.xlu0 %v1624
    %v1626 = vpop.xlane.xlu0 %1625
    %v1627 = vsel %vm167, %v1585, 0.0
    %1628 = vadd.xlane.f32.xlu0 %v1627
    %v1629 = vpop.xlane.xlu0 %1628
    %v1630 = vsel %vm167, %v1586, 0.0
    %1631 = vadd.xlane.f32.xlu0 %v1630
    %v1632 = vpop.xlane.xlu0 %1631
    %v1633 = vsel %vm167, %v1587, 0.0
    %1634 = vadd.xlane.f32.xlu0 %v1633
    %v1635 = vpop.xlane.xlu0 %1634
    %v1636 = vmul.f32 %v114, %v114
    %v1637 = vmul.f32 %v115, %v115
    %v1638 = vmul.f32 %v116, %v116
    %v1639 = vmul.f32 %v117, %v117
    %v1640 = vmul.f32 %v118, %v118
    %v1641 = vmul.f32 %v119, %v119
    %v1642 = vmul.f32 %v120, %v120
    %v1643 = vmul.f32 %v121, %v121
    %v1644 = vmul.f32 %v122, %v122
    %v1645 = vmul.f32 %v123, %v123
    %v1646 = vmul.f32 %v124, %v124
    %v1647 = vmul.f32 %v125, %v125
    %v1648 = vmul.f32 %v126, %v126
    %v1649 = vmul.f32 %v127, %v127
    %v1650 = vmul.f32 %v128, %v128
    %v1651 = vmul.f32 %v129, %v129
    %v1652 = vsel %vm167, %v1636, 0.0
    %1653 = vadd.xlane.f32.xlu0 %v1652
    %v1654 = vpop.xlane.xlu0 %1653
    %v1655 = vsel %vm167, %v1637, 0.0
    %1656 = vadd.xlane.f32.xlu0 %v1655
    %v1657 = vpop.xlane.xlu0 %1656
    %v1658 = vsel %vm167, %v1638, 0.0
    %1659 = vadd.xlane.f32.xlu0 %v1658
    %v1660 = vpop.xlane.xlu0 %1659
    %v1661 = vsel %vm167, %v1639, 0.0
    %1662 = vadd.xlane.f32.xlu0 %v1661
    %v1663 = vpop.xlane.xlu0 %1662
    %v1664 = vsel %vm167, %v1640, 0.0
    %1665 = vadd.xlane.f32.xlu0 %v1664
    %v1666 = vpop.xlane.xlu0 %1665
    %v1667 = vsel %vm167, %v1641, 0.0
    %1668 = vadd.xlane.f32.xlu0 %v1667
    %v1669 = vpop.xlane.xlu0 %1668
    %v1670 = vsel %vm167, %v1642, 0.0
    %1671 = vadd.xlane.f32.xlu0 %v1670
    %v1672 = vpop.xlane.xlu0 %1671
    %v1673 = vsel %vm167, %v1643, 0.0
    %1674 = vadd.xlane.f32.xlu0 %v1673
    %v1675 = vpop.xlane.xlu0 %1674
    %v1676 = vsel %vm167, %v1644, 0.0
    %1677 = vadd.xlane.f32.xlu0 %v1676
    %v1678 = vpop.xlane.xlu0 %1677
    %v1679 = vsel %vm167, %v1645, 0.0
    %1680 = vadd.xlane.f32.xlu0 %v1679
    %v1681 = vpop.xlane.xlu0 %1680
    %v1682 = vsel %vm167, %v1646, 0.0
    %1683 = vadd.xlane.f32.xlu0 %v1682
    %v1684 = vpop.xlane.xlu0 %1683
    %v1685 = vsel %vm167, %v1647, 0.0
    %1686 = vadd.xlane.f32.xlu0 %v1685
    %v1687 = vpop.xlane.xlu0 %1686
    %v1688 = vsel %vm167, %v1648, 0.0
    %1689 = vadd.xlane.f32.xlu0 %v1688
    %v1690 = vpop.xlane.xlu0 %1689
    %v1691 = vsel %vm167, %v1649, 0.0
    %1692 = vadd.xlane.f32.xlu0 %v1691
    %v1693 = vpop.xlane.xlu0 %1692
    %v1694 = vsel %vm167, %v1650, 0.0
    %1695 = vadd.xlane.f32.xlu0 %v1694
    %v1696 = vpop.xlane.xlu0 %1695
    %v1697 = vsel %vm167, %v1651, 0.0
    %1698 = vadd.xlane.f32.xlu0 %v1697
    %v1699 = vpop.xlane.xlu0 %1698
    %v1700 = vmax.f32 %v1654, 1e-16
    %v1701 = vmax.f32 %v1657, 1e-16
    %v1702 = vmax.f32 %v1660, 1e-16
    %v1703 = vmax.f32 %v1663, 1e-16
    %v1704 = vmax.f32 %v1666, 1e-16
    %v1705 = vmax.f32 %v1669, 1e-16
    %v1706 = vmax.f32 %v1672, 1e-16
    %v1707 = vmax.f32 %v1675, 1e-16
    %v1708 = vmax.f32 %v1678, 1e-16
    %v1709 = vmax.f32 %v1681, 1e-16
    %v1710 = vmax.f32 %v1684, 1e-16
    %v1711 = vmax.f32 %v1687, 1e-16
    %v1712 = vmax.f32 %v1690, 1e-16
    %v1713 = vmax.f32 %v1693, 1e-16
    %v1714 = vmax.f32 %v1696, 1e-16
    %v1715 = vmax.f32 %v1699, 1e-16
    %v1716 = vrsqrt.pop %v1700
    %v1717 = vrsqrt.pop %v1701
    %v1718 = vrsqrt.pop %v1702
    %v1719 = vrsqrt.pop %v1703
    %v1720 = vrsqrt.pop %v1704
    %v1721 = vrsqrt.pop %v1705
    %v1722 = vrsqrt.pop %v1706
    %v1723 = vrsqrt.pop %v1707
    %v1724 = vrsqrt.pop %v1708
    %v1725 = vrsqrt.pop %v1709
    %v1726 = vrsqrt.pop %v1710
    %v1727 = vrsqrt.pop %v1711
    %v1728 = vrsqrt.pop %v1712
    %v1729 = vrsqrt.pop %v1713
    %v1730 = vrsqrt.pop %v1714
    %v1731 = vrsqrt.pop %v1715
    %v1732 = vmul.f32 %v1590, %v1716
    %v1733 = vmul.f32 %v1593, %v1717
    %v1734 = vmul.f32 %v1596, %v1718
    %v1735 = vmul.f32 %v1599, %v1719
    %v1736 = vmul.f32 %v1602, %v1720
    %v1737 = vmul.f32 %v1605, %v1721
    %v1738 = vmul.f32 %v1608, %v1722
    %v1739 = vmul.f32 %v1611, %v1723
    %v1740 = vmul.f32 %v1614, %v1724
    %v1741 = vmul.f32 %v1617, %v1725
    %v1742 = vmul.f32 %v1620, %v1726
    %v1743 = vmul.f32 %v1623, %v1727
    %v1744 = vmul.f32 %v1626, %v1728
    %v1745 = vmul.f32 %v1629, %v1729
    %v1746 = vmul.f32 %v1632, %v1730
    %v1747 = vmul.f32 %v1635, %v1731
    %v1748 = vmul.f32 %v1732, %v1006
    %v1749 = vmul.f32 %v1733, %v1006
    %v1750 = vmul.f32 %v1734, %v1010
    %v1751 = vmul.f32 %v1735, %v1010
    %v1752 = vmul.f32 %v1736, %v1014
    %v1753 = vmul.f32 %v1737, %v1014
    %v1754 = vmul.f32 %v1738, %v1018
    %v1755 = vmul.f32 %v1739, %v1018
    %v1756 = vmul.f32 %v1740, %v1022
    %v1757 = vmul.f32 %v1741, %v1022
    %v1758 = vmul.f32 %v1742, %v1026
    %v1759 = vmul.f32 %v1743, %v1026
    %v1760 = vmul.f32 %v1744, %v1030
    %v1761 = vmul.f32 %v1745, %v1030
    %v1762 = vmul.f32 %v1746, %v1034
    %v1763 = vmul.f32 %v1747, %v1034
    %v1764 = vmul.f32 %v1748, %v1066
    %v1765 = vmul.f32 %v1749, %v1066
    %v1766 = vmul.f32 %v1750, %v1070
    %v1767 = vmul.f32 %v1751, %v1070
    %v1768 = vmul.f32 %v1752, %v1074
    %v1769 = vmul.f32 %v1753, %v1074
    %v1770 = vmul.f32 %v1754, %v1078
    %v1771 = vmul.f32 %v1755, %v1078
    %v1772 = vmul.f32 %v1756, %v1082
    %v1773 = vmul.f32 %v1757, %v1082
    %v1774 = vmul.f32 %v1758, %v1086
    %v1775 = vmul.f32 %v1759, %v1086
    %v1776 = vmul.f32 %v1760, %v1090
    %v1777 = vmul.f32 %v1761, %v1090
    %v1778 = vmul.f32 %v1762, %v1094
    %v1779 = vmul.f32 %v1763, %v1094
    %1796 = vset.pattern.permute.xlu0 0
    %1797 = vperm.xlu0 %1796, %v1764
    %v1798 = vpop.permute.xlu0 %1797
    %1799 = vset.pattern.permute.xlu0 0
    %1800 = vperm.xlu0 %1799, %v1765
    %v1801 = vpop.permute.xlu0 %1800
    %1802 = vset.pattern.permute.xlu0 0
    %1803 = vperm.xlu0 %1802, %v1766
    %v1804 = vpop.permute.xlu0 %1803
    %1805 = vset.pattern.permute.xlu0 0
    %1806 = vperm.xlu0 %1805, %v1767
    %v1807 = vpop.permute.xlu0 %1806
    %1808 = vset.pattern.permute.xlu0 0
    %1809 = vperm.xlu0 %1808, %v1768
    %v1810 = vpop.permute.xlu0 %1809
    %1811 = vset.pattern.permute.xlu0 0
    %1812 = vperm.xlu0 %1811, %v1769
    %v1813 = vpop.permute.xlu0 %1812
    %1814 = vset.pattern.permute.xlu0 0
    %1815 = vperm.xlu0 %1814, %v1770
    %v1816 = vpop.permute.xlu0 %1815
    %1817 = vset.pattern.permute.xlu0 0
    %1818 = vperm.xlu0 %1817, %v1771
    %v1819 = vpop.permute.xlu0 %1818
    %1820 = vset.pattern.permute.xlu0 0
    %1821 = vperm.xlu0 %1820, %v1772
    %v1822 = vpop.permute.xlu0 %1821
    %1823 = vset.pattern.permute.xlu0 0
    %1824 = vperm.xlu0 %1823, %v1773
    %v1825 = vpop.permute.xlu0 %1824
    %1826 = vset.pattern.permute.xlu0 0
    %1827 = vperm.xlu0 %1826, %v1774
    %v1828 = vpop.permute.xlu0 %1827
    %1829 = vset.pattern.permute.xlu0 0
    %1830 = vperm.xlu0 %1829, %v1775
    %v1831 = vpop.permute.xlu0 %1830
    %1832 = vset.pattern.permute.xlu0 0
    %1833 = vperm.xlu0 %1832, %v1776
    %v1834 = vpop.permute.xlu0 %1833
    %1835 = vset.pattern.permute.xlu0 0
    %1836 = vperm.xlu0 %1835, %v1777
    %v1837 = vpop.permute.xlu0 %1836
    %1838 = vset.pattern.permute.xlu0 0
    %1839 = vperm.xlu0 %1838, %v1778
    %v1840 = vpop.permute.xlu0 %1839
    %1841 = vset.pattern.permute.xlu0 0
    %1842 = vperm.xlu0 %1841, %v1779
    %v1843 = vpop.permute.xlu0 %1842
    %v1844 = vlaneseq
    %v1845 = vshrl.u32 %v1844, 7
    %v1846 = vsub.s32 %v1184, %v1845
    %v1847 = vrot.slane %v1798, %v1846
    %v1848 = vlaneseq
    %v1849 = vshrl.u32 %v1848, 7
    %v1850 = vsub.s32 %v1189, %v1849
    %v1851 = vrot.slane %v1801, %v1850
    %v1852 = vsel %vm1194, %v1851, %v1847
    %v1853 = vlaneseq
    %v1854 = vshrl.u32 %v1853, 7
    %v1855 = vsub.s32 %v1184, %v1854
    %v1856 = vrot.slane %v1804, %v1855
    %v1857 = vlaneseq
    %v1858 = vshrl.u32 %v1857, 7
    %v1859 = vsub.s32 %v1189, %v1858
    %v1860 = vrot.slane %v1807, %v1859
    %v1861 = vsel %vm1194, %v1860, %v1856
    %v1862 = vlaneseq
    %v1863 = vshrl.u32 %v1862, 7
    %v1864 = vsub.s32 %v1184, %v1863
    %v1865 = vrot.slane %v1810, %v1864
    %v1866 = vlaneseq
    %v1867 = vshrl.u32 %v1866, 7
    %v1868 = vsub.s32 %v1189, %v1867
    %v1869 = vrot.slane %v1813, %v1868
    %v1870 = vsel %vm1194, %v1869, %v1865
    %v1871 = vlaneseq
    %v1872 = vshrl.u32 %v1871, 7
    %v1873 = vsub.s32 %v1184, %v1872
    %v1874 = vrot.slane %v1816, %v1873
    %v1875 = vlaneseq
    %v1876 = vshrl.u32 %v1875, 7
    %v1877 = vsub.s32 %v1189, %v1876
    %v1878 = vrot.slane %v1819, %v1877
    %v1879 = vsel %vm1194, %v1878, %v1874
    %v1880 = vlaneseq
    %v1881 = vshrl.u32 %v1880, 7
    %v1882 = vsub.s32 %v1184, %v1881
    %v1883 = vrot.slane %v1822, %v1882
    %v1884 = vlaneseq
    %v1885 = vshrl.u32 %v1884, 7
    %v1886 = vsub.s32 %v1189, %v1885
    %v1887 = vrot.slane %v1825, %v1886
    %v1888 = vsel %vm1194, %v1887, %v1883
    %v1889 = vlaneseq
    %v1890 = vshrl.u32 %v1889, 7
    %v1891 = vsub.s32 %v1184, %v1890
    %v1892 = vrot.slane %v1828, %v1891
    %v1893 = vlaneseq
    %v1894 = vshrl.u32 %v1893, 7
    %v1895 = vsub.s32 %v1189, %v1894
    %v1896 = vrot.slane %v1831, %v1895
    %v1897 = vsel %vm1194, %v1896, %v1892
    %v1898 = vlaneseq
    %v1899 = vshrl.u32 %v1898, 7
    %v1900 = vsub.s32 %v1184, %v1899
    %v1901 = vrot.slane %v1834, %v1900
    %v1902 = vlaneseq
    %v1903 = vshrl.u32 %v1902, 7
    %v1904 = vsub.s32 %v1189, %v1903
    %v1905 = vrot.slane %v1837, %v1904
    %v1906 = vsel %vm1194, %v1905, %v1901
    %v1907 = vlaneseq
    %v1908 = vshrl.u32 %v1907, 7
    %v1909 = vsub.s32 %v1184, %v1908
    %v1910 = vrot.slane %v1840, %v1909
    %v1911 = vlaneseq
    %v1912 = vshrl.u32 %v1911, 7
    %v1913 = vsub.s32 %v1189, %v1912
    %v1914 = vrot.slane %v1843, %v1913
    %v1915 = vsel %vm1194, %v1914, %v1910
    %v1916 = vsel %vm1259, %v1861, %v1852
    %v1917 = vsel %vm1261, %v1870, %v1916
    %v1918 = vsel %vm1263, %v1879, %v1917
    %v1919 = vsel %vm1265, %v1888, %v1918
    %v1920 = vsel %vm1267, %v1897, %v1919
    %v1921 = vsel %vm1269, %v1906, %v1920
    %v1922 = vsel %vm1271, %v1915, %v1921
    %v1924 = vsel %vm1274, %v1922, -inf
    %1925 = vmax.xlane.f32.xlu0 %v1924
    %v1926 = vpop.xlane.xlu0 %1925
    %v1928 = vlaneseq
    %v1929 = vshrl.u32 %v1928, 7
    %v1930 = vsub.s32 0, %v1929
    %v1931 = vrot.slane %v1926, %v1930
    %v1932 = vlaneseq
    %v1933 = vshrl.u32 %v1932, 7
    %v1934 = vsub.s32 1, %v1933
    %v1935 = vrot.slane %v1926, %v1934
    %v1936 = vlaneseq
    %v1937 = vshrl.u32 %v1936, 7
    %v1938 = vsub.s32 2, %v1937
    %v1939 = vrot.slane %v1926, %v1938
    %v1940 = vlaneseq
    %v1941 = vshrl.u32 %v1940, 7
    %v1942 = vsub.s32 3, %v1941
    %v1943 = vrot.slane %v1926, %v1942
    %v1944 = vlaneseq
    %v1945 = vshrl.u32 %v1944, 7
    %v1946 = vsub.s32 4, %v1945
    %v1947 = vrot.slane %v1926, %v1946
    %v1948 = vlaneseq
    %v1949 = vshrl.u32 %v1948, 7
    %v1950 = vsub.s32 5, %v1949
    %v1951 = vrot.slane %v1926, %v1950
    %v1952 = vlaneseq
    %v1953 = vshrl.u32 %v1952, 7
    %v1954 = vsub.s32 6, %v1953
    %v1955 = vrot.slane %v1926, %v1954
    %v1956 = vlaneseq
    %v1957 = vshrl.u32 %v1956, 7
    %v1958 = vsub.s32 7, %v1957
    %v1959 = vrot.slane %v1926, %v1958
    %v1968 = vsub.f32 %v1764, %v1931
    %v1969 = vsub.f32 %v1765, %v1931
    %v1970 = vsub.f32 %v1766, %v1935
    %v1971 = vsub.f32 %v1767, %v1935
    %v1972 = vsub.f32 %v1768, %v1939
    %v1973 = vsub.f32 %v1769, %v1939
    %v1974 = vsub.f32 %v1770, %v1943
    %v1975 = vsub.f32 %v1771, %v1943
    %v1976 = vsub.f32 %v1772, %v1947
    %v1977 = vsub.f32 %v1773, %v1947
    %v1978 = vsub.f32 %v1774, %v1951
    %v1979 = vsub.f32 %v1775, %v1951
    %v1980 = vsub.f32 %v1776, %v1955
    %v1981 = vsub.f32 %v1777, %v1955
    %v1982 = vsub.f32 %v1778, %v1959
    %v1983 = vsub.f32 %v1779, %v1959
    %v1984 = vmul.f32 %v1968, 1.442695
    %v1985 = vpow.pop %v1984
    %v1986 = vmul.f32 %v1969, 1.442695
    %v1987 = vpow.pop %v1986
    %v1988 = vmul.f32 %v1970, 1.442695
    %v1989 = vpow.pop %v1988
    %v1990 = vmul.f32 %v1971, 1.442695
    %v1991 = vpow.pop %v1990
    %v1992 = vmul.f32 %v1972, 1.442695
    %v1993 = vpow.pop %v1992
    %v1994 = vmul.f32 %v1973, 1.442695
    %v1995 = vpow.pop %v1994
    %v1996 = vmul.f32 %v1974, 1.442695
    %v1997 = vpow.pop %v1996
    %v1998 = vmul.f32 %v1975, 1.442695
    %v1999 = vpow.pop %v1998
    %v2000 = vmul.f32 %v1976, 1.442695
    %v2001 = vpow.pop %v2000
    %v2002 = vmul.f32 %v1977, 1.442695
    %v2003 = vpow.pop %v2002
    %v2004 = vmul.f32 %v1978, 1.442695
    %v2005 = vpow.pop %v2004
    %v2006 = vmul.f32 %v1979, 1.442695
    %v2007 = vpow.pop %v2006
    %v2008 = vmul.f32 %v1980, 1.442695
    %v2009 = vpow.pop %v2008
    %v2010 = vmul.f32 %v1981, 1.442695
    %v2011 = vpow.pop %v2010
    %v2012 = vmul.f32 %v1982, 1.442695
    %v2013 = vpow.pop %v2012
    %v2014 = vmul.f32 %v1983, 1.442695
    %v2015 = vpow.pop %v2014
    %2032 = vset.pattern.permute.xlu0 0
    %2033 = vperm.xlu0 %2032, %v1985
    %v2034 = vpop.permute.xlu0 %2033
    %2035 = vset.pattern.permute.xlu0 0
    %2036 = vperm.xlu0 %2035, %v1987
    %v2037 = vpop.permute.xlu0 %2036
    %2038 = vset.pattern.permute.xlu0 0
    %2039 = vperm.xlu0 %2038, %v1989
    %v2040 = vpop.permute.xlu0 %2039
    %2041 = vset.pattern.permute.xlu0 0
    %2042 = vperm.xlu0 %2041, %v1991
    %v2043 = vpop.permute.xlu0 %2042
    %2044 = vset.pattern.permute.xlu0 0
    %2045 = vperm.xlu0 %2044, %v1993
    %v2046 = vpop.permute.xlu0 %2045
    %2047 = vset.pattern.permute.xlu0 0
    %2048 = vperm.xlu0 %2047, %v1995
    %v2049 = vpop.permute.xlu0 %2048
    %2050 = vset.pattern.permute.xlu0 0
    %2051 = vperm.xlu0 %2050, %v1997
    %v2052 = vpop.permute.xlu0 %2051
    %2053 = vset.pattern.permute.xlu0 0
    %2054 = vperm.xlu0 %2053, %v1999
    %v2055 = vpop.permute.xlu0 %2054
    %2056 = vset.pattern.permute.xlu0 0
    %2057 = vperm.xlu0 %2056, %v2001
    %v2058 = vpop.permute.xlu0 %2057
    %2059 = vset.pattern.permute.xlu0 0
    %2060 = vperm.xlu0 %2059, %v2003
    %v2061 = vpop.permute.xlu0 %2060
    %2062 = vset.pattern.permute.xlu0 0
    %2063 = vperm.xlu0 %2062, %v2005
    %v2064 = vpop.permute.xlu0 %2063
    %2065 = vset.pattern.permute.xlu0 0
    %2066 = vperm.xlu0 %2065, %v2007
    %v2067 = vpop.permute.xlu0 %2066
    %2068 = vset.pattern.permute.xlu0 0
    %2069 = vperm.xlu0 %2068, %v2009
    %v2070 = vpop.permute.xlu0 %2069
    %2071 = vset.pattern.permute.xlu0 0
    %2072 = vperm.xlu0 %2071, %v2011
    %v2073 = vpop.permute.xlu0 %2072
    %2074 = vset.pattern.permute.xlu0 0
    %2075 = vperm.xlu0 %2074, %v2013
    %v2076 = vpop.permute.xlu0 %2075
    %2077 = vset.pattern.permute.xlu0 0
    %2078 = vperm.xlu0 %2077, %v2015
    %v2079 = vpop.permute.xlu0 %2078
    %v2080 = vlaneseq
    %v2081 = vshrl.u32 %v2080, 7
    %v2082 = vsub.s32 %v1184, %v2081
    %v2083 = vrot.slane %v2034, %v2082
    %v2084 = vlaneseq
    %v2085 = vshrl.u32 %v2084, 7
    %v2086 = vsub.s32 %v1189, %v2085
    %v2087 = vrot.slane %v2037, %v2086
    %v2088 = vsel %vm1194, %v2087, %v2083
    %v2089 = vlaneseq
    %v2090 = vshrl.u32 %v2089, 7
    %v2091 = vsub.s32 %v1184, %v2090
    %v2092 = vrot.slane %v2040, %v2091
    %v2093 = vlaneseq
    %v2094 = vshrl.u32 %v2093, 7
    %v2095 = vsub.s32 %v1189, %v2094
    %v2096 = vrot.slane %v2043, %v2095
    %v2097 = vsel %vm1194, %v2096, %v2092
    %v2098 = vlaneseq
    %v2099 = vshrl.u32 %v2098, 7
    %v2100 = vsub.s32 %v1184, %v2099
    %v2101 = vrot.slane %v2046, %v2100
    %v2102 = vlaneseq
    %v2103 = vshrl.u32 %v2102, 7
    %v2104 = vsub.s32 %v1189, %v2103
    %v2105 = vrot.slane %v2049, %v2104
    %v2106 = vsel %vm1194, %v2105, %v2101
    %v2107 = vlaneseq
    %v2108 = vshrl.u32 %v2107, 7
    %v2109 = vsub.s32 %v1184, %v2108
    %v2110 = vrot.slane %v2052, %v2109
    %v2111 = vlaneseq
    %v2112 = vshrl.u32 %v2111, 7
    %v2113 = vsub.s32 %v1189, %v2112
    %v2114 = vrot.slane %v2055, %v2113
    %v2115 = vsel %vm1194, %v2114, %v2110
    %v2116 = vlaneseq
    %v2117 = vshrl.u32 %v2116, 7
    %v2118 = vsub.s32 %v1184, %v2117
    %v2119 = vrot.slane %v2058, %v2118
    %v2120 = vlaneseq
    %v2121 = vshrl.u32 %v2120, 7
    %v2122 = vsub.s32 %v1189, %v2121
    %v2123 = vrot.slane %v2061, %v2122
    %v2124 = vsel %vm1194, %v2123, %v2119
    %v2125 = vlaneseq
    %v2126 = vshrl.u32 %v2125, 7
    %v2127 = vsub.s32 %v1184, %v2126
    %v2128 = vrot.slane %v2064, %v2127
    %v2129 = vlaneseq
    %v2130 = vshrl.u32 %v2129, 7
    %v2131 = vsub.s32 %v1189, %v2130
    %v2132 = vrot.slane %v2067, %v2131
    %v2133 = vsel %vm1194, %v2132, %v2128
    %v2134 = vlaneseq
    %v2135 = vshrl.u32 %v2134, 7
    %v2136 = vsub.s32 %v1184, %v2135
    %v2137 = vrot.slane %v2070, %v2136
    %v2138 = vlaneseq
    %v2139 = vshrl.u32 %v2138, 7
    %v2140 = vsub.s32 %v1189, %v2139
    %v2141 = vrot.slane %v2073, %v2140
    %v2142 = vsel %vm1194, %v2141, %v2137
    %v2143 = vlaneseq
    %v2144 = vshrl.u32 %v2143, 7
    %v2145 = vsub.s32 %v1184, %v2144
    %v2146 = vrot.slane %v2076, %v2145
    %v2147 = vlaneseq
    %v2148 = vshrl.u32 %v2147, 7
    %v2149 = vsub.s32 %v1189, %v2148
    %v2150 = vrot.slane %v2079, %v2149
    %v2151 = vsel %vm1194, %v2150, %v2146
    %v2152 = vsel %vm1259, %v2097, %v2088
    %v2153 = vsel %vm1261, %v2106, %v2152
    %v2154 = vsel %vm1263, %v2115, %v2153
    %v2155 = vsel %vm1265, %v2124, %v2154
    %v2156 = vsel %vm1267, %v2133, %v2155
    %v2157 = vsel %vm1269, %v2142, %v2156
    %v2158 = vsel %vm1271, %v2151, %v2157
    %v2160 = vsel %vm1274, %v2158, 0.0
    %2161 = vadd.xlane.f32.xlu0 %v2160
    %v2162 = vpop.xlane.xlu0 %2161
    %v2163 = vrcp.pop %v2162
    %v2165 = vlaneseq
    %v2166 = vshrl.u32 %v2165, 7
    %v2167 = vsub.s32 0, %v2166
    %v2168 = vrot.slane %v2163, %v2167
    %v2169 = vlaneseq
    %v2170 = vshrl.u32 %v2169, 7
    %v2171 = vsub.s32 1, %v2170
    %v2172 = vrot.slane %v2163, %v2171
    %v2173 = vlaneseq
    %v2174 = vshrl.u32 %v2173, 7
    %v2175 = vsub.s32 2, %v2174
    %v2176 = vrot.slane %v2163, %v2175
    %v2177 = vlaneseq
    %v2178 = vshrl.u32 %v2177, 7
    %v2179 = vsub.s32 3, %v2178
    %v2180 = vrot.slane %v2163, %v2179
    %v2181 = vlaneseq
    %v2182 = vshrl.u32 %v2181, 7
    %v2183 = vsub.s32 4, %v2182
    %v2184 = vrot.slane %v2163, %v2183
    %v2185 = vlaneseq
    %v2186 = vshrl.u32 %v2185, 7
    %v2187 = vsub.s32 5, %v2186
    %v2188 = vrot.slane %v2163, %v2187
    %v2189 = vlaneseq
    %v2190 = vshrl.u32 %v2189, 7
    %v2191 = vsub.s32 6, %v2190
    %v2192 = vrot.slane %v2163, %v2191
    %v2193 = vlaneseq
    %v2194 = vshrl.u32 %v2193, 7
    %v2195 = vsub.s32 7, %v2194
    %v2196 = vrot.slane %v2163, %v2195
    %v2205 = vmul.f32 %v1985, %v2168
    %v2206 = vmul.f32 %v1987, %v2168
    %v2207 = vmul.f32 %v1989, %v2172
    %v2208 = vmul.f32 %v1991, %v2172
    %v2209 = vmul.f32 %v1993, %v2176
    %v2210 = vmul.f32 %v1995, %v2176
    %v2211 = vmul.f32 %v1997, %v2180
    %v2212 = vmul.f32 %v1999, %v2180
    %v2213 = vmul.f32 %v2001, %v2184
    %v2214 = vmul.f32 %v2003, %v2184
    %v2215 = vmul.f32 %v2005, %v2188
    %v2216 = vmul.f32 %v2007, %v2188
    %v2217 = vmul.f32 %v2009, %v2192
    %v2218 = vmul.f32 %v2011, %v2192
    %v2219 = vmul.f32 %v2013, %v2196
    %v2220 = vmul.f32 %v2015, %v2196
    %2222 = vset.pattern.permute.xlu0 0
    %2223 = vperm.xlu0 %2222, %v1556
    %v2224 = vpop.permute.xlu0 %2223
    %2227 = vset.pattern.permute.xlu0 0
    %2228 = vperm.xlu0 %2227, %v1557
    %v2229 = vpop.permute.xlu0 %2228
    %2232 = vset.pattern.permute.xlu0 0
    %2233 = vperm.xlu0 %2232, %v1558
    %v2234 = vpop.permute.xlu0 %2233
    %2237 = vset.pattern.permute.xlu0 0
    %2238 = vperm.xlu0 %2237, %v1559
    %v2239 = vpop.permute.xlu0 %2238
    %2242 = vset.pattern.permute.xlu0 0
    %2243 = vperm.xlu0 %2242, %v1560
    %v2244 = vpop.permute.xlu0 %2243
    %2247 = vset.pattern.permute.xlu0 0
    %2248 = vperm.xlu0 %2247, %v1561
    %v2249 = vpop.permute.xlu0 %2248
    %2252 = vset.pattern.permute.xlu0 0
    %2253 = vperm.xlu0 %2252, %v1562
    %v2254 = vpop.permute.xlu0 %2253
    %2257 = vset.pattern.permute.xlu0 0
    %2258 = vperm.xlu0 %2257, %v1563
    %v2259 = vpop.permute.xlu0 %2258
    %2262 = vset.pattern.permute.xlu0 0
    %2263 = vperm.xlu0 %2262, %v1564
    %v2264 = vpop.permute.xlu0 %2263
    %2267 = vset.pattern.permute.xlu0 0
    %2268 = vperm.xlu0 %2267, %v1565
    %v2269 = vpop.permute.xlu0 %2268
    %2272 = vset.pattern.permute.xlu0 0
    %2273 = vperm.xlu0 %2272, %v1566
    %v2274 = vpop.permute.xlu0 %2273
    %2277 = vset.pattern.permute.xlu0 0
    %2278 = vperm.xlu0 %2277, %v1567
    %v2279 = vpop.permute.xlu0 %2278
    %2282 = vset.pattern.permute.xlu0 0
    %2283 = vperm.xlu0 %2282, %v1568
    %v2284 = vpop.permute.xlu0 %2283
    %2287 = vset.pattern.permute.xlu0 0
    %2288 = vperm.xlu0 %2287, %v1569
    %v2289 = vpop.permute.xlu0 %2288
    %2292 = vset.pattern.permute.xlu0 0
    %2293 = vperm.xlu0 %2292, %v1570
    %v2294 = vpop.permute.xlu0 %2293
    %2297 = vset.pattern.permute.xlu0 0
    %2298 = vperm.xlu0 %2297, %v1571
    %v2299 = vpop.permute.xlu0 %2298
    %v2301 = vmul.f32 %v2224, %v130
    %v2302 = vmul.f32 %v2229, %v131
    %v2303 = vmul.f32 %v2234, %v132
    %v2304 = vmul.f32 %v2239, %v133
    %v2305 = vmul.f32 %v2244, %v134
    %v2306 = vmul.f32 %v2249, %v135
    %v2307 = vmul.f32 %v2254, %v136
    %v2308 = vmul.f32 %v2259, %v137
    %v2309 = vmul.f32 %v2264, %v138
    %v2310 = vmul.f32 %v2269, %v139
    %v2311 = vmul.f32 %v2274, %v140
    %v2312 = vmul.f32 %v2279, %v141
    %v2313 = vmul.f32 %v2284, %v142
    %v2314 = vmul.f32 %v2289, %v143
    %v2315 = vmul.f32 %v2294, %v144
    %v2316 = vmul.f32 %v2299, %v145
    %v2317 = vsel %vm167, %v2301, 0.0
    %v2318 = vsel %vm167, %v2302, 0.0
    %v2319 = vadd.f32 %v2317, %v2318
    %v2320 = vrot.slane %v2319, 4
    %v2321 = vadd.f32 %v2319, %v2320
    %v2322 = vrot.slane %v2321, 2
    %v2323 = vadd.f32 %v2321, %v2322
    %v2324 = vrot.slane %v2323, 1
    %v2325 = vadd.f32 %v2323, %v2324
    %v2326 = vsel %vm167, %v2303, 0.0
    %v2327 = vsel %vm167, %v2304, 0.0
    %v2328 = vadd.f32 %v2326, %v2327
    %v2329 = vrot.slane %v2328, 4
    %v2330 = vadd.f32 %v2328, %v2329
    %v2331 = vrot.slane %v2330, 2
    %v2332 = vadd.f32 %v2330, %v2331
    %v2333 = vrot.slane %v2332, 1
    %v2334 = vadd.f32 %v2332, %v2333
    %v2335 = vsel %vm167, %v2305, 0.0
    %v2336 = vsel %vm167, %v2306, 0.0
    %v2337 = vadd.f32 %v2335, %v2336
    %v2338 = vrot.slane %v2337, 4
    %v2339 = vadd.f32 %v2337, %v2338
    %v2340 = vrot.slane %v2339, 2
    %v2341 = vadd.f32 %v2339, %v2340
    %v2342 = vrot.slane %v2341, 1
    %v2343 = vadd.f32 %v2341, %v2342
    %v2344 = vsel %vm167, %v2307, 0.0
    %v2345 = vsel %vm167, %v2308, 0.0
    %v2346 = vadd.f32 %v2344, %v2345
    %v2347 = vrot.slane %v2346, 4
    %v2348 = vadd.f32 %v2346, %v2347
    %v2349 = vrot.slane %v2348, 2
    %v2350 = vadd.f32 %v2348, %v2349
    %v2351 = vrot.slane %v2350, 1
    %v2352 = vadd.f32 %v2350, %v2351
    %v2353 = vsel %vm167, %v2309, 0.0
    %v2354 = vsel %vm167, %v2310, 0.0
    %v2355 = vadd.f32 %v2353, %v2354
    %v2356 = vrot.slane %v2355, 4
    %v2357 = vadd.f32 %v2355, %v2356
    %v2358 = vrot.slane %v2357, 2
    %v2359 = vadd.f32 %v2357, %v2358
    %v2360 = vrot.slane %v2359, 1
    %v2361 = vadd.f32 %v2359, %v2360
    %v2362 = vsel %vm167, %v2311, 0.0
    %v2363 = vsel %vm167, %v2312, 0.0
    %v2364 = vadd.f32 %v2362, %v2363
    %v2365 = vrot.slane %v2364, 4
    %v2366 = vadd.f32 %v2364, %v2365
    %v2367 = vrot.slane %v2366, 2
    %v2368 = vadd.f32 %v2366, %v2367
    %v2369 = vrot.slane %v2368, 1
    %v2370 = vadd.f32 %v2368, %v2369
    %v2371 = vsel %vm167, %v2313, 0.0
    %v2372 = vsel %vm167, %v2314, 0.0
    %v2373 = vadd.f32 %v2371, %v2372
    %v2374 = vrot.slane %v2373, 4
    %v2375 = vadd.f32 %v2373, %v2374
    %v2376 = vrot.slane %v2375, 2
    %v2377 = vadd.f32 %v2375, %v2376
    %v2378 = vrot.slane %v2377, 1
    %v2379 = vadd.f32 %v2377, %v2378
    %v2380 = vsel %vm167, %v2315, 0.0
    %v2381 = vsel %vm167, %v2316, 0.0
    %v2382 = vadd.f32 %v2380, %v2381
    %v2383 = vrot.slane %v2382, 4
    %v2384 = vadd.f32 %v2382, %v2383
    %v2385 = vrot.slane %v2384, 2
    %v2386 = vadd.f32 %v2384, %v2385
    %v2387 = vrot.slane %v2386, 1
    %v2388 = vadd.f32 %v2386, %v2387
    %v2389 = vld [vmem:[#allocation10 + $0x10] sm:$0xff]
    %v2390 = vld [vmem:[#allocation10 + $0x30] sm:$0xff]
    %v2391 = vld [vmem:[#allocation10 + $0x50] sm:$0xff]
    %v2392 = vld [vmem:[#allocation10 + $0x70] sm:$0xff]
    %v2393 = vld [vmem:[#allocation10 + $0x90] ss:$0 sm:$0xff]
    %v2402 = vsel %vm1259, %v2334, %v2325
    %v2403 = vsel %vm1261, %v2343, %v2402
    %v2404 = vsel %vm1263, %v2352, %v2403
    %v2405 = vsel %vm1265, %v2361, %v2404
    %v2406 = vsel %vm1267, %v2370, %v2405
    %v2407 = vsel %vm1269, %v2379, %v2406
    %v2408 = vsel %vm1271, %v2388, %v2407
    %v2409 = vsel %vm167, %v2408, 0
    %2411 = vmatprep.subr.mxu0 0.0
    %2412 = vmatpush1.msra.mxu0 0.0
    %2413 = vmatprep.subr.mxu0 0.0
    %2414 = vmatpush1.msra.mxu0 0.0
    %2415 = vmatprep.subr.mxu0 0.0
    %2416 = vmatpush1.msra.mxu0 0.0
    %2417 = vmatprep.subr.mxu0 0.0
    %2418 = vmatpush1.msra.mxu0 0.0
    %2419 = vmatprep.subr.mxu0 0.0
    %2420 = vmatpush1.msra.mxu0 0.0
    %2421 = vmatprep.subr.mxu0 0.0
    %2422 = vmatpush1.msra.mxu0 0.0
    %2423 = vmatprep.subr.mxu0 0.0
    %2424 = vmatpush1.msra.mxu0 0.0
    %2425 = vmatprep.subr.mxu0 0.0
    %2426 = vmatpush1.msra.mxu0 0.0
    %2427 = vmatprep.subr.mxu0 0.0
    %2428 = vmatpush1.msra.mxu0 0.0
    %2429 = vmatprep.subr.mxu0 0.0
    %2430 = vmatpush1.msra.mxu0 0.0
    %2431 = vmatprep.subr.mxu0 0.0
    %2432 = vmatpush1.msra.mxu0 0.0
    %2433 = vmatprep.subr.mxu0 0.0
    %2434 = vmatpush1.msra.mxu0 0.0
    %2435 = vmatprep.subr.mxu0 0.0
    %v2436 = vand.u32 %v2392, 4294901760
    %2437 = vmatpush1.msra.mxu0 %v2436
    %2438 = vmatprep.subr.mxu0 0.0
    %v2439 = vand.u32 %v2391, 4294901760
    %2440 = vmatpush1.msra.mxu0 %v2439
    %2441 = vmatprep.subr.mxu0 0.0
    %v2442 = vand.u32 %v2390, 4294901760
    %2443 = vmatpush1.msra.mxu0 %v2442
    %2444 = vmatprep.subr.mxu0 0.0
    %v2445 = vand.u32 %v2389, 4294901760
    %2446 = vmatpush1.msra.mxu0 %v2445
    %2447 = vmatprep.subr.mxu0 0.0
    %2448 = vmatpush2.msra.mxu0 0.0
    %2449 = vmatprep.subr.mxu0 0.0
    %2450 = vmatpush2.msra.mxu0 0.0
    %2451 = vmatprep.subr.mxu0 0.0
    %2452 = vmatpush2.msra.mxu0 0.0
    %2453 = vmatprep.subr.mxu0 0.0
    %2454 = vmatpush2.msra.mxu0 0.0
    %2455 = vmatprep.subr.mxu0 0.0
    %2456 = vmatpush2.msra.mxu0 0.0
    %2457 = vmatprep.subr.mxu0 0.0
    %2458 = vmatpush2.msra.mxu0 0.0
    %2459 = vmatprep.subr.mxu0 0.0
    %2460 = vmatpush2.msra.mxu0 0.0
    %2461 = vmatprep.subr.mxu0 0.0
    %2462 = vmatpush2.msra.mxu0 0.0
    %2463 = vmatprep.subr.mxu0 0.0
    %2464 = vmatpush2.msra.mxu0 0.0
    %2465 = vmatprep.subr.mxu0 0.0
    %2466 = vmatpush2.msra.mxu0 0.0
    %2467 = vmatprep.subr.mxu0 0.0
    %2468 = vmatpush2.msra.mxu0 0.0
    %2469 = vmatprep.subr.mxu0 0.0
    %2470 = vmatpush2.msra.mxu0 0.0
    %2471 = vmatprep.subr.mxu0 0.0
    %2472 = vmatpush2.msra.mxu0 0.0
    %2473 = vmatprep.subr.mxu0 0.0
    %2474 = vmatpush2.msra.mxu0 0.0
    %2475 = vmatprep.subr.mxu0 0.0
    %2476 = vmatpush2.msra.mxu0 0.0
    %2477 = vmatprep.subr.mxu0 0.0
    %2478 = vmatpush2.msra.mxu0 0.0
    %2479 = vmatprep.mubr.f32.mxu0 0.0
    %v2480 = vand.u32 %v2409, 4294901760
    %v2481 = vsub.f32 %v2409, %v2480
    %v2482 = vand.u32 %v2481, 4294901760
    %v2483 = vsub.f32 %v2481, %v2482
    %v2484 = vand.u32 %v2483, 4294901760
    %2485 = vmatmul.mubr.f32.gmra.mxu0 %v2484
    %v2486 = vpop.f32.mrf.mxu0
    %v2487 = vadd.f32 %v2393, %v2486
    %v2488 = vpop.f32.mrf.mxu0
    %2489 = vdwg.mxu0
    %2490 = vmatprep.subr.mxu0 0.0
    %2491 = vmatpush1.msra.mxu0 0.0
    %2492 = vmatprep.subr.mxu0 0.0
    %2493 = vmatpush1.msra.mxu0 0.0
    %2494 = vmatprep.subr.mxu0 0.0
    %2495 = vmatpush1.msra.mxu0 0.0
    %2496 = vmatprep.subr.mxu0 0.0
    %2497 = vmatpush1.msra.mxu0 0.0
    %2498 = vmatprep.subr.mxu0 0.0
    %2499 = vmatpush1.msra.mxu0 0.0
    %2500 = vmatprep.subr.mxu0 0.0
    %2501 = vmatpush1.msra.mxu0 0.0
    %2502 = vmatprep.subr.mxu0 0.0
    %2503 = vmatpush1.msra.mxu0 0.0
    %2504 = vmatprep.subr.mxu0 0.0
    %2505 = vmatpush1.msra.mxu0 0.0
    %2506 = vmatprep.subr.mxu0 0.0
    %2507 = vmatpush1.msra.mxu0 0.0
    %2508 = vmatprep.subr.mxu0 0.0
    %2509 = vmatpush1.msra.mxu0 0.0
    %2510 = vmatprep.subr.mxu0 0.0
    %2511 = vmatpush1.msra.mxu0 0.0
    %2512 = vmatprep.subr.mxu0 0.0
    %2513 = vmatpush1.msra.mxu0 0.0
    %2514 = vmatprep.subr.mxu0 0.0
    %v2515 = vand.u32 %v2392, 4294901760
    %v2516 = vsub.f32 %v2392, %v2515
    %v2517 = vand.u32 %v2516, 4294901760
    %v2518 = vsub.f32 %v2516, %v2517
    %v2519 = vand.u32 %v2518, 4294901760
    %2520 = vmatpush1.msra.mxu0 %v2519
    %2521 = vmatprep.subr.mxu0 0.0
    %v2522 = vand.u32 %v2391, 4294901760
    %v2523 = vsub.f32 %v2391, %v2522
    %v2524 = vand.u32 %v2523, 4294901760
    %v2525 = vsub.f32 %v2523, %v2524
    %v2526 = vand.u32 %v2525, 4294901760
    %2527 = vmatpush1.msra.mxu0 %v2526
    %2528 = vmatprep.subr.mxu0 0.0
    %v2529 = vand.u32 %v2390, 4294901760
    %v2530 = vsub.f32 %v2390, %v2529
    %v2531 = vand.u32 %v2530, 4294901760
    %v2532 = vsub.f32 %v2530, %v2531
    %v2533 = vand.u32 %v2532, 4294901760
    %2534 = vmatpush1.msra.mxu0 %v2533
    %2535 = vmatprep.subr.mxu0 0.0
    %v2536 = vand.u32 %v2389, 4294901760
    %v2537 = vsub.f32 %v2389, %v2536
    %v2538 = vand.u32 %v2537, 4294901760
    %v2539 = vsub.f32 %v2537, %v2538
    %v2540 = vand.u32 %v2539, 4294901760
    %2541 = vmatpush1.msra.mxu0 %v2540
    %2542 = vmatprep.subr.mxu0 0.0
    %2543 = vmatpush2.msra.mxu0 0.0
    %2544 = vmatprep.subr.mxu0 0.0
    %2545 = vmatpush2.msra.mxu0 0.0
    %2546 = vmatprep.subr.mxu0 0.0
    %2547 = vmatpush2.msra.mxu0 0.0
    %2548 = vmatprep.subr.mxu0 0.0
    %2549 = vmatpush2.msra.mxu0 0.0
    %2550 = vmatprep.subr.mxu0 0.0
    %2551 = vmatpush2.msra.mxu0 0.0
    %2552 = vmatprep.subr.mxu0 0.0
    %2553 = vmatpush2.msra.mxu0 0.0
    %2554 = vmatprep.subr.mxu0 0.0
    %2555 = vmatpush2.msra.mxu0 0.0
    %2556 = vmatprep.subr.mxu0 0.0
    %2557 = vmatpush2.msra.mxu0 0.0
    %2558 = vmatprep.subr.mxu0 0.0
    %2559 = vmatpush2.msra.mxu0 0.0
    %2560 = vmatprep.subr.mxu0 0.0
    %2561 = vmatpush2.msra.mxu0 0.0
    %2562 = vmatprep.subr.mxu0 0.0
    %2563 = vmatpush2.msra.mxu0 0.0
    %2564 = vmatprep.subr.mxu0 0.0
    %2565 = vmatpush2.msra.mxu0 0.0
    %2566 = vmatprep.subr.mxu0 0.0
    %2567 = vmatpush2.msra.mxu0 0.0
    %2568 = vmatprep.subr.mxu0 0.0
    %2569 = vmatpush2.msra.mxu0 0.0
    %2570 = vmatprep.subr.mxu0 0.0
    %2571 = vmatpush2.msra.mxu0 0.0
    %2572 = vmatprep.subr.mxu0 0.0
    %2573 = vmatpush2.msra.mxu0 0.0
    %2574 = vmatprep.mubr.f32.mxu0 0.0
    %v2575 = vand.u32 %v2409, 4294901760
    %2576 = vmatmul.mubr.f32.gmra.mxu0 %v2575
    %v2577 = vpop.f32.mrf.mxu0
    %v2578 = vadd.f32 %v2487, %v2577
    %v2579 = vpop.f32.mrf.mxu0
    %2580 = vdwg.mxu0
    %2581 = vmatprep.subr.mxu0 0.0
    %2582 = vmatpush1.msra.mxu0 0.0
    %2583 = vmatprep.subr.mxu0 0.0
    %2584 = vmatpush1.msra.mxu0 0.0
    %2585 = vmatprep.subr.mxu0 0.0
    %2586 = vmatpush1.msra.mxu0 0.0
    %2587 = vmatprep.subr.mxu0 0.0
    %2588 = vmatpush1.msra.mxu0 0.0
    %2589 = vmatprep.subr.mxu0 0.0
    %2590 = vmatpush1.msra.mxu0 0.0
    %2591 = vmatprep.subr.mxu0 0.0
    %2592 = vmatpush1.msra.mxu0 0.0
    %2593 = vmatprep.subr.mxu0 0.0
    %2594 = vmatpush1.msra.mxu0 0.0
    %2595 = vmatprep.subr.mxu0 0.0
    %2596 = vmatpush1.msra.mxu0 0.0
    %2597 = vmatprep.subr.mxu0 0.0
    %2598 = vmatpush1.msra.mxu0 0.0
    %2599 = vmatprep.subr.mxu0 0.0
    %2600 = vmatpush1.msra.mxu0 0.0
    %2601 = vmatprep.subr.mxu0 0.0
    %2602 = vmatpush1.msra.mxu0 0.0
    %2603 = vmatprep.subr.mxu0 0.0
    %2604 = vmatpush1.msra.mxu0 0.0
    %2605 = vmatprep.subr.mxu0 0.0
    %v2606 = vand.u32 %v2392, 4294901760
    %v2607 = vsub.f32 %v2392, %v2606
    %2608 = vmatpush1.msra.mxu0 %v2607
    %2609 = vmatprep.subr.mxu0 0.0
    %v2610 = vand.u32 %v2391, 4294901760
    %v2611 = vsub.f32 %v2391, %v2610
    %2612 = vmatpush1.msra.mxu0 %v2611
    %2613 = vmatprep.subr.mxu0 0.0
    %v2614 = vand.u32 %v2390, 4294901760
    %v2615 = vsub.f32 %v2390, %v2614
    %2616 = vmatpush1.msra.mxu0 %v2615
    %2617 = vmatprep.subr.mxu0 0.0
    %v2618 = vand.u32 %v2389, 4294901760
    %v2619 = vsub.f32 %v2389, %v2618
    %2620 = vmatpush1.msra.mxu0 %v2619
    %2621 = vmatprep.subr.mxu0 0.0
    %2622 = vmatpush2.msra.mxu0 0.0
    %2623 = vmatprep.subr.mxu0 0.0
    %2624 = vmatpush2.msra.mxu0 0.0
    %2625 = vmatprep.subr.mxu0 0.0
    %2626 = vmatpush2.msra.mxu0 0.0
    %2627 = vmatprep.subr.mxu0 0.0
    %2628 = vmatpush2.msra.mxu0 0.0
    %2629 = vmatprep.subr.mxu0 0.0
    %2630 = vmatpush2.msra.mxu0 0.0
    %2631 = vmatprep.subr.mxu0 0.0
    %2632 = vmatpush2.msra.mxu0 0.0
    %2633 = vmatprep.subr.mxu0 0.0
    %2634 = vmatpush2.msra.mxu0 0.0
    %2635 = vmatprep.subr.mxu0 0.0
    %2636 = vmatpush2.msra.mxu0 0.0
    %2637 = vmatprep.subr.mxu0 0.0
    %2638 = vmatpush2.msra.mxu0 0.0
    %2639 = vmatprep.subr.mxu0 0.0
    %2640 = vmatpush2.msra.mxu0 0.0
    %2641 = vmatprep.subr.mxu0 0.0
    %2642 = vmatpush2.msra.mxu0 0.0
    %2643 = vmatprep.subr.mxu0 0.0
    %2644 = vmatpush2.msra.mxu0 0.0
    %2645 = vmatprep.subr.mxu0 0.0
    %2646 = vmatpush2.msra.mxu0 0.0
    %2647 = vmatprep.subr.mxu0 0.0
    %2648 = vmatpush2.msra.mxu0 0.0
    %2649 = vmatprep.subr.mxu0 0.0
    %2650 = vmatpush2.msra.mxu0 0.0
    %2651 = vmatprep.subr.mxu0 0.0
    %2652 = vmatpush2.msra.mxu0 0.0
    %2653 = vmatprep.mubr.f32.mxu0 0.0
    %v2654 = vand.u32 %v2409, 4294901760
    %v2655 = vsub.f32 %v2409, %v2654
    %2656 = vmatmul.mubr.f32.gmra.mxu0 %v2655
    %v2657 = vpop.f32.mrf.mxu0
    %v2658 = vadd.f32 %v2578, %v2657
    %v2659 = vpop.f32.mrf.mxu0
    %2660 = vdwg.mxu0
    %2661 = vmatprep.subr.mxu0 0.0
    %2662 = vmatpush1.msra.mxu0 0.0
    %2663 = vmatprep.subr.mxu0 0.0
    %2664 = vmatpush1.msra.mxu0 0.0
    %2665 = vmatprep.subr.mxu0 0.0
    %2666 = vmatpush1.msra.mxu0 0.0
    %2667 = vmatprep.subr.mxu0 0.0
    %2668 = vmatpush1.msra.mxu0 0.0
    %2669 = vmatprep.subr.mxu0 0.0
    %2670 = vmatpush1.msra.mxu0 0.0
    %2671 = vmatprep.subr.mxu0 0.0
    %2672 = vmatpush1.msra.mxu0 0.0
    %2673 = vmatprep.subr.mxu0 0.0
    %2674 = vmatpush1.msra.mxu0 0.0
    %2675 = vmatprep.subr.mxu0 0.0
    %2676 = vmatpush1.msra.mxu0 0.0
    %2677 = vmatprep.subr.mxu0 0.0
    %2678 = vmatpush1.msra.mxu0 0.0
    %2679 = vmatprep.subr.mxu0 0.0
    %2680 = vmatpush1.msra.mxu0 0.0
    %2681 = vmatprep.subr.mxu0 0.0
    %2682 = vmatpush1.msra.mxu0 0.0
    %2683 = vmatprep.subr.mxu0 0.0
    %2684 = vmatpush1.msra.mxu0 0.0
    %2685 = vmatprep.subr.mxu0 0.0
    %v2686 = vand.u32 %v2392, 4294901760
    %2687 = vmatpush1.msra.mxu0 %v2686
    %2688 = vmatprep.subr.mxu0 0.0
    %v2689 = vand.u32 %v2391, 4294901760
    %2690 = vmatpush1.msra.mxu0 %v2689
    %2691 = vmatprep.subr.mxu0 0.0
    %v2692 = vand.u32 %v2390, 4294901760
    %2693 = vmatpush1.msra.mxu0 %v2692
    %2694 = vmatprep.subr.mxu0 0.0
    %v2695 = vand.u32 %v2389, 4294901760
    %2696 = vmatpush1.msra.mxu0 %v2695
    %2697 = vmatprep.subr.mxu0 0.0
    %2698 = vmatpush2.msra.mxu0 0.0
    %2699 = vmatprep.subr.mxu0 0.0
    %2700 = vmatpush2.msra.mxu0 0.0
    %2701 = vmatprep.subr.mxu0 0.0
    %2702 = vmatpush2.msra.mxu0 0.0
    %2703 = vmatprep.subr.mxu0 0.0
    %2704 = vmatpush2.msra.mxu0 0.0
    %2705 = vmatprep.subr.mxu0 0.0
    %2706 = vmatpush2.msra.mxu0 0.0
    %2707 = vmatprep.subr.mxu0 0.0
    %2708 = vmatpush2.msra.mxu0 0.0
    %2709 = vmatprep.subr.mxu0 0.0
    %2710 = vmatpush2.msra.mxu0 0.0
    %2711 = vmatprep.subr.mxu0 0.0
    %2712 = vmatpush2.msra.mxu0 0.0
    %2713 = vmatprep.subr.mxu0 0.0
    %2714 = vmatpush2.msra.mxu0 0.0
    %2715 = vmatprep.subr.mxu0 0.0
    %2716 = vmatpush2.msra.mxu0 0.0
    %2717 = vmatprep.subr.mxu0 0.0
    %2718 = vmatpush2.msra.mxu0 0.0
    %2719 = vmatprep.subr.mxu0 0.0
    %2720 = vmatpush2.msra.mxu0 0.0
    %2721 = vmatprep.subr.mxu0 0.0
    %2722 = vmatpush2.msra.mxu0 0.0
    %2723 = vmatprep.subr.mxu0 0.0
    %2724 = vmatpush2.msra.mxu0 0.0
    %2725 = vmatprep.subr.mxu0 0.0
    %2726 = vmatpush2.msra.mxu0 0.0
    %2727 = vmatprep.subr.mxu0 0.0
    %2728 = vmatpush2.msra.mxu0 0.0
    %2729 = vmatprep.mubr.f32.mxu0 0.0
    %v2730 = vand.u32 %v2409, 4294901760
    %v2731 = vsub.f32 %v2409, %v2730
    %v2732 = vand.u32 %v2731, 4294901760
    %2733 = vmatmul.mubr.f32.gmra.mxu0 %v2732
    %v2734 = vpop.f32.mrf.mxu0
    %v2735 = vadd.f32 %v2658, %v2734
    %v2736 = vpop.f32.mrf.mxu0
    %2737 = vdwg.mxu0
    %2738 = vmatprep.subr.mxu0 0.0
    %2739 = vmatpush1.msra.mxu0 0.0
    %2740 = vmatprep.subr.mxu0 0.0
    %2741 = vmatpush1.msra.mxu0 0.0
    %2742 = vmatprep.subr.mxu0 0.0
    %2743 = vmatpush1.msra.mxu0 0.0
    %2744 = vmatprep.subr.mxu0 0.0
    %2745 = vmatpush1.msra.mxu0 0.0
    %2746 = vmatprep.subr.mxu0 0.0
    %2747 = vmatpush1.msra.mxu0 0.0
    %2748 = vmatprep.subr.mxu0 0.0
    %2749 = vmatpush1.msra.mxu0 0.0
    %2750 = vmatprep.subr.mxu0 0.0
    %2751 = vmatpush1.msra.mxu0 0.0
    %2752 = vmatprep.subr.mxu0 0.0
    %2753 = vmatpush1.msra.mxu0 0.0
    %2754 = vmatprep.subr.mxu0 0.0
    %2755 = vmatpush1.msra.mxu0 0.0
    %2756 = vmatprep.subr.mxu0 0.0
    %2757 = vmatpush1.msra.mxu0 0.0
    %2758 = vmatprep.subr.mxu0 0.0
    %2759 = vmatpush1.msra.mxu0 0.0
    %2760 = vmatprep.subr.mxu0 0.0
    %2761 = vmatpush1.msra.mxu0 0.0
    %2762 = vmatprep.subr.mxu0 0.0
    %v2763 = vand.u32 %v2392, 4294901760
    %v2764 = vsub.f32 %v2392, %v2763
    %v2765 = vand.u32 %v2764, 4294901760
    %2766 = vmatpush1.msra.mxu0 %v2765
    %2767 = vmatprep.subr.mxu0 0.0
    %v2768 = vand.u32 %v2391, 4294901760
    %v2769 = vsub.f32 %v2391, %v2768
    %v2770 = vand.u32 %v2769, 4294901760
    %2771 = vmatpush1.msra.mxu0 %v2770
    %2772 = vmatprep.subr.mxu0 0.0
    %v2773 = vand.u32 %v2390, 4294901760
    %v2774 = vsub.f32 %v2390, %v2773
    %v2775 = vand.u32 %v2774, 4294901760
    %2776 = vmatpush1.msra.mxu0 %v2775
    %2777 = vmatprep.subr.mxu0 0.0
    %v2778 = vand.u32 %v2389, 4294901760
    %v2779 = vsub.f32 %v2389, %v2778
    %v2780 = vand.u32 %v2779, 4294901760
    %2781 = vmatpush1.msra.mxu0 %v2780
    %2782 = vmatprep.subr.mxu0 0.0
    %2783 = vmatpush2.msra.mxu0 0.0
    %2784 = vmatprep.subr.mxu0 0.0
    %2785 = vmatpush2.msra.mxu0 0.0
    %2786 = vmatprep.subr.mxu0 0.0
    %2787 = vmatpush2.msra.mxu0 0.0
    %2788 = vmatprep.subr.mxu0 0.0
    %2789 = vmatpush2.msra.mxu0 0.0
    %2790 = vmatprep.subr.mxu0 0.0
    %2791 = vmatpush2.msra.mxu0 0.0
    %2792 = vmatprep.subr.mxu0 0.0
    %2793 = vmatpush2.msra.mxu0 0.0
    %2794 = vmatprep.subr.mxu0 0.0
    %2795 = vmatpush2.msra.mxu0 0.0
    %2796 = vmatprep.subr.mxu0 0.0
    %2797 = vmatpush2.msra.mxu0 0.0
    %2798 = vmatprep.subr.mxu0 0.0
    %2799 = vmatpush2.msra.mxu0 0.0
    %2800 = vmatprep.subr.mxu0 0.0
    %2801 = vmatpush2.msra.mxu0 0.0
    %2802 = vmatprep.subr.mxu0 0.0
    %2803 = vmatpush2.msra.mxu0 0.0
    %2804 = vmatprep.subr.mxu0 0.0
    %2805 = vmatpush2.msra.mxu0 0.0
    %2806 = vmatprep.subr.mxu0 0.0
    %2807 = vmatpush2.msra.mxu0 0.0
    %2808 = vmatprep.subr.mxu0 0.0
    %2809 = vmatpush2.msra.mxu0 0.0
    %2810 = vmatprep.subr.mxu0 0.0
    %2811 = vmatpush2.msra.mxu0 0.0
    %2812 = vmatprep.subr.mxu0 0.0
    %2813 = vmatpush2.msra.mxu0 0.0
    %2814 = vmatprep.mubr.f32.mxu0 0.0
    %v2815 = vand.u32 %v2409, 4294901760
    %2816 = vmatmul.mubr.f32.gmra.mxu0 %v2815
    %v2817 = vpop.f32.mrf.mxu0
    %v2818 = vadd.f32 %v2735, %v2817
    %v2819 = vpop.f32.mrf.mxu0
    %2820 = vdwg.mxu0
    %2821 = vmatprep.subr.mxu0 0.0
    %2822 = vmatpush1.msra.mxu0 0.0
    %2823 = vmatprep.subr.mxu0 0.0
    %2824 = vmatpush1.msra.mxu0 0.0
    %2825 = vmatprep.subr.mxu0 0.0
    %2826 = vmatpush1.msra.mxu0 0.0
    %2827 = vmatprep.subr.mxu0 0.0
    %2828 = vmatpush1.msra.mxu0 0.0
    %2829 = vmatprep.subr.mxu0 0.0
    %2830 = vmatpush1.msra.mxu0 0.0
    %2831 = vmatprep.subr.mxu0 0.0
    %2832 = vmatpush1.msra.mxu0 0.0
    %2833 = vmatprep.subr.mxu0 0.0
    %2834 = vmatpush1.msra.mxu0 0.0
    %2835 = vmatprep.subr.mxu0 0.0
    %2836 = vmatpush1.msra.mxu0 0.0
    %2837 = vmatprep.subr.mxu0 0.0
    %2838 = vmatpush1.msra.mxu0 0.0
    %2839 = vmatprep.subr.mxu0 0.0
    %2840 = vmatpush1.msra.mxu0 0.0
    %2841 = vmatprep.subr.mxu0 0.0
    %2842 = vmatpush1.msra.mxu0 0.0
    %2843 = vmatprep.subr.mxu0 0.0
    %2844 = vmatpush1.msra.mxu0 0.0
    %2845 = vmatprep.subr.mxu0 0.0
    %v2846 = vand.u32 %v2392, 4294901760
    %2847 = vmatpush1.msra.mxu0 %v2846
    %2848 = vmatprep.subr.mxu0 0.0
    %v2849 = vand.u32 %v2391, 4294901760
    %2850 = vmatpush1.msra.mxu0 %v2849
    %2851 = vmatprep.subr.mxu0 0.0
    %v2852 = vand.u32 %v2390, 4294901760
    %2853 = vmatpush1.msra.mxu0 %v2852
    %2854 = vmatprep.subr.mxu0 0.0
    %v2855 = vand.u32 %v2389, 4294901760
    %2856 = vmatpush1.msra.mxu0 %v2855
    %2857 = vmatprep.subr.mxu0 0.0
    %2858 = vmatpush2.msra.mxu0 0.0
    %2859 = vmatprep.subr.mxu0 0.0
    %2860 = vmatpush2.msra.mxu0 0.0
    %2861 = vmatprep.subr.mxu0 0.0
    %2862 = vmatpush2.msra.mxu0 0.0
    %2863 = vmatprep.subr.mxu0 0.0
    %2864 = vmatpush2.msra.mxu0 0.0
    %2865 = vmatprep.subr.mxu0 0.0
    %2866 = vmatpush2.msra.mxu0 0.0
    %2867 = vmatprep.subr.mxu0 0.0
    %2868 = vmatpush2.msra.mxu0 0.0
    %2869 = vmatprep.subr.mxu0 0.0
    %2870 = vmatpush2.msra.mxu0 0.0
    %2871 = vmatprep.subr.mxu0 0.0
    %2872 = vmatpush2.msra.mxu0 0.0
    %2873 = vmatprep.subr.mxu0 0.0
    %2874 = vmatpush2.msra.mxu0 0.0
    %2875 = vmatprep.subr.mxu0 0.0
    %2876 = vmatpush2.msra.mxu0 0.0
    %2877 = vmatprep.subr.mxu0 0.0
    %2878 = vmatpush2.msra.mxu0 0.0
    %2879 = vmatprep.subr.mxu0 0.0
    %2880 = vmatpush2.msra.mxu0 0.0
    %2881 = vmatprep.subr.mxu0 0.0
    %2882 = vmatpush2.msra.mxu0 0.0
    %2883 = vmatprep.subr.mxu0 0.0
    %2884 = vmatpush2.msra.mxu0 0.0
    %2885 = vmatprep.subr.mxu0 0.0
    %2886 = vmatpush2.msra.mxu0 0.0
    %2887 = vmatprep.subr.mxu0 0.0
    %2888 = vmatpush2.msra.mxu0 0.0
    %2889 = vmatprep.mubr.f32.mxu0 0.0
    %v2890 = vand.u32 %v2409, 4294901760
    %2891 = vmatmul.mubr.f32.gmra.mxu0 %v2890
    %v2892 = vpop.f32.mrf.mxu0
    %v2893 = vadd.f32 %v2818, %v2892
    %v2894 = vpop.f32.mrf.mxu0
    %2895 = vdwg.mxu0
    %2896 = vrot.lane.b32.xlu0 %v710, 96
    %v2897 = vpop.permute.xlu0 %2896
    %v2899 = vadd.f32 %v2893, %v2897
    %v2900 = vxor.u32 %v2899, 2147483648
    %v2901 = vmul.f32 %v2900, 1.442695
    %v2902 = vpow.pop %v2901
    %v2903 = vadd.f32 %v2902, 1.0
    %v2904 = vrcp.pop %v2903
    %v2905 = vmul.f32 1.0, %v2904
    %2906 = vrot.lane.b32.xlu0 %v710, 32
    %v2907 = vpop.permute.xlu0 %2906
    %v2909 = vmul.f32 %v2905, %v2907
    %2911 = vrot.lane.b32.xlu0 %v2909, 64
    %v2912 = vpop.permute.xlu0 %2911
    %v2914 = vadd.f32 %v2893, %v2912
    %v2915 = vtanh.pop %v2914
    %v2916 = vsub.f32 1.0, %v2905
    %2918 = vrot.lane.b32.xlu0 %v2915, 96
    %v2919 = vpop.permute.xlu0 %2918
    %v2921 = vmul.f32 %v2916, %v2919
    %2922 = vrot.lane.b32.xlu0 %v113, 32
    %v2923 = vpop.permute.xlu0 %2922
    %v2925 = vmul.f32 %v2905, %v2923
    %v2926 = vadd.f32 %v2921, %v2925
    %v2927 = vld [vmem:[#allocation10 + $0x18] sm:$0xff]
    %v2928 = vld [vmem:[#allocation10 + $0x38] sm:$0xff]
    %v2929 = vld [vmem:[#allocation10 + $0x58] sm:$0xff]
    %v2930 = vld [vmem:[#allocation10 + $0x78] sm:$0xff]
    %v2931 = vld [vmem:[#allocation10 + $0x98] ss:$0 sm:$0xff]
    %2933 = vrot.lane.b32.xlu0 %v2926, 96
    %v2934 = vpop.permute.xlu0 %2933
    %v2935 = vsel %vm167, %v2934, 0
    %2937 = vmatprep.subr.mxu0 0.0
    %2938 = vmatpush1.msra.mxu0 0.0
    %2939 = vmatprep.subr.mxu0 0.0
    %2940 = vmatpush1.msra.mxu0 0.0
    %2941 = vmatprep.subr.mxu0 0.0
    %2942 = vmatpush1.msra.mxu0 0.0
    %2943 = vmatprep.subr.mxu0 0.0
    %2944 = vmatpush1.msra.mxu0 0.0
    %2945 = vmatprep.subr.mxu0 0.0
    %2946 = vmatpush1.msra.mxu0 0.0
    %2947 = vmatprep.subr.mxu0 0.0
    %2948 = vmatpush1.msra.mxu0 0.0
    %2949 = vmatprep.subr.mxu0 0.0
    %2950 = vmatpush1.msra.mxu0 0.0
    %2951 = vmatprep.subr.mxu0 0.0
    %2952 = vmatpush1.msra.mxu0 0.0
    %2953 = vmatprep.subr.mxu0 0.0
    %2954 = vmatpush1.msra.mxu0 0.0
    %2955 = vmatprep.subr.mxu0 0.0
    %2956 = vmatpush1.msra.mxu0 0.0
    %2957 = vmatprep.subr.mxu0 0.0
    %2958 = vmatpush1.msra.mxu0 0.0
    %2959 = vmatprep.subr.mxu0 0.0
    %2960 = vmatpush1.msra.mxu0 0.0
    %2961 = vmatprep.subr.mxu0 0.0
    %v2962 = vand.u32 %v2930, 4294901760
    %2963 = vmatpush1.msra.mxu0 %v2962
    %2964 = vmatprep.subr.mxu0 0.0
    %v2965 = vand.u32 %v2929, 4294901760
    %2966 = vmatpush1.msra.mxu0 %v2965
    %2967 = vmatprep.subr.mxu0 0.0
    %v2968 = vand.u32 %v2928, 4294901760
    %2969 = vmatpush1.msra.mxu0 %v2968
    %2970 = vmatprep.subr.mxu0 0.0
    %v2971 = vand.u32 %v2927, 4294901760
    %2972 = vmatpush1.msra.mxu0 %v2971
    %2973 = vmatprep.subr.mxu0 0.0
    %2974 = vmatpush2.msra.mxu0 0.0
    %2975 = vmatprep.subr.mxu0 0.0
    %2976 = vmatpush2.msra.mxu0 0.0
    %2977 = vmatprep.subr.mxu0 0.0
    %2978 = vmatpush2.msra.mxu0 0.0
    %2979 = vmatprep.subr.mxu0 0.0
    %2980 = vmatpush2.msra.mxu0 0.0
    %2981 = vmatprep.subr.mxu0 0.0
    %2982 = vmatpush2.msra.mxu0 0.0
    %2983 = vmatprep.subr.mxu0 0.0
    %2984 = vmatpush2.msra.mxu0 0.0
    %2985 = vmatprep.subr.mxu0 0.0
    %2986 = vmatpush2.msra.mxu0 0.0
    %2987 = vmatprep.subr.mxu0 0.0
    %2988 = vmatpush2.msra.mxu0 0.0
    %2989 = vmatprep.subr.mxu0 0.0
    %2990 = vmatpush2.msra.mxu0 0.0
    %2991 = vmatprep.subr.mxu0 0.0
    %2992 = vmatpush2.msra.mxu0 0.0
    %2993 = vmatprep.subr.mxu0 0.0
    %2994 = vmatpush2.msra.mxu0 0.0
    %2995 = vmatprep.subr.mxu0 0.0
    %2996 = vmatpush2.msra.mxu0 0.0
    %2997 = vmatprep.subr.mxu0 0.0
    %2998 = vmatpush2.msra.mxu0 0.0
    %2999 = vmatprep.subr.mxu0 0.0
    %3000 = vmatpush2.msra.mxu0 0.0
    %3001 = vmatprep.subr.mxu0 0.0
    %3002 = vmatpush2.msra.mxu0 0.0
    %3003 = vmatprep.subr.mxu0 0.0
    %3004 = vmatpush2.msra.mxu0 0.0
    %3005 = vmatprep.mubr.f32.mxu0 0.0
    %v3006 = vand.u32 %v2935, 4294901760
    %v3007 = vsub.f32 %v2935, %v3006
    %v3008 = vand.u32 %v3007, 4294901760
    %v3009 = vsub.f32 %v3007, %v3008
    %v3010 = vand.u32 %v3009, 4294901760
    %3011 = vmatmul.mubr.f32.gmra.mxu0 %v3010
    %v3012 = vpop.f32.mrf.mxu0
    %v3013 = vadd.f32 %v2931, %v3012
    %v3014 = vpop.f32.mrf.mxu0
    %3015 = vdwg.mxu0
    %3016 = vmatprep.subr.mxu0 0.0
    %3017 = vmatpush1.msra.mxu0 0.0
    %3018 = vmatprep.subr.mxu0 0.0
    %3019 = vmatpush1.msra.mxu0 0.0
    %3020 = vmatprep.subr.mxu0 0.0
    %3021 = vmatpush1.msra.mxu0 0.0
    %3022 = vmatprep.subr.mxu0 0.0
    %3023 = vmatpush1.msra.mxu0 0.0
    %3024 = vmatprep.subr.mxu0 0.0
    %3025 = vmatpush1.msra.mxu0 0.0
    %3026 = vmatprep.subr.mxu0 0.0
    %3027 = vmatpush1.msra.mxu0 0.0
    %3028 = vmatprep.subr.mxu0 0.0
    %3029 = vmatpush1.msra.mxu0 0.0
    %3030 = vmatprep.subr.mxu0 0.0
    %3031 = vmatpush1.msra.mxu0 0.0
    %3032 = vmatprep.subr.mxu0 0.0
    %3033 = vmatpush1.msra.mxu0 0.0
    %3034 = vmatprep.subr.mxu0 0.0
    %3035 = vmatpush1.msra.mxu0 0.0
    %3036 = vmatprep.subr.mxu0 0.0
    %3037 = vmatpush1.msra.mxu0 0.0
    %3038 = vmatprep.subr.mxu0 0.0
    %3039 = vmatpush1.msra.mxu0 0.0
    %3040 = vmatprep.subr.mxu0 0.0
    %v3041 = vand.u32 %v2930, 4294901760
    %v3042 = vsub.f32 %v2930, %v3041
    %v3043 = vand.u32 %v3042, 4294901760
    %v3044 = vsub.f32 %v3042, %v3043
    %v3045 = vand.u32 %v3044, 4294901760
    %3046 = vmatpush1.msra.mxu0 %v3045
    %3047 = vmatprep.subr.mxu0 0.0
    %v3048 = vand.u32 %v2929, 4294901760
    %v3049 = vsub.f32 %v2929, %v3048
    %v3050 = vand.u32 %v3049, 4294901760
    %v3051 = vsub.f32 %v3049, %v3050
    %v3052 = vand.u32 %v3051, 4294901760
    %3053 = vmatpush1.msra.mxu0 %v3052
    %3054 = vmatprep.subr.mxu0 0.0
    %v3055 = vand.u32 %v2928, 4294901760
    %v3056 = vsub.f32 %v2928, %v3055
    %v3057 = vand.u32 %v3056, 4294901760
    %v3058 = vsub.f32 %v3056, %v3057
    %v3059 = vand.u32 %v3058, 4294901760
    %3060 = vmatpush1.msra.mxu0 %v3059
    %3061 = vmatprep.subr.mxu0 0.0
    %v3062 = vand.u32 %v2927, 4294901760
    %v3063 = vsub.f32 %v2927, %v3062
    %v3064 = vand.u32 %v3063, 4294901760
    %v3065 = vsub.f32 %v3063, %v3064
    %v3066 = vand.u32 %v3065, 4294901760
    %3067 = vmatpush1.msra.mxu0 %v3066
    %3068 = vmatprep.subr.mxu0 0.0
    %3069 = vmatpush2.msra.mxu0 0.0
    %3070 = vmatprep.subr.mxu0 0.0
    %3071 = vmatpush2.msra.mxu0 0.0
    %3072 = vmatprep.subr.mxu0 0.0
    %3073 = vmatpush2.msra.mxu0 0.0
    %3074 = vmatprep.subr.mxu0 0.0
    %3075 = vmatpush2.msra.mxu0 0.0
    %3076 = vmatprep.subr.mxu0 0.0
    %3077 = vmatpush2.msra.mxu0 0.0
    %3078 = vmatprep.subr.mxu0 0.0
    %3079 = vmatpush2.msra.mxu0 0.0
    %3080 = vmatprep.subr.mxu0 0.0
    %3081 = vmatpush2.msra.mxu0 0.0
    %3082 = vmatprep.subr.mxu0 0.0
    %3083 = vmatpush2.msra.mxu0 0.0
    %3084 = vmatprep.subr.mxu0 0.0
    %3085 = vmatpush2.msra.mxu0 0.0
    %3086 = vmatprep.subr.mxu0 0.0
    %3087 = vmatpush2.msra.mxu0 0.0
    %3088 = vmatprep.subr.mxu0 0.0
    %3089 = vmatpush2.msra.mxu0 0.0
    %3090 = vmatprep.subr.mxu0 0.0
    %3091 = vmatpush2.msra.mxu0 0.0
    %3092 = vmatprep.subr.mxu0 0.0
    %3093 = vmatpush2.msra.mxu0 0.0
    %3094 = vmatprep.subr.mxu0 0.0
    %3095 = vmatpush2.msra.mxu0 0.0
    %3096 = vmatprep.subr.mxu0 0.0
    %3097 = vmatpush2.msra.mxu0 0.0
    %3098 = vmatprep.subr.mxu0 0.0
    %3099 = vmatpush2.msra.mxu0 0.0
    %3100 = vmatprep.mubr.f32.mxu0 0.0
    %v3101 = vand.u32 %v2935, 4294901760
    %3102 = vmatmul.mubr.f32.gmra.mxu0 %v3101
    %v3103 = vpop.f32.mrf.mxu0
    %v3104 = vadd.f32 %v3013, %v3103
    %v3105 = vpop.f32.mrf.mxu0
    %3106 = vdwg.mxu0
    %3107 = vmatprep.subr.mxu0 0.0
    %3108 = vmatpush1.msra.mxu0 0.0
    %3109 = vmatprep.subr.mxu0 0.0
    %3110 = vmatpush1.msra.mxu0 0.0
    %3111 = vmatprep.subr.mxu0 0.0
    %3112 = vmatpush1.msra.mxu0 0.0
    %3113 = vmatprep.subr.mxu0 0.0
    %3114 = vmatpush1.msra.mxu0 0.0
    %3115 = vmatprep.subr.mxu0 0.0
    %3116 = vmatpush1.msra.mxu0 0.0
    %3117 = vmatprep.subr.mxu0 0.0
    %3118 = vmatpush1.msra.mxu0 0.0
    %3119 = vmatprep.subr.mxu0 0.0
    %3120 = vmatpush1.msra.mxu0 0.0
    %3121 = vmatprep.subr.mxu0 0.0
    %3122 = vmatpush1.msra.mxu0 0.0
    %3123 = vmatprep.subr.mxu0 0.0
    %3124 = vmatpush1.msra.mxu0 0.0
    %3125 = vmatprep.subr.mxu0 0.0
    %3126 = vmatpush1.msra.mxu0 0.0
    %3127 = vmatprep.subr.mxu0 0.0
    %3128 = vmatpush1.msra.mxu0 0.0
    %3129 = vmatprep.subr.mxu0 0.0
    %3130 = vmatpush1.msra.mxu0 0.0
    %3131 = vmatprep.subr.mxu0 0.0
    %v3132 = vand.u32 %v2930, 4294901760
    %v3133 = vsub.f32 %v2930, %v3132
    %3134 = vmatpush1.msra.mxu0 %v3133
    %3135 = vmatprep.subr.mxu0 0.0
    %v3136 = vand.u32 %v2929, 4294901760
    %v3137 = vsub.f32 %v2929, %v3136
    %3138 = vmatpush1.msra.mxu0 %v3137
    %3139 = vmatprep.subr.mxu0 0.0
    %v3140 = vand.u32 %v2928, 4294901760
    %v3141 = vsub.f32 %v2928, %v3140
    %3142 = vmatpush1.msra.mxu0 %v3141
    %3143 = vmatprep.subr.mxu0 0.0
    %v3144 = vand.u32 %v2927, 4294901760
    %v3145 = vsub.f32 %v2927, %v3144
    %3146 = vmatpush1.msra.mxu0 %v3145
    %3147 = vmatprep.subr.mxu0 0.0
    %3148 = vmatpush2.msra.mxu0 0.0
    %3149 = vmatprep.subr.mxu0 0.0
    %3150 = vmatpush2.msra.mxu0 0.0
    %3151 = vmatprep.subr.mxu0 0.0
    %3152 = vmatpush2.msra.mxu0 0.0
    %3153 = vmatprep.subr.mxu0 0.0
    %3154 = vmatpush2.msra.mxu0 0.0
    %3155 = vmatprep.subr.mxu0 0.0
    %3156 = vmatpush2.msra.mxu0 0.0
    %3157 = vmatprep.subr.mxu0 0.0
    %3158 = vmatpush2.msra.mxu0 0.0
    %3159 = vmatprep.subr.mxu0 0.0
    %3160 = vmatpush2.msra.mxu0 0.0
    %3161 = vmatprep.subr.mxu0 0.0
    %3162 = vmatpush2.msra.mxu0 0.0
    %3163 = vmatprep.subr.mxu0 0.0
    %3164 = vmatpush2.msra.mxu0 0.0
    %3165 = vmatprep.subr.mxu0 0.0
    %3166 = vmatpush2.msra.mxu0 0.0
    %3167 = vmatprep.subr.mxu0 0.0
    %3168 = vmatpush2.msra.mxu0 0.0
    %3169 = vmatprep.subr.mxu0 0.0
    %3170 = vmatpush2.msra.mxu0 0.0
    %3171 = vmatprep.subr.mxu0 0.0
    %3172 = vmatpush2.msra.mxu0 0.0
    %3173 = vmatprep.subr.mxu0 0.0
    %3174 = vmatpush2.msra.mxu0 0.0
    %3175 = vmatprep.subr.mxu0 0.0
    %3176 = vmatpush2.msra.mxu0 0.0
    %3177 = vmatprep.subr.mxu0 0.0
    %3178 = vmatpush2.msra.mxu0 0.0
    %3179 = vmatprep.mubr.f32.mxu0 0.0
    %v3180 = vand.u32 %v2935, 4294901760
    %v3181 = vsub.f32 %v2935, %v3180
    %3182 = vmatmul.mubr.f32.gmra.mxu0 %v3181
    %v3183 = vpop.f32.mrf.mxu0
    %v3184 = vadd.f32 %v3104, %v3183
    %v3185 = vpop.f32.mrf.mxu0
    %3186 = vdwg.mxu0
    %3187 = vmatprep.subr.mxu0 0.0
    %3188 = vmatpush1.msra.mxu0 0.0
    %3189 = vmatprep.subr.mxu0 0.0
    %3190 = vmatpush1.msra.mxu0 0.0
    %3191 = vmatprep.subr.mxu0 0.0
    %3192 = vmatpush1.msra.mxu0 0.0
    %3193 = vmatprep.subr.mxu0 0.0
    %3194 = vmatpush1.msra.mxu0 0.0
    %3195 = vmatprep.subr.mxu0 0.0
    %3196 = vmatpush1.msra.mxu0 0.0
    %3197 = vmatprep.subr.mxu0 0.0
    %3198 = vmatpush1.msra.mxu0 0.0
    %3199 = vmatprep.subr.mxu0 0.0
    %3200 = vmatpush1.msra.mxu0 0.0
    %3201 = vmatprep.subr.mxu0 0.0
    %3202 = vmatpush1.msra.mxu0 0.0
    %3203 = vmatprep.subr.mxu0 0.0
    %3204 = vmatpush1.msra.mxu0 0.0
    %3205 = vmatprep.subr.mxu0 0.0
    %3206 = vmatpush1.msra.mxu0 0.0
    %3207 = vmatprep.subr.mxu0 0.0
    %3208 = vmatpush1.msra.mxu0 0.0
    %3209 = vmatprep.subr.mxu0 0.0
    %3210 = vmatpush1.msra.mxu0 0.0
    %3211 = vmatprep.subr.mxu0 0.0
    %v3212 = vand.u32 %v2930, 4294901760
    %3213 = vmatpush1.msra.mxu0 %v3212
    %3214 = vmatprep.subr.mxu0 0.0
    %v3215 = vand.u32 %v2929, 4294901760
    %3216 = vmatpush1.msra.mxu0 %v3215
    %3217 = vmatprep.subr.mxu0 0.0
    %v3218 = vand.u32 %v2928, 4294901760
    %3219 = vmatpush1.msra.mxu0 %v3218
    %3220 = vmatprep.subr.mxu0 0.0
    %v3221 = vand.u32 %v2927, 4294901760
    %3222 = vmatpush1.msra.mxu0 %v3221
    %3223 = vmatprep.subr.mxu0 0.0
    %3224 = vmatpush2.msra.mxu0 0.0
    %3225 = vmatprep.subr.mxu0 0.0
    %3226 = vmatpush2.msra.mxu0 0.0
    %3227 = vmatprep.subr.mxu0 0.0
    %3228 = vmatpush2.msra.mxu0 0.0
    %3229 = vmatprep.subr.mxu0 0.0
    %3230 = vmatpush2.msra.mxu0 0.0
    %3231 = vmatprep.subr.mxu0 0.0
    %3232 = vmatpush2.msra.mxu0 0.0
    %3233 = vmatprep.subr.mxu0 0.0
    %3234 = vmatpush2.msra.mxu0 0.0
    %3235 = vmatprep.subr.mxu0 0.0
    %3236 = vmatpush2.msra.mxu0 0.0
    %3237 = vmatprep.subr.mxu0 0.0
    %3238 = vmatpush2.msra.mxu0 0.0
    %3239 = vmatprep.subr.mxu0 0.0
    %3240 = vmatpush2.msra.mxu0 0.0
    %3241 = vmatprep.subr.mxu0 0.0
    %3242 = vmatpush2.msra.mxu0 0.0
    %3243 = vmatprep.subr.mxu0 0.0
    %3244 = vmatpush2.msra.mxu0 0.0
    %3245 = vmatprep.subr.mxu0 0.0
    %3246 = vmatpush2.msra.mxu0 0.0
    %3247 = vmatprep.subr.mxu0 0.0
    %3248 = vmatpush2.msra.mxu0 0.0
    %3249 = vmatprep.subr.mxu0 0.0
    %3250 = vmatpush2.msra.mxu0 0.0
    %3251 = vmatprep.subr.mxu0 0.0
    %3252 = vmatpush2.msra.mxu0 0.0
    %3253 = vmatprep.subr.mxu0 0.0
    %3254 = vmatpush2.msra.mxu0 0.0
    %3255 = vmatprep.mubr.f32.mxu0 0.0
    %v3256 = vand.u32 %v2935, 4294901760
    %v3257 = vsub.f32 %v2935, %v3256
    %v3258 = vand.u32 %v3257, 4294901760
    %3259 = vmatmul.mubr.f32.gmra.mxu0 %v3258
    %v3260 = vpop.f32.mrf.mxu0
    %v3261 = vadd.f32 %v3184, %v3260
    %v3262 = vpop.f32.mrf.mxu0
    %3263 = vdwg.mxu0
    %3264 = vmatprep.subr.mxu0 0.0
    %3265 = vmatpush1.msra.mxu0 0.0
    %3266 = vmatprep.subr.mxu0 0.0
    %3267 = vmatpush1.msra.mxu0 0.0
    %3268 = vmatprep.subr.mxu0 0.0
    %3269 = vmatpush1.msra.mxu0 0.0
    %3270 = vmatprep.subr.mxu0 0.0
    %3271 = vmatpush1.msra.mxu0 0.0
    %3272 = vmatprep.subr.mxu0 0.0
    %3273 = vmatpush1.msra.mxu0 0.0
    %3274 = vmatprep.subr.mxu0 0.0
    %3275 = vmatpush1.msra.mxu0 0.0
    %3276 = vmatprep.subr.mxu0 0.0
    %3277 = vmatpush1.msra.mxu0 0.0
    %3278 = vmatprep.subr.mxu0 0.0
    %3279 = vmatpush1.msra.mxu0 0.0
    %3280 = vmatprep.subr.mxu0 0.0
    %3281 = vmatpush1.msra.mxu0 0.0
    %3282 = vmatprep.subr.mxu0 0.0
    %3283 = vmatpush1.msra.mxu0 0.0
    %3284 = vmatprep.subr.mxu0 0.0
    %3285 = vmatpush1.msra.mxu0 0.0
    %3286 = vmatprep.subr.mxu0 0.0
    %3287 = vmatpush1.msra.mxu0 0.0
    %3288 = vmatprep.subr.mxu0 0.0
    %v3289 = vand.u32 %v2930, 4294901760
    %v3290 = vsub.f32 %v2930, %v3289
    %v3291 = vand.u32 %v3290, 4294901760
    %3292 = vmatpush1.msra.mxu0 %v3291
    %3293 = vmatprep.subr.mxu0 0.0
    %v3294 = vand.u32 %v2929, 4294901760
    %v3295 = vsub.f32 %v2929, %v3294
    %v3296 = vand.u32 %v3295, 4294901760
    %3297 = vmatpush1.msra.mxu0 %v3296
    %3298 = vmatprep.subr.mxu0 0.0
    %v3299 = vand.u32 %v2928, 4294901760
    %v3300 = vsub.f32 %v2928, %v3299
    %v3301 = vand.u32 %v3300, 4294901760
    %3302 = vmatpush1.msra.mxu0 %v3301
    %3303 = vmatprep.subr.mxu0 0.0
    %v3304 = vand.u32 %v2927, 4294901760
    %v3305 = vsub.f32 %v2927, %v3304
    %v3306 = vand.u32 %v3305, 4294901760
    %3307 = vmatpush1.msra.mxu0 %v3306
    %3308 = vmatprep.subr.mxu0 0.0
    %3309 = vmatpush2.msra.mxu0 0.0
    %3310 = vmatprep.subr.mxu0 0.0
    %3311 = vmatpush2.msra.mxu0 0.0
    %3312 = vmatprep.subr.mxu0 0.0
    %3313 = vmatpush2.msra.mxu0 0.0
    %3314 = vmatprep.subr.mxu0 0.0
    %3315 = vmatpush2.msra.mxu0 0.0
    %3316 = vmatprep.subr.mxu0 0.0
    %3317 = vmatpush2.msra.mxu0 0.0
    %3318 = vmatprep.subr.mxu0 0.0
    %3319 = vmatpush2.msra.mxu0 0.0
    %3320 = vmatprep.subr.mxu0 0.0
    %3321 = vmatpush2.msra.mxu0 0.0
    %3322 = vmatprep.subr.mxu0 0.0
    %3323 = vmatpush2.msra.mxu0 0.0
    %3324 = vmatprep.subr.mxu0 0.0
    %3325 = vmatpush2.msra.mxu0 0.0
    %3326 = vmatprep.subr.mxu0 0.0
    %3327 = vmatpush2.msra.mxu0 0.0
    %3328 = vmatprep.subr.mxu0 0.0
    %3329 = vmatpush2.msra.mxu0 0.0
    %3330 = vmatprep.subr.mxu0 0.0
    %3331 = vmatpush2.msra.mxu0 0.0
    %3332 = vmatprep.subr.mxu0 0.0
    %3333 = vmatpush2.msra.mxu0 0.0
    %3334 = vmatprep.subr.mxu0 0.0
    %3335 = vmatpush2.msra.mxu0 0.0
    %3336 = vmatprep.subr.mxu0 0.0
    %3337 = vmatpush2.msra.mxu0 0.0
    %3338 = vmatprep.subr.mxu0 0.0
    %3339 = vmatpush2.msra.mxu0 0.0
    %3340 = vmatprep.mubr.f32.mxu0 0.0
    %v3341 = vand.u32 %v2935, 4294901760
    %3342 = vmatmul.mubr.f32.gmra.mxu0 %v3341
    %v3343 = vpop.f32.mrf.mxu0
    %v3344 = vadd.f32 %v3261, %v3343
    %v3345 = vpop.f32.mrf.mxu0
    %3346 = vdwg.mxu0
    %3347 = vmatprep.subr.mxu0 0.0
    %3348 = vmatpush1.msra.mxu0 0.0
    %3349 = vmatprep.subr.mxu0 0.0
    %3350 = vmatpush1.msra.mxu0 0.0
    %3351 = vmatprep.subr.mxu0 0.0
    %3352 = vmatpush1.msra.mxu0 0.0
    %3353 = vmatprep.subr.mxu0 0.0
    %3354 = vmatpush1.msra.mxu0 0.0
    %3355 = vmatprep.subr.mxu0 0.0
    %3356 = vmatpush1.msra.mxu0 0.0
    %3357 = vmatprep.subr.mxu0 0.0
    %3358 = vmatpush1.msra.mxu0 0.0
    %3359 = vmatprep.subr.mxu0 0.0
    %3360 = vmatpush1.msra.mxu0 0.0
    %3361 = vmatprep.subr.mxu0 0.0
    %3362 = vmatpush1.msra.mxu0 0.0
    %3363 = vmatprep.subr.mxu0 0.0
    %3364 = vmatpush1.msra.mxu0 0.0
    %3365 = vmatprep.subr.mxu0 0.0
    %3366 = vmatpush1.msra.mxu0 0.0
    %3367 = vmatprep.subr.mxu0 0.0
    %3368 = vmatpush1.msra.mxu0 0.0
    %3369 = vmatprep.subr.mxu0 0.0
    %3370 = vmatpush1.msra.mxu0 0.0
    %3371 = vmatprep.subr.mxu0 0.0
    %v3372 = vand.u32 %v2930, 4294901760
    %3373 = vmatpush1.msra.mxu0 %v3372
    %3374 = vmatprep.subr.mxu0 0.0
    %v3375 = vand.u32 %v2929, 4294901760
    %3376 = vmatpush1.msra.mxu0 %v3375
    %3377 = vmatprep.subr.mxu0 0.0
    %v3378 = vand.u32 %v2928, 4294901760
    %3379 = vmatpush1.msra.mxu0 %v3378
    %3380 = vmatprep.subr.mxu0 0.0
    %v3381 = vand.u32 %v2927, 4294901760
    %3382 = vmatpush1.msra.mxu0 %v3381
    %3383 = vmatprep.subr.mxu0 0.0
    %3384 = vmatpush2.msra.mxu0 0.0
    %3385 = vmatprep.subr.mxu0 0.0
    %3386 = vmatpush2.msra.mxu0 0.0
    %3387 = vmatprep.subr.mxu0 0.0
    %3388 = vmatpush2.msra.mxu0 0.0
    %3389 = vmatprep.subr.mxu0 0.0
    %3390 = vmatpush2.msra.mxu0 0.0
    %3391 = vmatprep.subr.mxu0 0.0
    %3392 = vmatpush2.msra.mxu0 0.0
    %3393 = vmatprep.subr.mxu0 0.0
    %3394 = vmatpush2.msra.mxu0 0.0
    %3395 = vmatprep.subr.mxu0 0.0
    %3396 = vmatpush2.msra.mxu0 0.0
    %3397 = vmatprep.subr.mxu0 0.0
    %3398 = vmatpush2.msra.mxu0 0.0
    %3399 = vmatprep.subr.mxu0 0.0
    %3400 = vmatpush2.msra.mxu0 0.0
    %3401 = vmatprep.subr.mxu0 0.0
    %3402 = vmatpush2.msra.mxu0 0.0
    %3403 = vmatprep.subr.mxu0 0.0
    %3404 = vmatpush2.msra.mxu0 0.0
    %3405 = vmatprep.subr.mxu0 0.0
    %3406 = vmatpush2.msra.mxu0 0.0
    %3407 = vmatprep.subr.mxu0 0.0
    %3408 = vmatpush2.msra.mxu0 0.0
    %3409 = vmatprep.subr.mxu0 0.0
    %3410 = vmatpush2.msra.mxu0 0.0
    %3411 = vmatprep.subr.mxu0 0.0
    %3412 = vmatpush2.msra.mxu0 0.0
    %3413 = vmatprep.subr.mxu0 0.0
    %3414 = vmatpush2.msra.mxu0 0.0
    %3415 = vmatprep.mubr.f32.mxu0 0.0
    %v3416 = vand.u32 %v2935, 4294901760
    %3417 = vmatmul.mubr.f32.gmra.mxu0 %v3416
    %v3418 = vpop.f32.mrf.mxu0
    %v3419 = vadd.f32 %v3344, %v3418
    %v3420 = vpop.f32.mrf.mxu0
    %3421 = vdwg.mxu0
    %v3422 = vxor.u32 %v3419, 2147483648
    %v3423 = vmul.f32 %v3422, 1.442695
    %v3424 = vpow.pop %v3423
    %v3425 = vadd.f32 %v3424, 1.0
    %v3426 = vrcp.pop %v3425
    %v3427 = vmul.f32 1.0, %v3426
    %v3429 = vcombine.high %v3427, %v3427
    %v3431 = vunpack.c.l.s4 1966171168
    %v3432 = vunpack.c.0.s8 %v3431
    %v3433 = vlaneseq
    %v3434 = vshrl.u32 %v3433, 7
    %v3435 = vsub.s32 %v3432, %v3434
    %v3436 = vrot.slane %v3427, %v3435
    %v3438 = vunpack.c.l.s4 1966171168
    %v3439 = vunpack.c.0.s8 %v3438
    %v3440 = vlaneseq
    %v3441 = vshrl.u32 %v3440, 7
    %v3442 = vsub.s32 %v3439, %v3441
    %v3443 = vrot.slane %v3429, %v3442
    %v3444 = vcombine.high %v3436, %v3436
    %v3445 = vcombine.high %v3443, %v3443
    %v3447 = vunpack.c.l.s4 1966171168
    %v3448 = vunpack.c.0.s8 %v3447
    %v3449 = vlaneseq
    %v3450 = vshrl.u32 %v3449, 7
    %v3451 = vsub.s32 %v3448, %v3450
    %v3452 = vrot.slane %v3436, %v3451
    %v3454 = vunpack.c.l.s4 1966171168
    %v3455 = vunpack.c.0.s8 %v3454
    %v3456 = vlaneseq
    %v3457 = vshrl.u32 %v3456, 7
    %v3458 = vsub.s32 %v3455, %v3457
    %v3459 = vrot.slane %v3443, %v3458
    %v3461 = vunpack.c.l.s4 1966171168
    %v3462 = vunpack.c.0.s8 %v3461
    %v3463 = vlaneseq
    %v3464 = vshrl.u32 %v3463, 7
    %v3465 = vsub.s32 %v3462, %v3464
    %v3466 = vrot.slane %v3444, %v3465
    %v3468 = vunpack.c.l.s4 1966171168
    %v3469 = vunpack.c.0.s8 %v3468
    %v3470 = vlaneseq
    %v3471 = vshrl.u32 %v3470, 7
    %v3472 = vsub.s32 %v3469, %v3471
    %v3473 = vrot.slane %v3445, %v3472
    %v3474 = vcombine.high %v3452, %v3452
    %v3475 = vcombine.high %v3459, %v3459
    %v3476 = vcombine.high %v3466, %v3466
    %v3477 = vcombine.high %v3473, %v3473
    %3479 = vset.pattern.permute.xlu0 0
    %3480 = vperm.xlu0 %3479, %v2205
    %v3481 = vpop.permute.xlu0 %3480
    %3484 = vset.pattern.permute.xlu0 0
    %3485 = vperm.xlu0 %3484, %v2206
    %v3486 = vpop.permute.xlu0 %3485
    %3489 = vset.pattern.permute.xlu0 0
    %3490 = vperm.xlu0 %3489, %v2207
    %v3491 = vpop.permute.xlu0 %3490
    %3494 = vset.pattern.permute.xlu0 0
    %3495 = vperm.xlu0 %3494, %v2208
    %v3496 = vpop.permute.xlu0 %3495
    %3499 = vset.pattern.permute.xlu0 0
    %3500 = vperm.xlu0 %3499, %v2209
    %v3501 = vpop.permute.xlu0 %3500
    %3504 = vset.pattern.permute.xlu0 0
    %3505 = vperm.xlu0 %3504, %v2210
    %v3506 = vpop.permute.xlu0 %3505
    %3509 = vset.pattern.permute.xlu0 0
    %3510 = vperm.xlu0 %3509, %v2211
    %v3511 = vpop.permute.xlu0 %3510
    %3514 = vset.pattern.permute.xlu0 0
    %3515 = vperm.xlu0 %3514, %v2212
    %v3516 = vpop.permute.xlu0 %3515
    %3519 = vset.pattern.permute.xlu0 0
    %3520 = vperm.xlu0 %3519, %v2213
    %v3521 = vpop.permute.xlu0 %3520
    %3524 = vset.pattern.permute.xlu0 0
    %3525 = vperm.xlu0 %3524, %v2214
    %v3526 = vpop.permute.xlu0 %3525
    %3529 = vset.pattern.permute.xlu0 0
    %3530 = vperm.xlu0 %3529, %v2215
    %v3531 = vpop.permute.xlu0 %3530
    %3534 = vset.pattern.permute.xlu0 0
    %3535 = vperm.xlu0 %3534, %v2216
    %v3536 = vpop.permute.xlu0 %3535
    %3539 = vset.pattern.permute.xlu0 0
    %3540 = vperm.xlu0 %3539, %v2217
    %v3541 = vpop.permute.xlu0 %3540
    %3544 = vset.pattern.permute.xlu0 0
    %3545 = vperm.xlu0 %3544, %v2218
    %v3546 = vpop.permute.xlu0 %3545
    %3549 = vset.pattern.permute.xlu0 0
    %3550 = vperm.xlu0 %3549, %v2219
    %v3551 = vpop.permute.xlu0 %3550
    %3554 = vset.pattern.permute.xlu0 0
    %3555 = vperm.xlu0 %3554, %v2220
    %v3556 = vpop.permute.xlu0 %3555
    %v3558 = vlaneseq
    %v3559 = vshrl.u32 %v3558, 7
    %v3560 = vsub.s32 0, %v3559
    %v3561 = vrot.slane %v3452, %v3560
    %v3562 = vlaneseq
    %v3563 = vshrl.u32 %v3562, 7
    %v3564 = vsub.s32 0, %v3563
    %v3565 = vrot.slane %v3466, %v3564
    %v3566 = vlaneseq
    %v3567 = vshrl.u32 %v3566, 7
    %v3568 = vsub.s32 0, %v3567
    %v3569 = vrot.slane %v3474, %v3568
    %v3570 = vlaneseq
    %v3571 = vshrl.u32 %v3570, 7
    %v3572 = vsub.s32 0, %v3571
    %v3573 = vrot.slane %v3476, %v3572
    %v3574 = vlaneseq
    %v3575 = vshrl.u32 %v3574, 7
    %v3576 = vsub.s32 0, %v3575
    %v3577 = vrot.slane %v3459, %v3576
    %v3578 = vlaneseq
    %v3579 = vshrl.u32 %v3578, 7
    %v3580 = vsub.s32 0, %v3579
    %v3581 = vrot.slane %v3473, %v3580
    %v3582 = vlaneseq
    %v3583 = vshrl.u32 %v3582, 7
    %v3584 = vsub.s32 0, %v3583
    %v3585 = vrot.slane %v3475, %v3584
    %v3586 = vlaneseq
    %v3587 = vshrl.u32 %v3586, 7
    %v3588 = vsub.s32 0, %v3587
    %v3589 = vrot.slane %v3477, %v3588
    %v3598 = vmul.f32 %v3481, %v3561
    %v3599 = vmul.f32 %v3486, %v3561
    %v3600 = vmul.f32 %v3491, %v3565
    %v3601 = vmul.f32 %v3496, %v3565
    %v3602 = vmul.f32 %v3501, %v3569
    %v3603 = vmul.f32 %v3506, %v3569
    %v3604 = vmul.f32 %v3511, %v3573
    %v3605 = vmul.f32 %v3516, %v3573
    %v3606 = vmul.f32 %v3521, %v3577
    %v3607 = vmul.f32 %v3526, %v3577
    %v3608 = vmul.f32 %v3531, %v3581
    %v3609 = vmul.f32 %v3536, %v3581
    %v3610 = vmul.f32 %v3541, %v3585
    %v3611 = vmul.f32 %v3546, %v3585
    %v3612 = vmul.f32 %v3551, %v3589
    %v3613 = vmul.f32 %v3556, %v3589
    %v3614 = vsub.f32 1.0, %v3598
    %v3615 = vsub.f32 1.0, %v3599
    %v3616 = vsub.f32 1.0, %v3600
    %v3617 = vsub.f32 1.0, %v3601
    %v3618 = vsub.f32 1.0, %v3602
    %v3619 = vsub.f32 1.0, %v3603
    %v3620 = vsub.f32 1.0, %v3604
    %v3621 = vsub.f32 1.0, %v3605
    %v3622 = vsub.f32 1.0, %v3606
    %v3623 = vsub.f32 1.0, %v3607
    %v3624 = vsub.f32 1.0, %v3608
    %v3625 = vsub.f32 1.0, %v3609
    %v3626 = vsub.f32 1.0, %v3610
    %v3627 = vsub.f32 1.0, %v3611
    %v3628 = vsub.f32 1.0, %v3612
    %v3629 = vsub.f32 1.0, %v3613
    %v3630 = vmul.f32 %v114, %v3614
    %v3631 = vmul.f32 %v115, %v3615
    %v3632 = vmul.f32 %v116, %v3616
    %v3633 = vmul.f32 %v117, %v3617
    %v3634 = vmul.f32 %v118, %v3618
    %v3635 = vmul.f32 %v119, %v3619
    %v3636 = vmul.f32 %v120, %v3620
    %v3637 = vmul.f32 %v121, %v3621
    %v3638 = vmul.f32 %v122, %v3622
    %v3639 = vmul.f32 %v123, %v3623
    %v3640 = vmul.f32 %v124, %v3624
    %v3641 = vmul.f32 %v125, %v3625
    %v3642 = vmul.f32 %v126, %v3626
    %v3643 = vmul.f32 %v127, %v3627
    %v3644 = vmul.f32 %v128, %v3628
    %v3645 = vmul.f32 %v129, %v3629
    %v3647 = vcombine.high %v3419, %v3419
    %v3649 = vunpack.c.l.s4 1966171168
    %v3650 = vunpack.c.0.s8 %v3649
    %v3651 = vlaneseq
    %v3652 = vshrl.u32 %v3651, 7
    %v3653 = vsub.s32 %v3650, %v3652
    %v3654 = vrot.slane %v3419, %v3653
    %v3656 = vunpack.c.l.s4 1966171168
    %v3657 = vunpack.c.0.s8 %v3656
    %v3658 = vlaneseq
    %v3659 = vshrl.u32 %v3658, 7
    %v3660 = vsub.s32 %v3657, %v3659
    %v3661 = vrot.slane %v3647, %v3660
    %v3662 = vcombine.high %v3654, %v3654
    %v3663 = vcombine.high %v3661, %v3661
    %v3665 = vunpack.c.l.s4 1966171168
    %v3666 = vunpack.c.0.s8 %v3665
    %v3667 = vlaneseq
    %v3668 = vshrl.u32 %v3667, 7
    %v3669 = vsub.s32 %v3666, %v3668
    %v3670 = vrot.slane %v3654, %v3669
    %v3672 = vunpack.c.l.s4 1966171168
    %v3673 = vunpack.c.0.s8 %v3672
    %v3674 = vlaneseq
    %v3675 = vshrl.u32 %v3674, 7
    %v3676 = vsub.s32 %v3673, %v3675
    %v3677 = vrot.slane %v3661, %v3676
    %v3679 = vunpack.c.l.s4 1966171168
    %v3680 = vunpack.c.0.s8 %v3679
    %v3681 = vlaneseq
    %v3682 = vshrl.u32 %v3681, 7
    %v3683 = vsub.s32 %v3680, %v3682
    %v3684 = vrot.slane %v3662, %v3683
    %v3686 = vunpack.c.l.s4 1966171168
    %v3687 = vunpack.c.0.s8 %v3686
    %v3688 = vlaneseq
    %v3689 = vshrl.u32 %v3688, 7
    %v3690 = vsub.s32 %v3687, %v3689
    %v3691 = vrot.slane %v3663, %v3690
    %v3692 = vcombine.high %v3670, %v3670
    %v3693 = vcombine.high %v3677, %v3677
    %v3694 = vcombine.high %v3684, %v3684
    %v3695 = vcombine.high %v3691, %v3691
    %v3696 = vlaneseq
    %v3697 = vshrl.u32 %v3696, 7
    %v3698 = vsub.s32 0, %v3697
    %v3699 = vrot.slane %v3670, %v3698
    %v3700 = vlaneseq
    %v3701 = vshrl.u32 %v3700, 7
    %v3702 = vsub.s32 0, %v3701
    %v3703 = vrot.slane %v3684, %v3702
    %v3704 = vlaneseq
    %v3705 = vshrl.u32 %v3704, 7
    %v3706 = vsub.s32 0, %v3705
    %v3707 = vrot.slane %v3692, %v3706
    %v3708 = vlaneseq
    %v3709 = vshrl.u32 %v3708, 7
    %v3710 = vsub.s32 0, %v3709
    %v3711 = vrot.slane %v3694, %v3710
    %v3712 = vlaneseq
    %v3713 = vshrl.u32 %v3712, 7
    %v3714 = vsub.s32 0, %v3713
    %v3715 = vrot.slane %v3677, %v3714
    %v3716 = vlaneseq
    %v3717 = vshrl.u32 %v3716, 7
    %v3718 = vsub.s32 0, %v3717
    %v3719 = vrot.slane %v3691, %v3718
    %v3720 = vlaneseq
    %v3721 = vshrl.u32 %v3720, 7
    %v3722 = vsub.s32 0, %v3721
    %v3723 = vrot.slane %v3693, %v3722
    %v3724 = vlaneseq
    %v3725 = vshrl.u32 %v3724, 7
    %v3726 = vsub.s32 0, %v3725
    %v3727 = vrot.slane %v3695, %v3726
    %v3736 = vmul.f32 %v3481, %v3699
    %v3737 = vmul.f32 %v3486, %v3699
    %v3738 = vmul.f32 %v3491, %v3703
    %v3739 = vmul.f32 %v3496, %v3703
    %v3740 = vmul.f32 %v3501, %v3707
    %v3741 = vmul.f32 %v3506, %v3707
    %v3742 = vmul.f32 %v3511, %v3711
    %v3743 = vmul.f32 %v3516, %v3711
    %v3744 = vmul.f32 %v3521, %v3715
    %v3745 = vmul.f32 %v3526, %v3715
    %v3746 = vmul.f32 %v3531, %v3719
    %v3747 = vmul.f32 %v3536, %v3719
    %v3748 = vmul.f32 %v3541, %v3723
    %v3749 = vmul.f32 %v3546, %v3723
    %v3750 = vmul.f32 %v3551, %v3727
    %v3751 = vmul.f32 %v3556, %v3727
    %3768 = vrot.lane.b32.xlu0 %v3736, 96
    %v3769 = vpop.permute.xlu0 %3768
    %3770 = vrot.lane.b32.xlu0 %v3737, 96
    %v3771 = vpop.permute.xlu0 %3770
    %3772 = vrot.lane.b32.xlu0 %v3738, 96
    %v3773 = vpop.permute.xlu0 %3772
    %3774 = vrot.lane.b32.xlu0 %v3739, 96
    %v3775 = vpop.permute.xlu0 %3774
    %3776 = vrot.lane.b32.xlu0 %v3740, 96
    %v3777 = vpop.permute.xlu0 %3776
    %3778 = vrot.lane.b32.xlu0 %v3741, 96
    %v3779 = vpop.permute.xlu0 %3778
    %3780 = vrot.lane.b32.xlu0 %v3742, 96
    %v3781 = vpop.permute.xlu0 %3780
    %3782 = vrot.lane.b32.xlu0 %v3743, 96
    %v3783 = vpop.permute.xlu0 %3782
    %3784 = vrot.lane.b32.xlu0 %v3744, 96
    %v3785 = vpop.permute.xlu0 %3784
    %3786 = vrot.lane.b32.xlu0 %v3745, 96
    %v3787 = vpop.permute.xlu0 %3786
    %3788 = vrot.lane.b32.xlu0 %v3746, 96
    %v3789 = vpop.permute.xlu0 %3788
    %3790 = vrot.lane.b32.xlu0 %v3747, 96
    %v3791 = vpop.permute.xlu0 %3790
    %3792 = vrot.lane.b32.xlu0 %v3748, 96
    %v3793 = vpop.permute.xlu0 %3792
    %3794 = vrot.lane.b32.xlu0 %v3749, 96
    %v3795 = vpop.permute.xlu0 %3794
    %3796 = vrot.lane.b32.xlu0 %v3750, 96
    %v3797 = vpop.permute.xlu0 %3796
    %3798 = vrot.lane.b32.xlu0 %v3751, 96
    %v3799 = vpop.permute.xlu0 %3798
    %v3816 = vadd.f32 %v3630, %v3769
    %v3817 = vadd.f32 %v3631, %v3771
    %v3818 = vadd.f32 %v3632, %v3773
    %v3819 = vadd.f32 %v3633, %v3775
    %v3820 = vadd.f32 %v3634, %v3777
    %v3821 = vadd.f32 %v3635, %v3779
    %v3822 = vadd.f32 %v3636, %v3781
    %v3823 = vadd.f32 %v3637, %v3783
    %v3824 = vadd.f32 %v3638, %v3785
    %v3825 = vadd.f32 %v3639, %v3787
    %v3826 = vadd.f32 %v3640, %v3789
    %v3827 = vadd.f32 %v3641, %v3791
    %v3828 = vadd.f32 %v3642, %v3793
    %v3829 = vadd.f32 %v3643, %v3795
    %v3830 = vadd.f32 %v3644, %v3797
    %v3831 = vadd.f32 %v3645, %v3799
    %3833 = vst.msk [vmem:[#allocation2] sm:$0xff] %vm167, %v2934
    %3834 = vst.msk [vmem:[#allocation3] sm:$0xff] %vm167, %v3816
    %3835 = vst.msk [vmem:[#allocation3 + $0x8] sm:$0xff] %vm167, %v3817
    %3836 = vst.msk [vmem:[#allocation3 + $0x10] sm:$0xff] %vm167, %v3818
    %3837 = vst.msk [vmem:[#allocation3 + $0x18] sm:$0xff] %vm167, %v3819
    %3838 = vst.msk [vmem:[#allocation3 + $0x20] sm:$0xff] %vm167, %v3820
    %3839 = vst.msk [vmem:[#allocation3 + $0x28] sm:$0xff] %vm167, %v3821
    %3840 = vst.msk [vmem:[#allocation3 + $0x30] sm:$0xff] %vm167, %v3822
    %3841 = vst.msk [vmem:[#allocation3 + $0x38] sm:$0xff] %vm167, %v3823
    %3842 = vst.msk [vmem:[#allocation3 + $0x40] sm:$0xff] %vm167, %v3824
    %3843 = vst.msk [vmem:[#allocation3 + $0x48] sm:$0xff] %vm167, %v3825
    %3844 = vst.msk [vmem:[#allocation3 + $0x50] sm:$0xff] %vm167, %v3826
    %3845 = vst.msk [vmem:[#allocation3 + $0x58] sm:$0xff] %vm167, %v3827
    %3846 = vst.msk [vmem:[#allocation3 + $0x60] sm:$0xff] %vm167, %v3828
    %3847 = vst.msk [vmem:[#allocation3 + $0x68] sm:$0xff] %vm167, %v3829
    %3848 = vst.msk [vmem:[#allocation3 + $0x70] sm:$0xff] %vm167, %v3830
    %3849 = vst.msk [vmem:[#allocation3 + $0x78] sm:$0xff] %vm167, %v3831
    %3850 = vst.msk [vmem:[#allocation12] sm:$0xff] %vm167, %v2934
    %3851 = vst.msk [vmem:[#allocation13] sm:$0xff] %vm167, %v3816
    %3852 = vst.msk [vmem:[#allocation13 + $0x8] sm:$0xff] %vm167, %v3817
    %3853 = vst.msk [vmem:[#allocation13 + $0x10] sm:$0xff] %vm167, %v3818
    %3854 = vst.msk [vmem:[#allocation13 + $0x18] sm:$0xff] %vm167, %v3819
    %3855 = vst.msk [vmem:[#allocation13 + $0x20] sm:$0xff] %vm167, %v3820
    %3856 = vst.msk [vmem:[#allocation13 + $0x28] sm:$0xff] %vm167, %v3821
    %3857 = vst.msk [vmem:[#allocation13 + $0x30] sm:$0xff] %vm167, %v3822
    %3858 = vst.msk [vmem:[#allocation13 + $0x38] sm:$0xff] %vm167, %v3823
    %3859 = vst.msk [vmem:[#allocation13 + $0x40] sm:$0xff] %vm167, %v3824
    %3860 = vst.msk [vmem:[#allocation13 + $0x48] sm:$0xff] %vm167, %v3825
    %3861 = vst.msk [vmem:[#allocation13 + $0x50] sm:$0xff] %vm167, %v3826
    %3862 = vst.msk [vmem:[#allocation13 + $0x58] sm:$0xff] %vm167, %v3827
    %3863 = vst.msk [vmem:[#allocation13 + $0x60] sm:$0xff] %vm167, %v3828
    %3864 = vst.msk [vmem:[#allocation13 + $0x68] sm:$0xff] %vm167, %v3829
    %3865 = vst.msk [vmem:[#allocation13 + $0x70] sm:$0xff] %vm167, %v3830
    %3866 = vst.msk [vmem:[#allocation13 + $0x78] sm:$0xff] %vm167, %v3831
    // Predicated region
    $region38: #{tpu_custom_call.1} parent=1 // pred_check
      _
    $region39: #{tpu_custom_call.1} parent=1 // pred_check_branch
      %3868 = sbr.rel (0) target = $region41
    $region40: #{tpu_custom_call.1} parent=1 // pred_region
      %s3870 = ssub.s32 128, 128
      %3871 = vsyncadd [#allocation6], %s3870
      %s3873 = sshll.u32 [#allocation12], 4
      %s3874 = int_to_ptr.vmem [resolvable:$true] %s3873
      %3876 = dma.vmem_to_hbm [thread:$0]  %s3874, 128, %s4, [#allocation6]
    $region41: #{tpu_custom_call.1} parent=1 // pred_fallthru
      _
    // Predicated region
    $region42: #{tpu_custom_call.1} parent=1 // pred_check
      _
    $region43: #{tpu_custom_call.1} parent=1 // pred_check_branch
      %3878 = sbr.rel (0) target = $region45
    $region44: #{tpu_custom_call.1} parent=1 // pred_region
      %s3880 = ssub.s32 2048, 2048
      %3881 = vsyncadd [#allocation14], %s3880
      %s3882 = sshll.u32 [#allocation13], 4
      %s3883 = int_to_ptr.vmem [resolvable:$true] %s3882
      %3888 = dma.vmem_to_hbm [thread:$0]  %s3883, 2048, %s5, [#allocation14], 128, 128, 8
    $region45: #{tpu_custom_call.1} parent=1 // pred_fallthru
      _
    // Predicated region
    $region46: #{tpu_custom_call.1} parent=1 // pred_check
      _
    $region47: #{tpu_custom_call.1} parent=1 // pred_check_branch
      %3890 = sbr.rel (0) target = $region49
    $region48: #{tpu_custom_call.1} parent=1 // pred_region
      %3891 = dma.done [#allocation6], 128
    $region49: #{tpu_custom_call.1} parent=1 // pred_fallthru
      _
    // Predicated region
    $region50: #{tpu_custom_call.1} parent=1 // pred_check
      _
    $region51: #{tpu_custom_call.1} parent=1 // pred_check_branch
      %3893 = sbr.rel (0) target = $region53
    $region52: #{tpu_custom_call.1} parent=1 // pred_region
      %3894 = dma.done [#allocation14], 2048
    $region53: #{tpu_custom_call.1} parent=1 // pred_fallthru
      _
    %3895 = vsyncpa [#allocation5], 1
    %3896 = vsyncpa [#allocation8], 1
    %3897 = vsyncpa [#allocation11], 1
    %3898 = vsyncpa [#allocation6], 1
    %3899 = vsyncpa [#allocation14], 1

</llo_original>
